<compile_context>
chip_gen: v5e
topology: v5e:2x2
jax: 0.10.0
libtpu: 0.0.40
codegen_flags: <defaults>
</compile_context>

<pallas_src>
import math
import functools

import jax
import jax.numpy as jnp
from jax.experimental import pallas as pl
from jax.experimental.pallas import tpu as pltpu

DTYPE_ACT = jnp.bfloat16          # inter-kernel activations / matmul operands


# ----------------------- per-generation VMEM / tile setup --------------------

def _device_vmem_bytes():
    fn = getattr(pltpu, "get_tpu_info", None)
    if fn is not None:
        try:
            info = fn()
            v = getattr(info, "vmem_capacity_bytes", None)
            if v:
                return int(v)
        except Exception:
            pass
    return 64 * 1024 * 1024        # conservative fallback (safe on every gen)


_VMEM_BYTES = _device_vmem_bytes()
_VMEM_LIMIT = int(_VMEM_BYTES * 0.78)            # leave pipeline/compiler headroom
_BIG_VMEM = _VMEM_BYTES > 96 * 1024 * 1024       # v5e / v6e (128 MiB) vs v7x (64 MiB)

_TM = 512 if _BIG_VMEM else 256    # matmul / attention row tile
_TN = 512 if _BIG_VMEM else 256    # matmul column tile
_TK = 1024 if _BIG_VMEM else 512   # matmul contraction tile (K-tiled fallback only)
_TQ = 512 if _BIG_VMEM else 256    # attention query tile
_TKV = 1024 if _BIG_VMEM else 512  # attention key/value tile


def _pick_tile(dim, target, align):
    """Largest tile <= target that divides `dim` and is a multiple of `align`
    (128 preferred for lane dims, falling back to 8); small dims use the full
    extent, which is always layout-legal."""
    if dim <= target:
        return dim
    aligns = (align,) if align == 8 else (align, 8)
    for a in aligns:
        t = (target // a) * a
        while t >= a:
            if dim % t == 0:
                return t
            t -= a
    raise ValueError(
        f"no {align}-aligned tile <= {target} divides dim={dim}; "
        f"pad this dimension to a multiple of {align} upstream")


def _layer_norm_f32(h, g, b, eps):
    mean = jnp.mean(h, axis=-1, keepdims=True)
    cent = h - mean
    var = jnp.mean(cent * cent, axis=-1, keepdims=True)
    y = cent * jax.lax.rsqrt(var + eps)
    return y * g.astype(jnp.float32) + b.astype(jnp.float32)


# --------------------------- fused linear (GEMM) ------------------------------

def _linear_fullk_kernel(x_ref, w_ref, b_ref, *rest, activation, has_add):
    if has_add:
        add_ref, o_ref = rest
    else:
        (o_ref,) = rest
    r = jnp.dot(x_ref[...], w_ref[...], preferred_element_type=jnp.float32)
    r = r + b_ref[...].astype(jnp.float32)
    if has_add:
        r = r + add_ref[...].astype(jnp.float32)
    if activation == "relu":
        r = jnp.maximum(r, 0.0)
    o_ref[...] = r.astype(o_ref.dtype)


def _linear_ktiled_kernel(x_ref, w_ref, b_ref, *rest, activation, has_add):
    if has_add:
        add_ref, o_ref, acc_ref = rest
    else:
        o_ref, acc_ref = rest
    k = pl.program_id(2)

    @pl.when(k == 0)
    def _():
        acc_ref[...] = jnp.zeros(acc_ref.shape, jnp.float32)

    acc_ref[...] += jnp.dot(x_ref[...], w_ref[...],
                            preferred_element_type=jnp.float32)

    @pl.when(k == pl.num_programs(2) - 1)
    def _():
        r = acc_ref[...] + b_ref[...].astype(jnp.float32)
        if has_add:
            r = r + add_ref[...].astype(jnp.float32)
        if activation == "relu":
            r = jnp.maximum(r, 0.0)
        o_ref[...] = r.astype(o_ref.dtype)


def linear_fused(x, w, b, *, activation=None, add=None, out_dtype=DTYPE_ACT,
                 tm=None, tn=None, tk=None):
    """y = x @ w + b (+ optional ReLU, + optional elementwise `add`).

    `add` may have A rows with A | M (positional encoding, tiled over the batch).
    If the full-K working set fits VMEM the K reduction is done in one shot
    (no accumulator scratch, weight block resident across row tiles); otherwise
    the K-tiled accumulator fallback is used.
    """
    M, K = x.shape
    N = w.shape[1]
    tm = tm or _TM
    if add is not None:
        A = add.shape[0]
        assert M % A == 0 and add.shape[1] == N
        tm = _pick_tile(A, tm, 8)
        a_blocks = A // tm
    else:
        tm = _pick_tile(M, tm, 8)
        a_blocks = 1
    tn = _pick_tile(N, tn or _TN, 128)
    b2 = b.reshape(1, N)

    fullk_bytes = 2 * (tm * K + K * tn + 2 * tm * tn) * 2 \
        + (2 * tm * tn * 4 if add is not None else 0)
    if fullk_bytes <= _VMEM_LIMIT // 2:
        # K resident: column axis outer so the (K, tn) weight block stays in
        # VMEM across the inner row-tile axis (fetched once per column tile).
        grid = (N // tn, M // tm)
        in_specs = [
            pl.BlockSpec((tm, K), lambda j, i: (i, 0)),
            pl.BlockSpec((K, tn), lambda j, i: (0, j)),
            pl.BlockSpec((1, tn), lambda j, i: (0, j)),
        ]
        operands = [x, w, b2]
        if add is not None:
            in_specs.append(pl.BlockSpec((tm, tn), lambda j, i: (i % a_blocks, j)))
            operands.append(add)
        return pl.pallas_call(
            functools.partial(_linear_fullk_kernel, activation=activation,
                              has_add=add is not None),
            grid=grid,
            in_specs=in_specs,
            out_specs=pl.BlockSpec((tm, tn), lambda j, i: (i, j)),
            out_shape=jax.ShapeDtypeStruct((M, N), out_dtype),
            compiler_params=pltpu.CompilerParams(
                dimension_semantics=("parallel", "parallel"),
                vmem_limit_bytes=_VMEM_LIMIT),
        )(*operands)

    # K-tiled fallback for large weights: fp32 accumulator, K innermost/arbitrary.
    tk = _pick_tile(K, tk or _TK, 128)
    grid = (M // tm, N // tn, K // tk)
    in_specs = [
        pl.BlockSpec((tm, tk), lambda i, j, k: (i, k)),
        pl.BlockSpec((tk, tn), lambda i, j, k: (k, j)),
        pl.BlockSpec((1, tn), lambda i, j, k: (0, j)),
    ]
    operands = [x, w, b2]
    if add is not None:
        in_specs.append(pl.BlockSpec((tm, tn), lambda i, j, k: (i % a_blocks, j)))
        operands.append(add)
    return pl.pallas_call(
        functools.partial(_linear_ktiled_kernel, activation=activation,
                          has_add=add is not None),
        grid=grid,
        in_specs=in_specs,
        out_specs=pl.BlockSpec((tm, tn), lambda i, j, k: (i, j)),
        out_shape=jax.ShapeDtypeStruct((M, N), out_dtype),
        scratch_shapes=[pltpu.VMEM((tm, tn), jnp.float32)],
        compiler_params=pltpu.CompilerParams(
            dimension_semantics=("parallel", "parallel", "arbitrary"),
            vmem_limit_bytes=_VMEM_LIMIT),
    )(*operands)


# --------------- linear + bias + residual + LayerNorm (fused) -----------------

def _linear_res_ln_fullk_kernel(x_ref, w_ref, b_ref, r_ref, g_ref, bb_ref,
                                o_ref, *, eps):
    h = jnp.dot(x_ref[...], w_ref[...], preferred_element_type=jnp.float32)
    h = h + b_ref[...].astype(jnp.float32) + r_ref[...].astype(jnp.float32)
    o_ref[...] = _layer_norm_f32(h, g_ref[...], bb_ref[...], eps).astype(o_ref.dtype)


def _linear_res_ln_ktiled_kernel(x_ref, w_ref, b_ref, r_ref, g_ref, bb_ref,
                                 o_ref, acc_ref, *, eps):
    k = pl.program_id(1)

    @pl.when(k == 0)
    def _():
        acc_ref[...] = jnp.zeros(acc_ref.shape, jnp.float32)

    acc_ref[...] += jnp.dot(x_ref[...], w_ref[...],
                            preferred_element_type=jnp.float32)

    @pl.when(k == pl.num_programs(1) - 1)
    def _():
        h = acc_ref[...] + b_ref[...].astype(jnp.float32) + r_ref[...].astype(jnp.float32)
        o_ref[...] = _layer_norm_f32(h, g_ref[...], bb_ref[...], eps).astype(o_ref.dtype)


def linear_residual_ln(x, w, b, residual, gamma, beta, *, eps=1e-5,
                       out_dtype=DTYPE_ACT, tm=None, tk=None):
    """LayerNorm(residual + (x @ w + b)): output tile spans the full feature dim
    so LN row statistics are local; lane-dense (tm, D) stores."""
    M, K = x.shape
    N = w.shape[1]
    tm = _pick_tile(M, tm or _TM, 8)
    b2, g2, bb2 = b.reshape(1, N), gamma.reshape(1, N), beta.reshape(1, N)

    fullk_bytes = 2 * (tm * K + K * N + 2 * tm * N) * 2
    if fullk_bytes <= _VMEM_LIMIT // 2:
        return pl.pallas_call(
            functools.partial(_linear_res_ln_fullk_kernel, eps=eps),
            grid=(M // tm,),
            in_specs=[
                pl.BlockSpec((tm, K), lambda i: (i, 0)),
                pl.BlockSpec((K, N), lambda i: (0, 0)),   # weight stays resident
                pl.BlockSpec((1, N), lambda i: (0, 0)),
                pl.BlockSpec((tm, N), lambda i: (i, 0)),
                pl.BlockSpec((1, N), lambda i: (0, 0)),
                pl.BlockSpec((1, N), lambda i: (0, 0)),
            ],
            out_specs=pl.BlockSpec((tm, N), lambda i: (i, 0)),
            out_shape=jax.ShapeDtypeStruct((M, N), out_dtype),
            compiler_params=pltpu.CompilerParams(
                dimension_semantics=("parallel",),
                vmem_limit_bytes=_VMEM_LIMIT),
        )(x, w, b2, residual, g2, bb2)

    tk = _pick_tile(K, tk or _TK, 128)
    return pl.pallas_call(
        functools.partial(_linear_res_ln_ktiled_kernel, eps=eps),
        grid=(M // tm, K // tk),
        in_specs=[
            pl.BlockSpec((tm, tk), lambda i, k: (i, k)),
            pl.BlockSpec((tk, N), lambda i, k: (k, 0)),
            pl.BlockSpec((1, N), lambda i, k: (0, 0)),
            pl.BlockSpec((tm, N), lambda i, k: (i, 0)),
            pl.BlockSpec((1, N), lambda i, k: (0, 0)),
            pl.BlockSpec((1, N), lambda i, k: (0, 0)),
        ],
        out_specs=pl.BlockSpec((tm, N), lambda i, k: (i, 0)),
        out_shape=jax.ShapeDtypeStruct((M, N), out_dtype),
        scratch_shapes=[pltpu.VMEM((tm, N), jnp.float32)],
        compiler_params=pltpu.CompilerParams(
            dimension_semantics=("parallel", "arbitrary"),
            vmem_limit_bytes=_VMEM_LIMIT),
    )(x, w, b2, residual, g2, bb2)


# ------------------ planar projection: out[p] = x @ W[p] + b[p] ---------------

def _planar_fullk_kernel(x_ref, w_ref, b_ref, o_ref):
    r = jnp.dot(x_ref[...], w_ref[0], preferred_element_type=jnp.float32)
    o_ref[0] = (r + b_ref[0].astype(jnp.float32)).astype(o_ref.dtype)


def _planar_ktiled_kernel(x_ref, w_ref, b_ref, o_ref, acc_ref):
    k = pl.program_id(2)

    @pl.when(k == 0)
    def _():
        acc_ref[...] = jnp.zeros(acc_ref.shape, jnp.float32)

    acc_ref[...] += jnp.dot(x_ref[...], w_ref[0],
                            preferred_element_type=jnp.float32)

    @pl.when(k == pl.num_programs(2) - 1)
    def _():
        o_ref[0] = (acc_ref[...] + b_ref[0].astype(jnp.float32)).astype(o_ref.dtype)


def planar_linear(x, w_planes, b_planes, *, out_dtype=DTYPE_ACT, tm=None, tk=None):
    """x: (M, K); w_planes: (P, K, W); b_planes: (P, 1, W) -> (P, M, W).

    Used for the QKV projection (P = 3*H planes of width head_dim, so each head's
    Q/K/V is a contiguous plane the attention kernel DMAs directly - legal for
    any head_dim) and for the tail Conv1d(k=1) K/V projections (P = 2, W = D).
    # TODO(synk): for head_dim < 128 the per-plane MXU output width is underfilled;
    # pick head_dim = 128 at the model level for full MXU utilization.
    """
    M, K = x.shape
    P, Kw, W = w_planes.shape
    assert Kw == K
    tm = _pick_tile(M, tm or _TM, 8)

    fullk_bytes = 2 * (tm * K + K * W + tm * W) * 2
    if fullk_bytes <= _VMEM_LIMIT // 2:
        # plane axis innermost: the (tm, K) activation block stays VMEM-resident.
        return pl.pallas_call(
            _planar_fullk_kernel,
            grid=(M // tm, P),
            in_specs=[
                pl.BlockSpec((tm, K), lambda i, p: (i, 0)),
                pl.BlockSpec((1, K, W), lambda i, p: (p, 0, 0)),
                pl.BlockSpec((1, 1, W), lambda i, p: (p, 0, 0)),
            ],
            out_specs=pl.BlockSpec((1, tm, W), lambda i, p: (p, i, 0)),
            out_shape=jax.ShapeDtypeStruct((P, M, W), out_dtype),
            compiler_params=pltpu.CompilerParams(
                dimension_semantics=("parallel", "parallel"),
                vmem_limit_bytes=_VMEM_LIMIT),
        )(x, w_planes, b_planes)

    tk = _pick_tile(K, tk or _TK, 128)
    return pl.pallas_call(
        _planar_ktiled_kernel,
        grid=(M // tm, P, K // tk),
        in_specs=[
            pl.BlockSpec((tm, tk), lambda i, p, k: (i, k)),
            pl.BlockSpec((1, tk, W), lambda i, p, k: (p, k, 0)),
            pl.BlockSpec((1, 1, W), lambda i, p, k: (p, 0, 0)),
        ],
        out_specs=pl.BlockSpec((1, tm, W), lambda i, p, k: (p, i, 0)),
        out_shape=jax.ShapeDtypeStruct((P, M, W), out_dtype),
        scratch_shapes=[pltpu.VMEM((tm, W), jnp.float32)],
        compiler_params=pltpu.CompilerParams(
            dimension_semantics=("parallel", "parallel", "arbitrary"),
            vmem_limit_bytes=_VMEM_LIMIT),
    )(x, w_planes, b_planes)


# ------------------- flash-style multi-head self-attention --------------------

def _mha_flash_kernel(q_ref, k_ref, v_ref, o_ref, m_ref, l_ref, acc_ref):
    ki = pl.program_id(3)

    @pl.when(ki == 0)
    def _():
        m_ref[...] = jnp.full(m_ref.shape, -jnp.inf, jnp.float32)
        l_ref[...] = jnp.zeros(l_ref.shape, jnp.float32)
        acc_ref[...] = jnp.zeros(acc_ref.shape, jnp.float32)

    q = q_ref[0, 0, 0]      # (tq, Dh) -- softmax scale pre-folded into the Q weights
    k = k_ref[0, 0, 0]      # (tkv, Dh)
    v = v_ref[0, 0, 0]      # (tkv, Dh)
    s = jax.lax.dot_general(q, k, (((1,), (1,)), ((), ())),
                            preferred_element_type=jnp.float32)
    m_prev = m_ref[...]
    m_new = jnp.maximum(m_prev, jnp.max(s, axis=-1, keepdims=True))
    alpha = jnp.exp(m_prev - m_new)
    p = jnp.exp(s - m_new)
    l_ref[...] = alpha * l_ref[...] + jnp.sum(p, axis=-1, keepdims=True)
    acc_ref[...] = alpha * acc_ref[...] + jnp.dot(
        p.astype(v.dtype), v, preferred_element_type=jnp.float32)
    m_ref[...] = m_new

    @pl.when(ki == pl.num_programs(3) - 1)
    def _():
        # NOTE: approx reciprocal (EUP) -> ~1e-3 rel. error in the softmax norm.
        o_ref[0, 0] = (acc_ref[...] * pl.reciprocal(l_ref[...], approx=True)
                       ).astype(o_ref.dtype)


def mha_flash(qkv, *, out_dtype=DTYPE_ACT, tq=None, tkv=None):
    """qkv: (3, H, B, N, Dh) per-(tensor, head) planes -> context (B, H, N, Dh).

    Heads live on the grid; the per-head split is a DMA (BlockSpec index_map),
    the KV axis is innermost with an online softmax (O(tile*Dh) VMEM)."""
    _, H, B, N, Dh = qkv.shape
    tq = _pick_tile(N, tq or _TQ, 128)
    tkv = _pick_tile(N, tkv or _TKV, 128)
    grid = (B, H, N // tq, N // tkv)

    return pl.pallas_call(
        _mha_flash_kernel,
        grid=grid,
        in_specs=[
            pl.BlockSpec((1, 1, 1, tq, Dh), lambda b, h, qi, ki: (0, h, b, qi, 0)),
            pl.BlockSpec((1, 1, 1, tkv, Dh), lambda b, h, qi, ki: (1, h, b, ki, 0)),
            pl.BlockSpec((1, 1, 1, tkv, Dh), lambda b, h, qi, ki: (2, h, b, ki, 0)),
        ],
        out_specs=pl.BlockSpec((1, 1, tq, Dh), lambda b, h, qi, ki: (b, h, qi, 0)),
        out_shape=jax.ShapeDtypeStruct((B, H, N, Dh), out_dtype),
        scratch_shapes=[
            pltpu.VMEM((tq, 1), jnp.float32),    # running max
            pltpu.VMEM((tq, 1), jnp.float32),    # running denom
            pltpu.VMEM((tq, Dh), jnp.float32),   # running numerator
        ],
        compiler_params=pltpu.CompilerParams(
            dimension_semantics=("parallel", "parallel", "parallel", "arbitrary"),
            vmem_limit_bytes=_VMEM_LIMIT),
    )(qkv, qkv, qkv)


# ------------- out_proj (grouped over heads) + residual + LayerNorm ------------

def _mha_out_res_ln_kernel(ctx_ref, w_ref, b_ref, r_ref, g_ref, bb_ref,
                           o_ref, acc_ref, *, eps):
    hh = pl.program_id(2)

    @pl.when(hh == 0)
    def _():
        acc_ref[...] = jnp.zeros(acc_ref.shape, jnp.float32)

    acc_ref[...] += jnp.dot(ctx_ref[0, 0], w_ref[0],
                            preferred_element_type=jnp.float32)

    @pl.when(hh == pl.num_programs(2) - 1)
    def _():
        h = acc_ref[...] + b_ref[...].astype(jnp.float32) + r_ref[0].astype(jnp.float32)
        o_ref[0] = _layer_norm_f32(h, g_ref[...], bb_ref[...], eps).astype(o_ref.dtype)


def mha_out_res_ln(ctx, w_heads, b, residual, gamma, beta, *, eps=1e-5,
                   out_dtype=DTYPE_ACT, tm=None):
    """LayerNorm(residual + sum_h ctx[:,h] @ Wo[h] + b).

    ctx: (B, H, N, Dh); w_heads: (H, Dh, D); residual: (B, N, D) -> (B, N, D).
    The head axis is the (arbitrary) reduction grid axis; output is a lane-dense
    full-width (tm, D) tile."""
    B, H, N, Dh = ctx.shape
    D = w_heads.shape[-1]
    tm = _pick_tile(N, tm or _TM, 8)
    b2, g2, bb2 = b.reshape(1, D), gamma.reshape(1, D), beta.reshape(1, D)

    return pl.pallas_call(
        functools.partial(_mha_out_res_ln_kernel, eps=eps),
        grid=(B, N // tm, H),
        in_specs=[
            pl.BlockSpec((1, 1, tm, Dh), lambda b_, i, h: (b_, h, i, 0)),
            pl.BlockSpec((1, Dh, D), lambda b_, i, h: (h, 0, 0)),
            pl.BlockSpec((1, D), lambda b_, i, h: (0, 0)),
            pl.BlockSpec((1, tm, D), lambda b_, i, h: (b_, i, 0)),
            pl.BlockSpec((1, D), lambda b_, i, h: (0, 0)),
            pl.BlockSpec((1, D), lambda b_, i, h: (0, 0)),
        ],
        out_specs=pl.BlockSpec((1, tm, D), lambda b_, i, h: (b_, i, 0)),
        out_shape=jax.ShapeDtypeStruct((B, N, D), out_dtype),
        scratch_shapes=[pltpu.VMEM((tm, D), jnp.float32)],
        compiler_params=pltpu.CompilerParams(
            dimension_semantics=("parallel", "parallel", "arbitrary"),
            vmem_limit_bytes=_VMEM_LIMIT),
    )(ctx, w_heads, b2, residual, g2, bb2)


# ----------------------- single-head attention tail ---------------------------

def _sdpa_tail_kernel(q_ref, k_ref, v_ref, o_ref, m_ref, l_ref, acc_ref):
    ki = pl.program_id(2)

    @pl.when(ki == 0)
    def _():
        m_ref[...] = jnp.full(m_ref.shape, -jnp.inf, jnp.float32)
        l_ref[...] = jnp.zeros(l_ref.shape, jnp.float32)
        acc_ref[...] = jnp.zeros(acc_ref.shape, jnp.float32)

    q = q_ref[0]            # (tq, D)
    k = k_ref[0, 0]         # (tkv, D) -- 1/sqrt(D) pre-folded into the K projection
    v = v_ref[0, 0]
    s = jax.lax.dot_general(q, k, (((1,), (1,)), ((), ())),
                            preferred_element_type=jnp.float32)
    m_prev = m_ref[...]
    m_new = jnp.maximum(m_prev, jnp.max(s, axis=-1, keepdims=True))
    alpha = jnp.exp(m_prev - m_new)
    p = jnp.exp(s - m_new)
    l_ref[...] = alpha * l_ref[...] + jnp.sum(p, axis=-1, keepdims=True)
    acc_ref[...] = alpha * acc_ref[...] + jnp.dot(
        p.astype(v.dtype), v, preferred_element_type=jnp.float32)
    m_ref[...] = m_new

    @pl.when(ki == pl.num_programs(2) - 1)
    def _():
        o_ref[0] = (acc_ref[...] * pl.reciprocal(l_ref[...], approx=True)
                    ).astype(o_ref.dtype)


def sdpa_tail(q, kv, *, out_dtype=jnp.float32, tq=None, tkv=None):
    """q: (B, N, D); kv: (2, B, N, D) contiguous K/V planes -> (B, N, D)."""
    B, N, D = q.shape
    tq = _pick_tile(N, tq or _TQ, 128)
    tkv = _pick_tile(N, tkv or _TKV, 128)

    return pl.pallas_call(
        _sdpa_tail_kernel,
        grid=(B, N // tq, N // tkv),
        in_specs=[
            pl.BlockSpec((1, tq, D), lambda b, qi, ki: (b, qi, 0)),
            pl.BlockSpec((1, 1, tkv, D), lambda b, qi, ki: (0, b, ki, 0)),
            pl.BlockSpec((1, 1, tkv, D), lambda b, qi, ki: (1, b, ki, 0)),
        ],
        out_specs=pl.BlockSpec((1, tq, D), lambda b, qi, ki: (b, qi, 0)),
        out_shape=jax.ShapeDtypeStruct((B, N, D), out_dtype),
        scratch_shapes=[
            pltpu.VMEM((tq, 1), jnp.float32),
            pltpu.VMEM((tq, 1), jnp.float32),
            pltpu.VMEM((tq, D), jnp.float32),
        ],
        compiler_params=pltpu.CompilerParams(
            dimension_semantics=("parallel", "parallel", "arbitrary"),
            vmem_limit_bytes=_VMEM_LIMIT),
    )(q, kv, kv)


# ------------------------------ parameter setup -------------------------------

def make_positional_encoding(d_model, max_len=5000):
    position = jnp.arange(max_len, dtype=jnp.float32)[:, None]
    div_term = jnp.exp(jnp.arange(0, d_model, 2, dtype=jnp.float32)
                       * (-math.log(10000.0) / d_model))
    pe = jnp.zeros((max_len, d_model), jnp.float32)
    pe = pe.at[:, 0::2].set(jnp.sin(position * div_term))
    pe = pe.at[:, 1::2].set(jnp.cos(position * div_term))
    return pe                                          # (max_len, d_model)


def init_params(key, input_dim, hidden_dim, nhead, num_layers, dim_feedforward,
                max_len=5000):
    D = hidden_dim
    Dh = D // nhead

    def dense(k, fan_in, fan_out):
        kw, kb = jax.random.split(k)
        lim = 1.0 / math.sqrt(fan_in)
        w = jax.random.uniform(kw, (fan_in, fan_out), jnp.float32, -lim, lim)
        b = jax.random.uniform(kb, (fan_out,), jnp.float32, -lim, lim)
        return w, b

    keys = jax.random.split(key, 4 + num_layers)
    p = {}
    w, b = dense(keys[0], input_dim, D)
    p["fc_in_w"], p["fc_in_b"] = w.astype(DTYPE_ACT), b
    p["pe"] = make_positional_encoding(D, max_len)

    # Tail Conv1d(kernel_size=1) K/V projections as two weight planes (2, D, D);
    # the ScaledDotProductAttention 1/sqrt(D) scale is folded into the K plane.
    kw_, kb_ = dense(keys[1], D, D)
    vw_, vb_ = dense(keys[2], D, D)
    tail_scale = 1.0 / math.sqrt(D)
    p["kv_conv_w"] = jnp.stack([kw_ * tail_scale, vw_]).astype(DTYPE_ACT)
    p["kv_conv_b"] = jnp.stack([kb_ * tail_scale, vb_])[:, None, :]       # (2, 1, D)

    layers = []
    mha_scale = 1.0 / math.sqrt(Dh)
    for l in range(num_layers):
        ks = jax.random.split(keys[4 + l], 4)
        lp = {}
        # packed in_proj (column order q|k|v, head-major within each) ->
        # per-(qkv, head) weight planes (3H, D, Dh); softmax scale folded into Q.
        # NOTE: when porting real nn.MultiheadAttention weights, transpose the
        # (3D, D) in_proj_weight to (D, 3D) first and apply the same repacking.
        w, b = dense(ks[0], D, 3 * D)
        wp = w.reshape(D, 3, nhead, Dh).transpose(1, 2, 0, 3)    # (3, H, D, Dh)
        bp = b.reshape(3, nhead, 1, Dh)
        wp = wp.at[0].multiply(mha_scale)
        bp = bp.at[0].multiply(mha_scale)
        lp["in_proj_w"] = wp.reshape(3 * nhead, D, Dh).astype(DTYPE_ACT)
        lp["in_proj_b"] = bp.reshape(3 * nhead, 1, Dh)
        w, b = dense(ks[1], D, D)
        lp["out_proj_w"] = w.reshape(nhead, Dh, D).astype(DTYPE_ACT)      # (H, Dh, D)
        lp["out_proj_b"] = b
        w, b = dense(ks[2], D, dim_feedforward)
        lp["lin1_w"], lp["lin1_b"] = w.astype(DTYPE_ACT), b
        w, b = dense(ks[3], dim_feedforward, D)
        lp["lin2_w"], lp["lin2_b"] = w.astype(DTYPE_ACT), b
        lp["ln1_g"] = jnp.ones((D,), jnp.float32)
        lp["ln1_b"] = jnp.zeros((D,), jnp.float32)
        lp["ln2_g"] = jnp.ones((D,), jnp.float32)
        lp["ln2_b"] = jnp.zeros((D,), jnp.float32)
        layers.append(lp)
    p["layers"] = layers
    return p


# -------------------------------- forward pass --------------------------------

def encoder_layer_forward(x2, lp, B, N, nhead):
    """nn.TransformerEncoderLayer (post-norm, ReLU FF, batch_first, eval mode).
    # TODO(synk): dropout layers are identity (eval-mode); training-mode RNG
    # dropout is not implemented."""
    D = lp["out_proj_w"].shape[-1]
    Dh = lp["in_proj_w"].shape[-1]
    M = B * N

    qkv = planar_linear(x2, lp["in_proj_w"], lp["in_proj_b"])       # (3H, M, Dh)
    qkv = qkv.reshape(3, nhead, B, N, Dh)                           # metadata-only
    ctx = mha_flash(qkv)                                            # (B, H, N, Dh)
    h = mha_out_res_ln(ctx, lp["out_proj_w"], lp["out_proj_b"],
                       x2.reshape(B, N, D), lp["ln1_g"], lp["ln1_b"])
    h2 = h.reshape(M, D)                                            # metadata-only

    ff = linear_fused(h2, lp["lin1_w"], lp["lin1_b"], activation="relu")
    h2 = linear_residual_ln(ff, lp["lin2_w"], lp["lin2_b"], h2,
                            lp["ln2_g"], lp["ln2_b"])
    return h2


def audio_encoder_forward(x, params, *, nhead):
    """x: (B, N, input_dim) fp32 -> (B, N, hidden_dim) fp32."""
    B, N, Din = x.shape
    D = params["fc_in_w"].shape[1]
    x2 = x.reshape(B * N, Din).astype(DTYPE_ACT)
    pe = params["pe"][:N, :]                                        # (N, D) fp32

    # fc_in + positional-encoding add fused into one matmul epilogue.
    h2 = linear_fused(x2, params["fc_in_w"], params["fc_in_b"], add=pe)

    for lp in params["layers"]:
        h2 = encoder_layer_forward(h2, lp, B, N, nhead)

    # Tail: K/V Conv1d(k=1) as two contiguous planes, then single-head attention.
    kv = planar_linear(h2, params["kv_conv_w"], params["kv_conv_b"])  # (2, M, D)
    kv = kv.reshape(2, B, N, D)                                       # metadata-only
    q = h2.reshape(B, N, D)
    return sdpa_tail(q, kv)


# ------------------------------------ main -------------------------------------

if __name__ == "__main__":
    INPUT_DIM, HIDDEN, NHEAD, NUM_LAYERS = 16, 32, 4, 2
    DIM_FF = 64   # PyTorch default dim_feedforward is 2048; kept small for demo
    B, N = 2, 8

    key = jax.random.PRNGKey(0)
    kx, kp = jax.random.split(key)
    x = jax.random.normal(kx, (B, N, INPUT_DIM), jnp.float32)
    params = init_params(kp, INPUT_DIM, HIDDEN, NHEAD, NUM_LAYERS, DIM_FF)

    fwd = jax.jit(functools.partial(audio_encoder_forward, nhead=NHEAD))
    out = fwd(x, params)
    jax.block_until_ready(out)
    assert out.shape == (B, N, HIDDEN), out.shape
    assert bool(jnp.all(jnp.isfinite(out)))
    print("KERNEL_OK")
</pallas_src>

<mosaic_0001>
module attributes {stable_mosaic.version = 11 : i64} {
  func.func @_linear_fullk_kernel(%arg0: i32, %arg1: i32, %arg2: memref<8x16xbf16, #tpu.memory_space<vmem>>, %arg3: memref<16x32xbf16, #tpu.memory_space<vmem>>, %arg4: memref<1x32xf32, #tpu.memory_space<vmem>>, %arg5: memref<8x32xf32, #tpu.memory_space<vmem>>, %arg6: memref<8x32xbf16, #tpu.memory_space<vmem>>) attributes {dimension_semantics = [#tpu.dimension_semantics<parallel>, #tpu.dimension_semantics<parallel>], iteration_bounds = array<i64: 1, 2>, scalar_prefetch = 0 : i64, scratch_operands = 0 : i64, tpu.core_type = #tpu.core_type<tc>, window_params = [{transform_indices = @transform_0, window_bounds = array<i64: 8, 16>}, {transform_indices = @transform_1, window_bounds = array<i64: 16, 32>}, {transform_indices = @transform_2, window_bounds = array<i64: 1, 32>}, {transform_indices = @transform_3, window_bounds = array<i64: 8, 32>}, {transform_indices = @transform_4, window_bounds = array<i64: 8, 32>}]} {
    %c0 = arith.constant 0 : index
    %c0_0 = arith.constant 0 : index
    %0 = vector.load %arg2[%c0, %c0_0] : memref<8x16xbf16, #tpu.memory_space<vmem>>, vector<8x16xbf16>
    %c0_1 = arith.constant 0 : index
    %c0_2 = arith.constant 0 : index
    %1 = vector.load %arg3[%c0_1, %c0_2] : memref<16x32xbf16, #tpu.memory_space<vmem>>, vector<16x32xbf16>
    %cst = arith.constant dense<0.000000e+00> : vector<8x32xf32>
    %2 = tpu.matmul %0, %1, %cst {dimension_numbers = #tpu.dot_dimension_numbers<[1], [0], [0], [1], [0, 0, 1, 1], [], []>} : vector<8x16xbf16>, vector<16x32xbf16>, vector<8x32xf32> -> vector<8x32xf32>
    %c0_3 = arith.constant 0 : index
    %c0_4 = arith.constant 0 : index
    %3 = vector.load %arg4[%c0_3, %c0_4] : memref<1x32xf32, #tpu.memory_space<vmem>>, vector<1x32xf32>
    %4 = vector.broadcast %3 : vector<1x32xf32> to vector<8x32xf32>
    %5 = arith.addf %2, %4 : vector<8x32xf32>
    %c0_5 = arith.constant 0 : index
    %c0_6 = arith.constant 0 : index
    %6 = vector.load %arg5[%c0_5, %c0_6] : memref<8x32xf32, #tpu.memory_space<vmem>>, vector<8x32xf32>
    %7 = arith.addf %5, %6 : vector<8x32xf32>
    %8 = arith.truncf %7 : vector<8x32xf32> to vector<8x32xbf16>
    %c0_7 = arith.constant 0 : index
    %c0_8 = arith.constant 0 : index
    %9 = vector.load %arg6[%c0_7, %c0_8] : memref<8x32xbf16, #tpu.memory_space<vmem>>, vector<8x32xbf16>
    tpu.vector_store %arg6[%c0_7, %c0_8], %8 {strides = array<i32>} : memref<8x32xbf16, #tpu.memory_space<vmem>>, vector<8x32xbf16>,
    return
  }
  func.func @transform_0(%arg0: i32, %arg1: i32) -> (i32, i32) {
    %c0_i32 = arith.constant 0 : i32
    %c0_i32_0 = arith.constant 0 : i32
    return %arg1, %c0_i32 : i32, i32
  }
  func.func @transform_1(%arg0: i32, %arg1: i32) -> (i32, i32) {
    %c0_i32 = arith.constant 0 : i32
    %c0_i32_0 = arith.constant 0 : i32
    return %c0_i32, %arg0 : i32, i32
  }
  func.func @transform_2(%arg0: i32, %arg1: i32) -> (i32, i32) {
    %c0_i32 = arith.constant 0 : i32
    %c0_i32_0 = arith.constant 0 : i32
    return %c0_i32, %arg0 : i32, i32
  }
  func.func @transform_3(%arg0: i32, %arg1: i32) -> (i32, i32) {
    %c1_i32 = arith.constant 1 : i32
    %c0_i32 = arith.constant 0 : i32
    %0 = arith.cmpi eq, %c1_i32, %c0_i32 : i32
    %c1_i32_0 = arith.constant 1 : i32
    %1 = arith.select %0, %c1_i32_0, %c1_i32 : i32
    %2 = arith.remsi %arg1, %1 : i32
    %c0_i32_1 = arith.constant 0 : i32
    %3 = arith.cmpi ne, %2, %c0_i32_1 : i32
    %c0_i32_2 = arith.constant 0 : i32
    %4 = arith.cmpi slt, %2, %c0_i32_2 : i32
    %c0_i32_3 = arith.constant 0 : i32
    %5 = arith.cmpi slt, %1, %c0_i32_3 : i32
    %6 = arith.xori %4, %5 : i1
    %7 = arith.andi %6, %3 : i1
    %8 = arith.addi %2, %1 : i32
    %9 = arith.select %7, %8, %2 : i32
    %c0_i32_4 = arith.constant 0 : i32
    return %9, %arg0 : i32, i32
  }
  func.func @transform_4(%arg0: i32, %arg1: i32) -> (i32, i32) {
    %c0_i32 = arith.constant 0 : i32
    return %arg1, %arg0 : i32, i32
  }
}

module attributes {stable_mosaic.version = 11 : i64} {
  func.func @_planar_fullk_kernel(%arg0: i32, %arg1: i32, %arg2: memref<16x32xbf16, #tpu.memory_space<vmem>>, %arg3: memref<1x32x8xbf16, #tpu.memory_space<vmem>>, %arg4: memref<1x1x8xf32, #tpu.memory_space<vmem>>, %arg5: memref<1x16x8xbf16, #tpu.memory_space<vmem>>) attributes {dimension_semantics = [#tpu.dimension_semantics<parallel>, #tpu.dimension_semantics<parallel>], iteration_bounds = array<i64: 1, 12>, scalar_prefetch = 0 : i64, scratch_operands = 0 : i64, tpu.core_type = #tpu.core_type<tc>, window_params = [{transform_indices = @transform_0, window_bounds = array<i64: 16, 32>}, {transform_indices = @transform_1, window_bounds = array<i64: 1, 32, 8>}, {transform_indices = @transform_2, window_bounds = array<i64: 1, 1, 8>}, {transform_indices = @transform_3, window_bounds = array<i64: 1, 16, 8>}]} {
    %c0 = arith.constant 0 : index
    %c0_0 = arith.constant 0 : index
    %0 = vector.load %arg2[%c0, %c0_0] : memref<16x32xbf16, #tpu.memory_space<vmem>>, vector<16x32xbf16>
    %c0_1 = arith.constant 0 : index
    %c0_2 = arith.constant 0 : index
    %c0_3 = arith.constant 0 : index
    %1 = vector.load %arg3[%c0_1, %c0_2, %c0_3] : memref<1x32x8xbf16, #tpu.memory_space<vmem>>, vector<1x32x8xbf16>
    %2 = vector.shape_cast %1 : vector<1x32x8xbf16> to vector<32x8xbf16>
    %cst = arith.constant dense<0.000000e+00> : vector<16x8xf32>
    %3 = tpu.matmul %0, %2, %cst {dimension_numbers = #tpu.dot_dimension_numbers<[1], [0], [0], [1], [0, 0, 1, 1], [], []>} : vector<16x32xbf16>, vector<32x8xbf16>, vector<16x8xf32> -> vector<16x8xf32>
    %c0_4 = arith.constant 0 : index
    %c0_5 = arith.constant 0 : index
    %c0_6 = arith.constant 0 : index
    %4 = vector.load %arg4[%c0_4, %c0_5, %c0_6] : memref<1x1x8xf32, #tpu.memory_space<vmem>>, vector<1x1x8xf32>
    %5 = vector.shape_cast %4 : vector<1x1x8xf32> to vector<1x8xf32>
    %6 = vector.broadcast %5 : vector<1x8xf32> to vector<16x8xf32>
    %7 = arith.addf %3, %6 : vector<16x8xf32>
    %8 = arith.truncf %7 : vector<16x8xf32> to vector<16x8xbf16>
    %c0_7 = arith.constant 0 : index
    %c0_8 = arith.constant 0 : index
    %c0_9 = arith.constant 0 : index
    %9 = vector.load %arg5[%c0_7, %c0_8, %c0_9] : memref<1x16x8xbf16, #tpu.memory_space<vmem>>, vector<1x16x8xbf16>
    %10 = vector.shape_cast %9 : vector<1x16x8xbf16> to vector<16x8xbf16>
    %11 = vector.shape_cast %8 : vector<16x8xbf16> to vector<1x16x8xbf16>
    tpu.vector_store %arg5[%c0_7, %c0_8, %c0_9], %11 {strides = array<i32>} : memref<1x16x8xbf16, #tpu.memory_space<vmem>>, vector<1x16x8xbf16>,
    return
  }
  func.func @transform_0(%arg0: i32, %arg1: i32) -> (i32, i32) {
    %c0_i32 = arith.constant 0 : i32
    %c0_i32_0 = arith.constant 0 : i32
    return %arg0, %c0_i32 : i32, i32
  }
  func.func @transform_1(%arg0: i32, %arg1: i32) -> (i32, i32, i32) {
    %c0_i32 = arith.constant 0 : i32
    %c0_i32_0 = arith.constant 0 : i32
    %c0_i32_1 = arith.constant 0 : i32
    return %arg1, %c0_i32, %c0_i32_0 : i32, i32, i32
  }
  func.func @transform_2(%arg0: i32, %arg1: i32) -> (i32, i32, i32) {
    %c0_i32 = arith.constant 0 : i32
    %c0_i32_0 = arith.constant 0 : i32
    %c0_i32_1 = arith.constant 0 : i32
    return %arg1, %c0_i32, %c0_i32_0 : i32, i32, i32
  }
  func.func @transform_3(%arg0: i32, %arg1: i32) -> (i32, i32, i32) {
    %c0_i32 = arith.constant 0 : i32
    %c0_i32_0 = arith.constant 0 : i32
    return %arg1, %arg0, %c0_i32 : i32, i32, i32
  }
}

module attributes {stable_mosaic.version = 11 : i64} {
  func.func @_mha_flash_kernel(%arg0: i32, %arg1: i32, %arg2: i32, %arg3: i32, %arg4: memref<1x1x1x8x8xbf16, #tpu.memory_space<vmem>>, %arg5: memref<1x1x1x8x8xbf16, #tpu.memory_space<vmem>>, %arg6: memref<1x1x1x8x8xbf16, #tpu.memory_space<vmem>>, %arg7: memref<1x1x8x8xbf16, #tpu.memory_space<vmem>>, %arg8: memref<8x1xf32, #tpu.memory_space<vmem>>, %arg9: memref<8x1xf32, #tpu.memory_space<vmem>>, %arg10: memref<8x8xf32, #tpu.memory_space<vmem>>) attributes {dimension_semantics = [#tpu.dimension_semantics<parallel>, #tpu.dimension_semantics<parallel>, #tpu.dimension_semantics<parallel>, #tpu.dimension_semantics<arbitrary>], iteration_bounds = array<i64: 2, 4, 1, 1>, scalar_prefetch = 0 : i64, scratch_operands = 3 : i64, tpu.core_type = #tpu.core_type<tc>, window_params = [{transform_indices = @transform_0, window_bounds = array<i64: 1, 1, 1, 8, 8>}, {transform_indices = @transform_1, window_bounds = array<i64: 1, 1, 1, 8, 8>}, {transform_indices = @transform_2, window_bounds = array<i64: 1, 1, 1, 8, 8>}, {transform_indices = @transform_3, window_bounds = array<i64: 1, 1, 8, 8>}]} {
    %c0_i32 = arith.constant 0 : i32
    %0 = arith.cmpi eq, %arg3, %c0_i32 : i32
    %1 = arith.extui %0 : i1 to i32
    %c0_i32_0 = arith.constant 0 : i32
    %2 = arith.cmpi ne, %1, %c0_i32_0 : i32
    scf.if %2 {
      %cst_32 = arith.constant 0xFF800000 : f32
      %36 = vector.broadcast %cst_32 : f32 to vector<8x1xf32>
      %c0_33 = arith.constant 0 : index
      %c0_34 = arith.constant 0 : index
      %37 = vector.load %arg8[%c0_33, %c0_34] : memref<8x1xf32, #tpu.memory_space<vmem>>, vector<8x1xf32>
      tpu.vector_store %arg8[%c0_33, %c0_34], %36 {strides = array<i32>} : memref<8x1xf32, #tpu.memory_space<vmem>>, vector<8x1xf32>,
      %cst_35 = arith.constant 0.000000e+00 : f32
      %38 = vector.broadcast %cst_35 : f32 to vector<8x1xf32>
      %c0_36 = arith.constant 0 : index
      %c0_37 = arith.constant 0 : index
      %39 = vector.load %arg9[%c0_36, %c0_37] : memref<8x1xf32, #tpu.memory_space<vmem>>, vector<8x1xf32>
      tpu.vector_store %arg9[%c0_36, %c0_37], %38 {strides = array<i32>} : memref<8x1xf32, #tpu.memory_space<vmem>>, vector<8x1xf32>,
      %cst_38 = arith.constant 0.000000e+00 : f32
      %40 = vector.broadcast %cst_38 : f32 to vector<8x8xf32>
      %c0_39 = arith.constant 0 : index
      %c0_40 = arith.constant 0 : index
      %41 = vector.load %arg10[%c0_39, %c0_40] : memref<8x8xf32, #tpu.memory_space<vmem>>, vector<8x8xf32>
      tpu.vector_store %arg10[%c0_39, %c0_40], %40 {strides = array<i32>} : memref<8x8xf32, #tpu.memory_space<vmem>>, vector<8x8xf32>,
    } else {
    }
    %c0 = arith.constant 0 : index
    %c0_1 = arith.constant 0 : index
    %c0_2 = arith.constant 0 : index
    %c0_3 = arith.constant 0 : index
    %c0_4 = arith.constant 0 : index
    %3 = vector.load %arg4[%c0, %c0_1, %c0_2, %c0_3, %c0_4] : memref<1x1x1x8x8xbf16, #tpu.memory_space<vmem>>, vector<1x1x1x8x8xbf16>
    %4 = vector.shape_cast %3 : vector<1x1x1x8x8xbf16> to vector<8x8xbf16>
    %c0_5 = arith.constant 0 : index
    %c0_6 = arith.constant 0 : index
    %c0_7 = arith.constant 0 : index
    %c0_8 = arith.constant 0 : index
    %c0_9 = arith.constant 0 : index
    %5 = vector.load %arg5[%c0_5, %c0_6, %c0_7, %c0_8, %c0_9] : memref<1x1x1x8x8xbf16, #tpu.memory_space<vmem>>, vector<1x1x1x8x8xbf16>
    %6 = vector.shape_cast %5 : vector<1x1x1x8x8xbf16> to vector<8x8xbf16>
    %c0_10 = arith.constant 0 : index
    %c0_11 = arith.constant 0 : index
    %c0_12 = arith.constant 0 : index
    %c0_13 = arith.constant 0 : index
    %c0_14 = arith.constant 0 : index
    %7 = vector.load %arg6[%c0_10, %c0_11, %c0_12, %c0_13, %c0_14] : memref<1x1x1x8x8xbf16, #tpu.memory_space<vmem>>, vector<1x1x1x8x8xbf16>
    %8 = vector.shape_cast %7 : vector<1x1x1x8x8xbf16> to vector<8x8xbf16>
    %cst = arith.constant dense<0.000000e+00> : vector<8x8xf32>
    %9 = tpu.matmul %4, %6, %cst {dimension_numbers = #tpu.dot_dimension_numbers<[1], [1], [0], [0], [0, 0, 1, 0], [], []>} : vector<8x8xbf16>, vector<8x8xbf16>, vector<8x8xf32> -> vector<8x8xf32>
    %c0_15 = arith.constant 0 : index
    %c0_16 = arith.constant 0 : index
    %10 = vector.load %arg8[%c0_15, %c0_16] : memref<8x1xf32, #tpu.memory_space<vmem>>, vector<8x1xf32>
    %cst_17 = arith.constant dense<0xFF800000> : vector<8xf32>
    %11 = vector.multi_reduction <maximumf>, %9, %cst_17 [1] : vector<8x8xf32> to vector<8xf32>
    %12 = vector.shape_cast %11 : vector<8xf32> to vector<8x1xf32>
    %13 = arith.maximumf %10, %12 : vector<8x1xf32>
    %14 = arith.subf %10, %13 : vector<8x1xf32>
    %15 = math.exp %14 : vector<8x1xf32>
    %16 = vector.broadcast %13 : vector<8x1xf32> to vector<8x8xf32>
    %17 = arith.subf %9, %16 : vector<8x8xf32>
    %18 = math.exp %17 : vector<8x8xf32>
    %c0_18 = arith.constant 0 : index
    %c0_19 = arith.constant 0 : index
    %19 = vector.load %arg9[%c0_18, %c0_19] : memref<8x1xf32, #tpu.memory_space<vmem>>, vector<8x1xf32>
    %20 = arith.mulf %15, %19 : vector<8x1xf32>
    %cst_20 = arith.constant dense<0.000000e+00> : vector<8xf32>
    %21 = vector.multi_reduction <add>, %18, %cst_20 [1] : vector<8x8xf32> to vector<8xf32>
    %22 = vector.shape_cast %21 : vector<8xf32> to vector<8x1xf32>
    %23 = arith.addf %20, %22 : vector<8x1xf32>
    %c0_21 = arith.constant 0 : index
    %c0_22 = arith.constant 0 : index
    %24 = vector.load %arg9[%c0_21, %c0_22] : memref<8x1xf32, #tpu.memory_space<vmem>>, vector<8x1xf32>
    tpu.vector_store %arg9[%c0_21, %c0_22], %23 {strides = array<i32>} : memref<8x1xf32, #tpu.memory_space<vmem>>, vector<8x1xf32>,
    %c0_23 = arith.constant 0 : index
    %c0_24 = arith.constant 0 : index
    %25 = vector.load %arg10[%c0_23, %c0_24] : memref<8x8xf32, #tpu.memory_space<vmem>>, vector<8x8xf32>
    %26 = vector.broadcast %15 : vector<8x1xf32> to vector<8x8xf32>
    %27 = arith.mulf %26, %25 : vector<8x8xf32>
    %28 = arith.truncf %18 : vector<8x8xf32> to vector<8x8xbf16>
    %cst_25 = arith.constant dense<0.000000e+00> : vector<8x8xf32>
    %29 = tpu.matmul %28, %8, %cst_25 {dimension_numbers = #tpu.dot_dimension_numbers<[1], [0], [0], [1], [0, 0, 1, 1], [], []>} : vector<8x8xbf16>, vector<8x8xbf16>, vector<8x8xf32> -> vector<8x8xf32>
    %30 = arith.addf %27, %29 : vector<8x8xf32>
    %c0_26 = arith.constant 0 : index
    %c0_27 = arith.constant 0 : index
    %31 = vector.load %arg10[%c0_26, %c0_27] : memref<8x8xf32, #tpu.memory_space<vmem>>, vector<8x8xf32>
    tpu.vector_store %arg10[%c0_26, %c0_27], %30 {strides = array<i32>} : memref<8x8xf32, #tpu.memory_space<vmem>>, vector<8x8xf32>,
    %c0_28 = arith.constant 0 : index
    %c0_29 = arith.constant 0 : index
    %32 = vector.load %arg8[%c0_28, %c0_29] : memref<8x1xf32, #tpu.memory_space<vmem>>, vector<8x1xf32>
    tpu.vector_store %arg8[%c0_28, %c0_29], %13 {strides = array<i32>} : memref<8x1xf32, #tpu.memory_space<vmem>>, vector<8x1xf32>,
    %c0_i32_30 = arith.constant 0 : i32
    %33 = arith.cmpi eq, %arg3, %c0_i32_30 : i32
    %34 = arith.extui %33 : i1 to i32
    %c0_i32_31 = arith.constant 0 : i32
    %35 = arith.cmpi ne, %34, %c0_i32_31 : i32
    scf.if %35 {
      %c0_32 = arith.constant 0 : index
      %c0_33 = arith.constant 0 : index
      %36 = vector.load %arg10[%c0_32, %c0_33] : memref<8x8xf32, #tpu.memory_space<vmem>>, vector<8x8xf32>
      %c0_34 = arith.constant 0 : index
      %c0_35 = arith.constant 0 : index
      %37 = vector.load %arg9[%c0_34, %c0_35] : memref<8x1xf32, #tpu.memory_space<vmem>>, vector<8x1xf32>
      %38 = tpu.reciprocal %37 {approx = true} : vector<8x1xf32> -> vector<8x1xf32>
      %39 = vector.broadcast %38 : vector<8x1xf32> to vector<8x8xf32>
      %40 = arith.mulf %36, %39 : vector<8x8xf32>
      %41 = arith.truncf %40 : vector<8x8xf32> to vector<8x8xbf16>
      %c0_36 = arith.constant 0 : index
      %c0_37 = arith.constant 0 : index
      %c0_38 = arith.constant 0 : index
      %c0_39 = arith.constant 0 : index
      %42 = vector.load %arg7[%c0_36, %c0_37, %c0_38, %c0_39] : memref<1x1x8x8xbf16, #tpu.memory_space<vmem>>, vector<1x1x8x8xbf16>
      %43 = vector.shape_cast %42 : vector<1x1x8x8xbf16> to vector<8x8xbf16>
      %44 = vector.shape_cast %41 : vector<8x8xbf16> to vector<1x1x8x8xbf16>
      tpu.vector_store %arg7[%c0_36, %c0_37, %c0_38, %c0_39], %44 {strides = array<i32>} : memref<1x1x8x8xbf16, #tpu.memory_space<vmem>>, vector<1x1x8x8xbf16>,
    } else {
    }
    return
  }
  func.func @transform_0(%arg0: i32, %arg1: i32, %arg2: i32, %arg3: i32) -> (i32, i32, i32, i32, i32) {
    %c0_i32 = arith.constant 0 : i32
    %c0_i32_0 = arith.constant 0 : i32
    %c0_i32_1 = arith.constant 0 : i32
    return %c0_i32, %arg1, %arg0, %arg2, %c0_i32_0 : i32, i32, i32, i32, i32
  }
  func.func @transform_1(%arg0: i32, %arg1: i32, %arg2: i32, %arg3: i32) -> (i32, i32, i32, i32, i32) {
    %c1_i32 = arith.constant 1 : i32
    %c0_i32 = arith.constant 0 : i32
    %c0_i32_0 = arith.constant 0 : i32
    return %c1_i32, %arg1, %arg0, %arg3, %c0_i32 : i32, i32, i32, i32, i32
  }
  func.func @transform_2(%arg0: i32, %arg1: i32, %arg2: i32, %arg3: i32) -> (i32, i32, i32, i32, i32) {
    %c2_i32 = arith.constant 2 : i32
    %c0_i32 = arith.constant 0 : i32
    %c0_i32_0 = arith.constant 0 : i32
    return %c2_i32, %arg1, %arg0, %arg3, %c0_i32 : i32, i32, i32, i32, i32
  }
  func.func @transform_3(%arg0: i32, %arg1: i32, %arg2: i32, %arg3: i32) -> (i32, i32, i32, i32) {
    %c0_i32 = arith.constant 0 : i32
    %c0_i32_0 = arith.constant 0 : i32
    return %arg0, %arg1, %arg2, %c0_i32 : i32, i32, i32, i32
  }
}

module attributes {stable_mosaic.version = 11 : i64} {
  func.func @_mha_out_res_ln_kernel(%arg0: i32, %arg1: i32, %arg2: i32, %arg3: memref<1x1x8x8xbf16, #tpu.memory_space<vmem>>, %arg4: memref<1x8x32xbf16, #tpu.memory_space<vmem>>, %arg5: memref<1x32xf32, #tpu.memory_space<vmem>>, %arg6: memref<1x8x32xbf16, #tpu.memory_space<vmem>>, %arg7: memref<1x32xf32, #tpu.memory_space<vmem>>, %arg8: memref<1x32xf32, #tpu.memory_space<vmem>>, %arg9: memref<1x8x32xbf16, #tpu.memory_space<vmem>>, %arg10: memref<8x32xf32, #tpu.memory_space<vmem>>) attributes {dimension_semantics = [#tpu.dimension_semantics<parallel>, #tpu.dimension_semantics<parallel>, #tpu.dimension_semantics<arbitrary>], iteration_bounds = array<i64: 2, 1, 4>, scalar_prefetch = 0 : i64, scratch_operands = 1 : i64, tpu.core_type = #tpu.core_type<tc>, window_params = [{transform_indices = @transform_0, window_bounds = array<i64: 1, 1, 8, 8>}, {transform_indices = @transform_1, window_bounds = array<i64: 1, 8, 32>}, {pipeline_mode = #tpu.pipeline_mode<synchronous>, transform_indices = @transform_2, window_bounds = array<i64: 1, 32>}, {transform_indices = @transform_3, window_bounds = array<i64: 1, 8, 32>}, {pipeline_mode = #tpu.pipeline_mode<synchronous>, transform_indices = @transform_4, window_bounds = array<i64: 1, 32>}, {pipeline_mode = #tpu.pipeline_mode<synchronous>, transform_indices = @transform_5, window_bounds = array<i64: 1, 32>}, {transform_indices = @transform_6, window_bounds = array<i64: 1, 8, 32>}]} {
    %c0_i32 = arith.constant 0 : i32
    %0 = arith.cmpi eq, %arg2, %c0_i32 : i32
    %1 = arith.extui %0 : i1 to i32
    %c0_i32_0 = arith.constant 0 : i32
    %2 = arith.cmpi ne, %1, %c0_i32_0 : i32
    scf.if %2 {
      %cst_12 = arith.constant 0.000000e+00 : f32
      %14 = vector.broadcast %cst_12 : f32 to vector<8x32xf32>
      %c0_13 = arith.constant 0 : index
      %c0_14 = arith.constant 0 : index
      %15 = vector.load %arg10[%c0_13, %c0_14] : memref<8x32xf32, #tpu.memory_space<vmem>>, vector<8x32xf32>
      tpu.vector_store %arg10[%c0_13, %c0_14], %14 {strides = array<i32>} : memref<8x32xf32, #tpu.memory_space<vmem>>, vector<8x32xf32>,
    } else {
    }
    %c0 = arith.constant 0 : index
    %c0_1 = arith.constant 0 : index
    %3 = vector.load %arg10[%c0, %c0_1] : memref<8x32xf32, #tpu.memory_space<vmem>>, vector<8x32xf32>
    %c0_2 = arith.constant 0 : index
    %c0_3 = arith.constant 0 : index
    %c0_4 = arith.constant 0 : index
    %c0_5 = arith.constant 0 : index
    %4 = vector.load %arg3[%c0_2, %c0_3, %c0_4, %c0_5] : memref<1x1x8x8xbf16, #tpu.memory_space<vmem>>, vector<1x1x8x8xbf16>
    %5 = vector.shape_cast %4 : vector<1x1x8x8xbf16> to vector<8x8xbf16>
    %c0_6 = arith.constant 0 : index
    %c0_7 = arith.constant 0 : index
    %c0_8 = arith.constant 0 : index
    %6 = vector.load %arg4[%c0_6, %c0_7, %c0_8] : memref<1x8x32xbf16, #tpu.memory_space<vmem>>, vector<1x8x32xbf16>
    %7 = vector.shape_cast %6 : vector<1x8x32xbf16> to vector<8x32xbf16>
    %cst = arith.constant dense<0.000000e+00> : vector<8x32xf32>
    %8 = tpu.matmul %5, %7, %cst {dimension_numbers = #tpu.dot_dimension_numbers<[1], [0], [0], [1], [0, 0, 1, 1], [], []>} : vector<8x8xbf16>, vector<8x32xbf16>, vector<8x32xf32> -> vector<8x32xf32>
    %9 = arith.addf %3, %8 : vector<8x32xf32>
    %c0_9 = arith.constant 0 : index
    %c0_10 = arith.constant 0 : index
    %10 = vector.load %arg10[%c0_9, %c0_10] : memref<8x32xf32, #tpu.memory_space<vmem>>, vector<8x32xf32>
    tpu.vector_store %arg10[%c0_9, %c0_10], %9 {strides = array<i32>} : memref<8x32xf32, #tpu.memory_space<vmem>>, vector<8x32xf32>,
    %c3_i32 = arith.constant 3 : i32
    %11 = arith.cmpi eq, %arg2, %c3_i32 : i32
    %12 = arith.extui %11 : i1 to i32
    %c0_i32_11 = arith.constant 0 : i32
    %13 = arith.cmpi ne, %12, %c0_i32_11 : i32
    scf.if %13 {
      %c0_12 = arith.constant 0 : index
      %c0_13 = arith.constant 0 : index
      %14 = vector.load %arg10[%c0_12, %c0_13] : memref<8x32xf32, #tpu.memory_space<vmem>>, vector<8x32xf32>
      %c0_14 = arith.constant 0 : index
      %c0_15 = arith.constant 0 : index
      %15 = vector.load %arg5[%c0_14, %c0_15] : memref<1x32xf32, #tpu.memory_space<vmem>>, vector<1x32xf32>
      %16 = vector.broadcast %15 : vector<1x32xf32> to vector<8x32xf32>
      %17 = arith.addf %14, %16 : vector<8x32xf32>
      %c0_16 = arith.constant 0 : index
      %c0_17 = arith.constant 0 : index
      %c0_18 = arith.constant 0 : index
      %18 = vector.load %arg6[%c0_16, %c0_17, %c0_18] : memref<1x8x32xbf16, #tpu.memory_space<vmem>>, vector<1x8x32xbf16>
      %19 = vector.shape_cast %18 : vector<1x8x32xbf16> to vector<8x32xbf16>
      %20 = arith.extf %19 : vector<8x32xbf16> to vector<8x32xf32>
      %21 = arith.addf %17, %20 : vector<8x32xf32>
      %c0_19 = arith.constant 0 : index
      %c0_20 = arith.constant 0 : index
      %22 = vector.load %arg7[%c0_19, %c0_20] : memref<1x32xf32, #tpu.memory_space<vmem>>, vector<1x32xf32>
      %c0_21 = arith.constant 0 : index
      %c0_22 = arith.constant 0 : index
      %23 = vector.load %arg8[%c0_21, %c0_22] : memref<1x32xf32, #tpu.memory_space<vmem>>, vector<1x32xf32>
      %cst_23 = arith.constant dense<0.000000e+00> : vector<8xf32>
      %24 = vector.multi_reduction <add>, %21, %cst_23 [1] : vector<8x32xf32> to vector<8xf32>
      %25 = vector.shape_cast %24 : vector<8xf32> to vector<8x1xf32>
      %cst_24 = arith.constant 3.200000e+01 : f32
      %26 = vector.broadcast %cst_24 : f32 to vector<8x1xf32>
      %27 = arith.divf %25, %26 : vector<8x1xf32>
      %28 = vector.broadcast %27 : vector<8x1xf32> to vector<8x32xf32>
      %29 = arith.subf %21, %28 : vector<8x32xf32>
      %30 = arith.mulf %29, %29 : vector<8x32xf32>
      %cst_25 = arith.constant dense<0.000000e+00> : vector<8xf32>
      %31 = vector.multi_reduction <add>, %30, %cst_25 [1] : vector<8x32xf32> to vector<8xf32>
      %32 = vector.shape_cast %31 : vector<8xf32> to vector<8x1xf32>
      %cst_26 = arith.constant 3.200000e+01 : f32
      %33 = vector.broadcast %cst_26 : f32 to vector<8x1xf32>
      %34 = arith.divf %32, %33 : vector<8x1xf32>
      %cst_27 = arith.constant 9.99999974E-6 : f32
      %35 = vector.broadcast %cst_27 : f32 to vector<8x1xf32>
      %36 = arith.addf %34, %35 : vector<8x1xf32>
      %37 = math.rsqrt %36 : vector<8x1xf32>
      %38 = vector.broadcast %37 : vector<8x1xf32> to vector<8x32xf32>
      %39 = arith.mulf %29, %38 : vector<8x32xf32>
      %40 = vector.broadcast %22 : vector<1x32xf32> to vector<8x32xf32>
      %41 = arith.mulf %39, %40 : vector<8x32xf32>
      %42 = vector.broadcast %23 : vector<1x32xf32> to vector<8x32xf32>
      %43 = arith.addf %41, %42 : vector<8x32xf32>
      %44 = arith.truncf %43 : vector<8x32xf32> to vector<8x32xbf16>
      %c0_28 = arith.constant 0 : index
      %c0_29 = arith.constant 0 : index
      %c0_30 = arith.constant 0 : index
      %45 = vector.load %arg9[%c0_28, %c0_29, %c0_30] : memref<1x8x32xbf16, #tpu.memory_space<vmem>>, vector<1x8x32xbf16>
      %46 = vector.shape_cast %45 : vector<1x8x32xbf16> to vector<8x32xbf16>
      %47 = vector.shape_cast %44 : vector<8x32xbf16> to vector<1x8x32xbf16>
      tpu.vector_store %arg9[%c0_28, %c0_29, %c0_30], %47 {strides = array<i32>} : memref<1x8x32xbf16, #tpu.memory_space<vmem>>, vector<1x8x32xbf16>,
    } else {
    }
    return
  }
  func.func @transform_0(%arg0: i32, %arg1: i32, %arg2: i32) -> (i32, i32, i32, i32) {
    %c0_i32 = arith.constant 0 : i32
    %c0_i32_0 = arith.constant 0 : i32
    return %arg0, %arg2, %arg1, %c0_i32 : i32, i32, i32, i32
  }
  func.func @transform_1(%arg0: i32, %arg1: i32, %arg2: i32) -> (i32, i32, i32) {
    %c0_i32 = arith.constant 0 : i32
    %c0_i32_0 = arith.constant 0 : i32
    %c0_i32_1 = arith.constant 0 : i32
    return %arg2, %c0_i32, %c0_i32_0 : i32, i32, i32
  }
  func.func @transform_2(%arg0: i32, %arg1: i32, %arg2: i32) -> (i32, i32) {
    %c0_i32 = arith.constant 0 : i32
    %c0_i32_0 = arith.constant 0 : i32
    %c0_i32_1 = arith.constant 0 : i32
    return %c0_i32, %c0_i32_0 : i32, i32
  }
  func.func @transform_3(%arg0: i32, %arg1: i32, %arg2: i32) -> (i32, i32, i32) {
    %c0_i32 = arith.constant 0 : i32
    %c0_i32_0 = arith.constant 0 : i32
    return %arg0, %arg1, %c0_i32 : i32, i32, i32
  }
  func.func @transform_4(%arg0: i32, %arg1: i32, %arg2: i32) -> (i32, i32) {
    %c0_i32 = arith.constant 0 : i32
    %c0_i32_0 = arith.constant 0 : i32
    %c0_i32_1 = arith.constant 0 : i32
    return %c0_i32, %c0_i32_0 : i32, i32
  }
  func.func @transform_5(%arg0: i32, %arg1: i32, %arg2: i32) -> (i32, i32) {
    %c0_i32 = arith.constant 0 : i32
    %c0_i32_0 = arith.constant 0 : i32
    %c0_i32_1 = arith.constant 0 : i32
    return %c0_i32, %c0_i32_0 : i32, i32
  }
  func.func @transform_6(%arg0: i32, %arg1: i32, %arg2: i32) -> (i32, i32, i32) {
    %c0_i32 = arith.constant 0 : i32
    %c0_i32_0 = arith.constant 0 : i32
    return %arg0, %arg1, %c0_i32 : i32, i32, i32
  }
}

module attributes {stable_mosaic.version = 11 : i64} {
  func.func @_linear_fullk_kernel(%arg0: i32, %arg1: i32, %arg2: memref<16x32xbf16, #tpu.memory_space<vmem>>, %arg3: memref<32x64xbf16, #tpu.memory_space<vmem>>, %arg4: memref<1x64xf32, #tpu.memory_space<vmem>>, %arg5: memref<16x64xbf16, #tpu.memory_space<vmem>>) attributes {dimension_semantics = [#tpu.dimension_semantics<parallel>, #tpu.dimension_semantics<parallel>], iteration_bounds = array<i64: 1, 1>, scalar_prefetch = 0 : i64, scratch_operands = 0 : i64, tpu.core_type = #tpu.core_type<tc>, window_params = [{transform_indices = @transform_0, window_bounds = array<i64: 16, 32>}, {transform_indices = @transform_1, window_bounds = array<i64: 32, 64>}, {transform_indices = @transform_2, window_bounds = array<i64: 1, 64>}, {transform_indices = @transform_3, window_bounds = array<i64: 16, 64>}]} {
    %c0 = arith.constant 0 : index
    %c0_0 = arith.constant 0 : index
    %0 = vector.load %arg2[%c0, %c0_0] : memref<16x32xbf16, #tpu.memory_space<vmem>>, vector<16x32xbf16>
    %c0_1 = arith.constant 0 : index
    %c0_2 = arith.constant 0 : index
    %1 = vector.load %arg3[%c0_1, %c0_2] : memref<32x64xbf16, #tpu.memory_space<vmem>>, vector<32x64xbf16>
    %cst = arith.constant dense<0.000000e+00> : vector<16x64xf32>
    %2 = tpu.matmul %0, %1, %cst {dimension_numbers = #tpu.dot_dimension_numbers<[1], [0], [0], [1], [0, 0, 1, 1], [], []>} : vector<16x32xbf16>, vector<32x64xbf16>, vector<16x64xf32> -> vector<16x64xf32>
    %c0_3 = arith.constant 0 : index
    %c0_4 = arith.constant 0 : index
    %3 = vector.load %arg4[%c0_3, %c0_4] : memref<1x64xf32, #tpu.memory_space<vmem>>, vector<1x64xf32>
    %4 = vector.broadcast %3 : vector<1x64xf32> to vector<16x64xf32>
    %5 = arith.addf %2, %4 : vector<16x64xf32>
    %cst_5 = arith.constant 0.000000e+00 : f32
    %6 = vector.broadcast %cst_5 : f32 to vector<16x64xf32>
    %7 = arith.maximumf %5, %6 : vector<16x64xf32>
    %8 = arith.truncf %7 : vector<16x64xf32> to vector<16x64xbf16>
    %c0_6 = arith.constant 0 : index
    %c0_7 = arith.constant 0 : index
    %9 = vector.load %arg5[%c0_6, %c0_7] : memref<16x64xbf16, #tpu.memory_space<vmem>>, vector<16x64xbf16>
    tpu.vector_store %arg5[%c0_6, %c0_7], %8 {strides = array<i32>} : memref<16x64xbf16, #tpu.memory_space<vmem>>, vector<16x64xbf16>,
    return
  }
  func.func @transform_0(%arg0: i32, %arg1: i32) -> (i32, i32) {
    %c0_i32 = arith.constant 0 : i32
    %c0_i32_0 = arith.constant 0 : i32
    return %arg1, %c0_i32 : i32, i32
  }
  func.func @transform_1(%arg0: i32, %arg1: i32) -> (i32, i32) {
    %c0_i32 = arith.constant 0 : i32
    %c0_i32_0 = arith.constant 0 : i32
    return %c0_i32, %arg0 : i32, i32
  }
  func.func @transform_2(%arg0: i32, %arg1: i32) -> (i32, i32) {
    %c0_i32 = arith.constant 0 : i32
    %c0_i32_0 = arith.constant 0 : i32
    return %c0_i32, %arg0 : i32, i32
  }
  func.func @transform_3(%arg0: i32, %arg1: i32) -> (i32, i32) {
    %c0_i32 = arith.constant 0 : i32
    return %arg1, %arg0 : i32, i32
  }
}

module attributes {stable_mosaic.version = 11 : i64} {
  func.func @_planar_fullk_kernel(%arg0: i32, %arg1: i32, %arg2: memref<16x32xbf16, #tpu.memory_space<vmem>>, %arg3: memref<1x32x32xbf16, #tpu.memory_space<vmem>>, %arg4: memref<1x1x32xf32, #tpu.memory_space<vmem>>, %arg5: memref<1x16x32xbf16, #tpu.memory_space<vmem>>) attributes {dimension_semantics = [#tpu.dimension_semantics<parallel>, #tpu.dimension_semantics<parallel>], iteration_bounds = array<i64: 1, 2>, scalar_prefetch = 0 : i64, scratch_operands = 0 : i64, tpu.core_type = #tpu.core_type<tc>, window_params = [{transform_indices = @transform_0, window_bounds = array<i64: 16, 32>}, {transform_indices = @transform_1, window_bounds = array<i64: 1, 32, 32>}, {transform_indices = @transform_2, window_bounds = array<i64: 1, 1, 32>}, {transform_indices = @transform_3, window_bounds = array<i64: 1, 16, 32>}]} {
    %c0 = arith.constant 0 : index
    %c0_0 = arith.constant 0 : index
    %0 = vector.load %arg2[%c0, %c0_0] : memref<16x32xbf16, #tpu.memory_space<vmem>>, vector<16x32xbf16>
    %c0_1 = arith.constant 0 : index
    %c0_2 = arith.constant 0 : index
    %c0_3 = arith.constant 0 : index
    %1 = vector.load %arg3[%c0_1, %c0_2, %c0_3] : memref<1x32x32xbf16, #tpu.memory_space<vmem>>, vector<1x32x32xbf16>
    %2 = vector.shape_cast %1 : vector<1x32x32xbf16> to vector<32x32xbf16>
    %cst = arith.constant dense<0.000000e+00> : vector<16x32xf32>
    %3 = tpu.matmul %0, %2, %cst {dimension_numbers = #tpu.dot_dimension_numbers<[1], [0], [0], [1], [0, 0, 1, 1], [], []>} : vector<16x32xbf16>, vector<32x32xbf16>, vector<16x32xf32> -> vector<16x32xf32>
    %c0_4 = arith.constant 0 : index
    %c0_5 = arith.constant 0 : index
    %c0_6 = arith.constant 0 : index
    %4 = vector.load %arg4[%c0_4, %c0_5, %c0_6] : memref<1x1x32xf32, #tpu.memory_space<vmem>>, vector<1x1x32xf32>
    %5 = vector.shape_cast %4 : vector<1x1x32xf32> to vector<1x32xf32>
    %6 = vector.broadcast %5 : vector<1x32xf32> to vector<16x32xf32>
    %7 = arith.addf %3, %6 : vector<16x32xf32>
    %8 = arith.truncf %7 : vector<16x32xf32> to vector<16x32xbf16>
    %c0_7 = arith.constant 0 : index
    %c0_8 = arith.constant 0 : index
    %c0_9 = arith.constant 0 : index
    %9 = vector.load %arg5[%c0_7, %c0_8, %c0_9] : memref<1x16x32xbf16, #tpu.memory_space<vmem>>, vector<1x16x32xbf16>
    %10 = vector.shape_cast %9 : vector<1x16x32xbf16> to vector<16x32xbf16>
    %11 = vector.shape_cast %8 : vector<16x32xbf16> to vector<1x16x32xbf16>
    tpu.vector_store %arg5[%c0_7, %c0_8, %c0_9], %11 {strides = array<i32>} : memref<1x16x32xbf16, #tpu.memory_space<vmem>>, vector<1x16x32xbf16>,
    return
  }
  func.func @transform_0(%arg0: i32, %arg1: i32) -> (i32, i32) {
    %c0_i32 = arith.constant 0 : i32
    %c0_i32_0 = arith.constant 0 : i32
    return %arg0, %c0_i32 : i32, i32
  }
  func.func @transform_1(%arg0: i32, %arg1: i32) -> (i32, i32, i32) {
    %c0_i32 = arith.constant 0 : i32
    %c0_i32_0 = arith.constant 0 : i32
    %c0_i32_1 = arith.constant 0 : i32
    return %arg1, %c0_i32, %c0_i32_0 : i32, i32, i32
  }
  func.func @transform_2(%arg0: i32, %arg1: i32) -> (i32, i32, i32) {
    %c0_i32 = arith.constant 0 : i32
    %c0_i32_0 = arith.constant 0 : i32
    %c0_i32_1 = arith.constant 0 : i32
    return %arg1, %c0_i32, %c0_i32_0 : i32, i32, i32
  }
  func.func @transform_3(%arg0: i32, %arg1: i32) -> (i32, i32, i32) {
    %c0_i32 = arith.constant 0 : i32
    %c0_i32_0 = arith.constant 0 : i32
    return %arg1, %arg0, %c0_i32 : i32, i32, i32
  }
}

module attributes {stable_mosaic.version = 11 : i64} {
  func.func @_sdpa_tail_kernel(%arg0: i32, %arg1: i32, %arg2: i32, %arg3: memref<1x8x32xbf16, #tpu.memory_space<vmem>>, %arg4: memref<1x1x8x32xbf16, #tpu.memory_space<vmem>>, %arg5: memref<1x1x8x32xbf16, #tpu.memory_space<vmem>>, %arg6: memref<1x8x32xf32, #tpu.memory_space<vmem>>, %arg7: memref<8x1xf32, #tpu.memory_space<vmem>>, %arg8: memref<8x1xf32, #tpu.memory_space<vmem>>, %arg9: memref<8x32xf32, #tpu.memory_space<vmem>>) attributes {dimension_semantics = [#tpu.dimension_semantics<parallel>, #tpu.dimension_semantics<parallel>, #tpu.dimension_semantics<arbitrary>], iteration_bounds = array<i64: 2, 1, 1>, scalar_prefetch = 0 : i64, scratch_operands = 3 : i64, tpu.core_type = #tpu.core_type<tc>, window_params = [{transform_indices = @transform_0, window_bounds = array<i64: 1, 8, 32>}, {transform_indices = @transform_1, window_bounds = array<i64: 1, 1, 8, 32>}, {transform_indices = @transform_2, window_bounds = array<i64: 1, 1, 8, 32>}, {transform_indices = @transform_3, window_bounds = array<i64: 1, 8, 32>}]} {
    %c0_i32 = arith.constant 0 : i32
    %0 = arith.cmpi eq, %arg2, %c0_i32 : i32
    %1 = arith.extui %0 : i1 to i32
    %c0_i32_0 = arith.constant 0 : i32
    %2 = arith.cmpi ne, %1, %c0_i32_0 : i32
    scf.if %2 {
      %cst_28 = arith.constant 0xFF800000 : f32
      %36 = vector.broadcast %cst_28 : f32 to vector<8x1xf32>
      %c0_29 = arith.constant 0 : index
      %c0_30 = arith.constant 0 : index
      %37 = vector.load %arg7[%c0_29, %c0_30] : memref<8x1xf32, #tpu.memory_space<vmem>>, vector<8x1xf32>
      tpu.vector_store %arg7[%c0_29, %c0_30], %36 {strides = array<i32>} : memref<8x1xf32, #tpu.memory_space<vmem>>, vector<8x1xf32>,
      %cst_31 = arith.constant 0.000000e+00 : f32
      %38 = vector.broadcast %cst_31 : f32 to vector<8x1xf32>
      %c0_32 = arith.constant 0 : index
      %c0_33 = arith.constant 0 : index
      %39 = vector.load %arg8[%c0_32, %c0_33] : memref<8x1xf32, #tpu.memory_space<vmem>>, vector<8x1xf32>
      tpu.vector_store %arg8[%c0_32, %c0_33], %38 {strides = array<i32>} : memref<8x1xf32, #tpu.memory_space<vmem>>, vector<8x1xf32>,
      %cst_34 = arith.constant 0.000000e+00 : f32
      %40 = vector.broadcast %cst_34 : f32 to vector<8x32xf32>
      %c0_35 = arith.constant 0 : index
      %c0_36 = arith.constant 0 : index
      %41 = vector.load %arg9[%c0_35, %c0_36] : memref<8x32xf32, #tpu.memory_space<vmem>>, vector<8x32xf32>
      tpu.vector_store %arg9[%c0_35, %c0_36], %40 {strides = array<i32>} : memref<8x32xf32, #tpu.memory_space<vmem>>, vector<8x32xf32>,
    } else {
    }
    %c0 = arith.constant 0 : index
    %c0_1 = arith.constant 0 : index
    %c0_2 = arith.constant 0 : index
    %3 = vector.load %arg3[%c0, %c0_1, %c0_2] : memref<1x8x32xbf16, #tpu.memory_space<vmem>>, vector<1x8x32xbf16>
    %4 = vector.shape_cast %3 : vector<1x8x32xbf16> to vector<8x32xbf16>
    %c0_3 = arith.constant 0 : index
    %c0_4 = arith.constant 0 : index
    %c0_5 = arith.constant 0 : index
    %c0_6 = arith.constant 0 : index
    %5 = vector.load %arg4[%c0_3, %c0_4, %c0_5, %c0_6] : memref<1x1x8x32xbf16, #tpu.memory_space<vmem>>, vector<1x1x8x32xbf16>
    %6 = vector.shape_cast %5 : vector<1x1x8x32xbf16> to vector<8x32xbf16>
    %c0_7 = arith.constant 0 : index
    %c0_8 = arith.constant 0 : index
    %c0_9 = arith.constant 0 : index
    %c0_10 = arith.constant 0 : index
    %7 = vector.load %arg5[%c0_7, %c0_8, %c0_9, %c0_10] : memref<1x1x8x32xbf16, #tpu.memory_space<vmem>>, vector<1x1x8x32xbf16>
    %8 = vector.shape_cast %7 : vector<1x1x8x32xbf16> to vector<8x32xbf16>
    %cst = arith.constant dense<0.000000e+00> : vector<8x8xf32>
    %9 = tpu.matmul %4, %6, %cst {dimension_numbers = #tpu.dot_dimension_numbers<[1], [1], [0], [0], [0, 0, 1, 0], [], []>} : vector<8x32xbf16>, vector<8x32xbf16>, vector<8x8xf32> -> vector<8x8xf32>
    %c0_11 = arith.constant 0 : index
    %c0_12 = arith.constant 0 : index
    %10 = vector.load %arg7[%c0_11, %c0_12] : memref<8x1xf32, #tpu.memory_space<vmem>>, vector<8x1xf32>
    %cst_13 = arith.constant dense<0xFF800000> : vector<8xf32>
    %11 = vector.multi_reduction <maximumf>, %9, %cst_13 [1] : vector<8x8xf32> to vector<8xf32>
    %12 = vector.shape_cast %11 : vector<8xf32> to vector<8x1xf32>
    %13 = arith.maximumf %10, %12 : vector<8x1xf32>
    %14 = arith.subf %10, %13 : vector<8x1xf32>
    %15 = math.exp %14 : vector<8x1xf32>
    %16 = vector.broadcast %13 : vector<8x1xf32> to vector<8x8xf32>
    %17 = arith.subf %9, %16 : vector<8x8xf32>
    %18 = math.exp %17 : vector<8x8xf32>
    %c0_14 = arith.constant 0 : index
    %c0_15 = arith.constant 0 : index
    %19 = vector.load %arg8[%c0_14, %c0_15] : memref<8x1xf32, #tpu.memory_space<vmem>>, vector<8x1xf32>
    %20 = arith.mulf %15, %19 : vector<8x1xf32>
    %cst_16 = arith.constant dense<0.000000e+00> : vector<8xf32>
    %21 = vector.multi_reduction <add>, %18, %cst_16 [1] : vector<8x8xf32> to vector<8xf32>
    %22 = vector.shape_cast %21 : vector<8xf32> to vector<8x1xf32>
    %23 = arith.addf %20, %22 : vector<8x1xf32>
    %c0_17 = arith.constant 0 : index
    %c0_18 = arith.constant 0 : index
    %24 = vector.load %arg8[%c0_17, %c0_18] : memref<8x1xf32, #tpu.memory_space<vmem>>, vector<8x1xf32>
    tpu.vector_store %arg8[%c0_17, %c0_18], %23 {strides = array<i32>} : memref<8x1xf32, #tpu.memory_space<vmem>>, vector<8x1xf32>,
    %c0_19 = arith.constant 0 : index
    %c0_20 = arith.constant 0 : index
    %25 = vector.load %arg9[%c0_19, %c0_20] : memref<8x32xf32, #tpu.memory_space<vmem>>, vector<8x32xf32>
    %26 = vector.broadcast %15 : vector<8x1xf32> to vector<8x32xf32>
    %27 = arith.mulf %26, %25 : vector<8x32xf32>
    %28 = arith.truncf %18 : vector<8x8xf32> to vector<8x8xbf16>
    %cst_21 = arith.constant dense<0.000000e+00> : vector<8x32xf32>
    %29 = tpu.matmul %28, %8, %cst_21 {dimension_numbers = #tpu.dot_dimension_numbers<[1], [0], [0], [1], [0, 0, 1, 1], [], []>} : vector<8x8xbf16>, vector<8x32xbf16>, vector<8x32xf32> -> vector<8x32xf32>
    %30 = arith.addf %27, %29 : vector<8x32xf32>
    %c0_22 = arith.constant 0 : index
    %c0_23 = arith.constant 0 : index
    %31 = vector.load %arg9[%c0_22, %c0_23] : memref<8x32xf32, #tpu.memory_space<vmem>>, vector<8x32xf32>
    tpu.vector_store %arg9[%c0_22, %c0_23], %30 {strides = array<i32>} : memref<8x32xf32, #tpu.memory_space<vmem>>, vector<8x32xf32>,
    %c0_24 = arith.constant 0 : index
    %c0_25 = arith.constant 0 : index
    %32 = vector.load %arg7[%c0_24, %c0_25] : memref<8x1xf32, #tpu.memory_space<vmem>>, vector<8x1xf32>
    tpu.vector_store %arg7[%c0_24, %c0_25], %13 {strides = array<i32>} : memref<8x1xf32, #tpu.memory_space<vmem>>, vector<8x1xf32>,
    %c0_i32_26 = arith.constant 0 : i32
    %33 = arith.cmpi eq, %arg2, %c0_i32_26 : i32
    %34 = arith.extui %33 : i1 to i32
    %c0_i32_27 = arith.constant 0 : i32
    %35 = arith.cmpi ne, %34, %c0_i32_27 : i32
    scf.if %35 {
      %c0_28 = arith.constant 0 : index
      %c0_29 = arith.constant 0 : index
      %36 = vector.load %arg9[%c0_28, %c0_29] : memref<8x32xf32, #tpu.memory_space<vmem>>, vector<8x32xf32>
      %c0_30 = arith.constant 0 : index
      %c0_31 = arith.constant 0 : index
      %37 = vector.load %arg8[%c0_30, %c0_31] : memref<8x1xf32, #tpu.memory_space<vmem>>, vector<8x1xf32>
      %38 = tpu.reciprocal %37 {approx = true} : vector<8x1xf32> -> vector<8x1xf32>
      %39 = vector.broadcast %38 : vector<8x1xf32> to vector<8x32xf32>
      %40 = arith.mulf %36, %39 : vector<8x32xf32>
      %c0_32 = arith.constant 0 : index
      %c0_33 = arith.constant 0 : index
      %c0_34 = arith.constant 0 : index
      %41 = vector.load %arg6[%c0_32, %c0_33, %c0_34] : memref<1x8x32xf32, #tpu.memory_space<vmem>>, vector<1x8x32xf32>
      %42 = vector.shape_cast %41 : vector<1x8x32xf32> to vector<8x32xf32>
      %43 = vector.shape_cast %40 : vector<8x32xf32> to vector<1x8x32xf32>
      tpu.vector_store %arg6[%c0_32, %c0_33, %c0_34], %43 {strides = array<i32>} : memref<1x8x32xf32, #tpu.memory_space<vmem>>, vector<1x8x32xf32>,
    } else {
    }
    return
  }
  func.func @transform_0(%arg0: i32, %arg1: i32, %arg2: i32) -> (i32, i32, i32) {
    %c0_i32 = arith.constant 0 : i32
    %c0_i32_0 = arith.constant 0 : i32
    return %arg0, %arg1, %c0_i32 : i32, i32, i32
  }
  func.func @transform_1(%arg0: i32, %arg1: i32, %arg2: i32) -> (i32, i32, i32, i32) {
    %c0_i32 = arith.constant 0 : i32
    %c0_i32_0 = arith.constant 0 : i32
    %c0_i32_1 = arith.constant 0 : i32
    return %c0_i32, %arg0, %arg2, %c0_i32_0 : i32, i32, i32, i32
  }
  func.func @transform_2(%arg0: i32, %arg1: i32, %arg2: i32) -> (i32, i32, i32, i32) {
    %c1_i32 = arith.constant 1 : i32
    %c0_i32 = arith.constant 0 : i32
    %c0_i32_0 = arith.constant 0 : i32
    return %c1_i32, %arg0, %arg2, %c0_i32 : i32, i32, i32, i32
  }
  func.func @transform_3(%arg0: i32, %arg1: i32, %arg2: i32) -> (i32, i32, i32) {
    %c0_i32 = arith.constant 0 : i32
    %c0_i32_0 = arith.constant 0 : i32
    return %arg0, %arg1, %c0_i32 : i32, i32, i32
  }
}

module attributes {stable_mosaic.version = 11 : i64} {
  func.func @_linear_res_ln_fullk_kernel(%arg0: i32, %arg1: memref<16x64xbf16, #tpu.memory_space<vmem>>, %arg2: memref<64x32xbf16, #tpu.memory_space<vmem>>, %arg3: memref<1x32xf32, #tpu.memory_space<vmem>>, %arg4: memref<16x32xbf16, #tpu.memory_space<vmem>>, %arg5: memref<1x32xf32, #tpu.memory_space<vmem>>, %arg6: memref<1x32xf32, #tpu.memory_space<vmem>>, %arg7: memref<16x32xbf16, #tpu.memory_space<vmem>>) attributes {dimension_semantics = [#tpu.dimension_semantics<parallel>], iteration_bounds = array<i64: 1>, scalar_prefetch = 0 : i64, scratch_operands = 0 : i64, tpu.core_type = #tpu.core_type<tc>, window_params = [{transform_indices = @transform_0, window_bounds = array<i64: 16, 64>}, {pipeline_mode = #tpu.pipeline_mode<synchronous>, transform_indices = @transform_1, window_bounds = array<i64: 64, 32>}, {pipeline_mode = #tpu.pipeline_mode<synchronous>, transform_indices = @transform_2, window_bounds = array<i64: 1, 32>}, {transform_indices = @transform_3, window_bounds = array<i64: 16, 32>}, {pipeline_mode = #tpu.pipeline_mode<synchronous>, transform_indices = @transform_4, window_bounds = array<i64: 1, 32>}, {pipeline_mode = #tpu.pipeline_mode<synchronous>, transform_indices = @transform_5, window_bounds = array<i64: 1, 32>}, {transform_indices = @transform_6, window_bounds = array<i64: 16, 32>}]} {
    %c0 = arith.constant 0 : index
    %c0_0 = arith.constant 0 : index
    %0 = vector.load %arg1[%c0, %c0_0] : memref<16x64xbf16, #tpu.memory_space<vmem>>, vector<16x64xbf16>
    %c0_1 = arith.constant 0 : index
    %c0_2 = arith.constant 0 : index
    %1 = vector.load %arg2[%c0_1, %c0_2] : memref<64x32xbf16, #tpu.memory_space<vmem>>, vector<64x32xbf16>
    %cst = arith.constant dense<0.000000e+00> : vector<16x32xf32>
    %2 = tpu.matmul %0, %1, %cst {dimension_numbers = #tpu.dot_dimension_numbers<[1], [0], [0], [1], [0, 0, 1, 1], [], []>} : vector<16x64xbf16>, vector<64x32xbf16>, vector<16x32xf32> -> vector<16x32xf32>
    %c0_3 = arith.constant 0 : index
    %c0_4 = arith.constant 0 : index
    %3 = vector.load %arg3[%c0_3, %c0_4] : memref<1x32xf32, #tpu.memory_space<vmem>>, vector<1x32xf32>
    %4 = vector.broadcast %3 : vector<1x32xf32> to vector<16x32xf32>
    %5 = arith.addf %2, %4 : vector<16x32xf32>
    %c0_5 = arith.constant 0 : index
    %c0_6 = arith.constant 0 : index
    %6 = vector.load %arg4[%c0_5, %c0_6] : memref<16x32xbf16, #tpu.memory_space<vmem>>, vector<16x32xbf16>
    %7 = arith.extf %6 : vector<16x32xbf16> to vector<16x32xf32>
    %8 = arith.addf %5, %7 : vector<16x32xf32>
    %c0_7 = arith.constant 0 : index
    %c0_8 = arith.constant 0 : index
    %9 = vector.load %arg5[%c0_7, %c0_8] : memref<1x32xf32, #tpu.memory_space<vmem>>, vector<1x32xf32>
    %c0_9 = arith.constant 0 : index
    %c0_10 = arith.constant 0 : index
    %10 = vector.load %arg6[%c0_9, %c0_10] : memref<1x32xf32, #tpu.memory_space<vmem>>, vector<1x32xf32>
    %cst_11 = arith.constant dense<0.000000e+00> : vector<16xf32>
    %11 = vector.multi_reduction <add>, %8, %cst_11 [1] : vector<16x32xf32> to vector<16xf32>
    %12 = vector.shape_cast %11 : vector<16xf32> to vector<16x1xf32>
    %cst_12 = arith.constant 3.200000e+01 : f32
    %13 = vector.broadcast %cst_12 : f32 to vector<16x1xf32>
    %14 = arith.divf %12, %13 : vector<16x1xf32>
    %15 = vector.broadcast %14 : vector<16x1xf32> to vector<16x32xf32>
    %16 = arith.subf %8, %15 : vector<16x32xf32>
    %17 = arith.mulf %16, %16 : vector<16x32xf32>
    %cst_13 = arith.constant dense<0.000000e+00> : vector<16xf32>
    %18 = vector.multi_reduction <add>, %17, %cst_13 [1] : vector<16x32xf32> to vector<16xf32>
    %19 = vector.shape_cast %18 : vector<16xf32> to vector<16x1xf32>
    %cst_14 = arith.constant 3.200000e+01 : f32
    %20 = vector.broadcast %cst_14 : f32 to vector<16x1xf32>
    %21 = arith.divf %19, %20 : vector<16x1xf32>
    %cst_15 = arith.constant 9.99999974E-6 : f32
    %22 = vector.broadcast %cst_15 : f32 to vector<16x1xf32>
    %23 = arith.addf %21, %22 : vector<16x1xf32>
    %24 = math.rsqrt %23 : vector<16x1xf32>
    %25 = vector.broadcast %24 : vector<16x1xf32> to vector<16x32xf32>
    %26 = arith.mulf %16, %25 : vector<16x32xf32>
    %27 = vector.broadcast %9 : vector<1x32xf32> to vector<16x32xf32>
    %28 = arith.mulf %26, %27 : vector<16x32xf32>
    %29 = vector.broadcast %10 : vector<1x32xf32> to vector<16x32xf32>
    %30 = arith.addf %28, %29 : vector<16x32xf32>
    %31 = arith.truncf %30 : vector<16x32xf32> to vector<16x32xbf16>
    %c0_16 = arith.constant 0 : index
    %c0_17 = arith.constant 0 : index
    %32 = vector.load %arg7[%c0_16, %c0_17] : memref<16x32xbf16, #tpu.memory_space<vmem>>, vector<16x32xbf16>
    tpu.vector_store %arg7[%c0_16, %c0_17], %31 {strides = array<i32>} : memref<16x32xbf16, #tpu.memory_space<vmem>>, vector<16x32xbf16>,
    return
  }
  func.func @transform_0(%arg0: i32) -> (i32, i32) {
    %c0_i32 = arith.constant 0 : i32
    %c0_i32_0 = arith.constant 0 : i32
    return %arg0, %c0_i32 : i32, i32
  }
  func.func @transform_1(%arg0: i32) -> (i32, i32) {
    %c0_i32 = arith.constant 0 : i32
    %c0_i32_0 = arith.constant 0 : i32
    %c0_i32_1 = arith.constant 0 : i32
    return %c0_i32, %c0_i32_0 : i32, i32
  }
  func.func @transform_2(%arg0: i32) -> (i32, i32) {
    %c0_i32 = arith.constant 0 : i32
    %c0_i32_0 = arith.constant 0 : i32
    %c0_i32_1 = arith.constant 0 : i32
    return %c0_i32, %c0_i32_0 : i32, i32
  }
  func.func @transform_3(%arg0: i32) -> (i32, i32) {
    %c0_i32 = arith.constant 0 : i32
    %c0_i32_0 = arith.constant 0 : i32
    return %arg0, %c0_i32 : i32, i32
  }
  func.func @transform_4(%arg0: i32) -> (i32, i32) {
    %c0_i32 = arith.constant 0 : i32
    %c0_i32_0 = arith.constant 0 : i32
    %c0_i32_1 = arith.constant 0 : i32
    return %c0_i32, %c0_i32_0 : i32, i32
  }
  func.func @transform_5(%arg0: i32) -> (i32, i32) {
    %c0_i32 = arith.constant 0 : i32
    %c0_i32_0 = arith.constant 0 : i32
    %c0_i32_1 = arith.constant 0 : i32
    return %c0_i32, %c0_i32_0 : i32, i32
  }
  func.func @transform_6(%arg0: i32) -> (i32, i32) {
    %c0_i32 = arith.constant 0 : i32
    %c0_i32_0 = arith.constant 0 : i32
    return %arg0, %c0_i32 : i32, i32
  }
}

</mosaic_0001>

<llo_original>
// kernel: audio_encoder_forward.13
$region0: #{audio_encoder_forward.13}
  #allocation0 [shape = 'u32[]', space=smem, size = 0x4, offset = 0x4, fixed_abs, tag = 'smem constant byte address 0x4 - core index']
  #allocation1 [shape = 'u32[72,128]{1,0:T(1,128)}', space=vmem, size = 0x9000, scoped, tag = 'internal scratch']
  %s0 = inlined_call_operand.vmem [shape: bf16[16,16], index: 0, kind: input, shape index: {}]
  %s1 = inlined_call_operand.vmem [shape: bf16[16,32], index: 1, kind: input, shape index: {}]
  %s2 = inlined_call_operand.vmem [shape: f32[1,32], index: 2, kind: input, shape index: {}]
  %s3 = inlined_call_operand.vmem [shape: f32[8,32], index: 3, kind: input, shape index: {}]
  %s4 = inlined_call_operand.vmem [shape: bf16[16,32], index: 4, kind: output, shape index: {}]
  %s5 = sld [smem:[#allocation0]]
  $region49: #{audio_encoder_forward.13} parent=0
    _
  %s7 = ssub.s32 1, %s5
  %s8 = scalar_select 0, %s7, %s5
  loop: start=0, step=1, limit=4
  $region2: #{audio_encoder_forward.13} parent=0 // loop_pre_header
    _
  $region3: #{audio_encoder_forward.13} parent=0 // loop_header
    %s10 = sphi 0, %s14
    %p11 = scmp.ge.s32.totalorder %s10, 4
    %s17 = sphi 0, %s29
    %s18 = sphi 0, %s25
    %s19 = sphi 0, %s17
    %s20 = sphi 0, %s18
    %s21 = sphi 0, %s19
    %s22 = sphi 0, %s20
    %s32 = sphi 0, %s34
    %s35 = sphi 0, %s32
    %s36 = sphi 0, %s35
    %s52 = sphi 0, %s36
    %s58 = sphi 0, %s60
    %s61 = sphi 0, %s58
    %s62 = sphi 0, %s61
    %s78 = sphi 0, %s62
    %s84 = sphi 0, %s86
    %s87 = sphi 0, %s84
    %s88 = sphi 0, %s87
    %s104 = sphi 0, %s88
    %s110 = sphi 0, %s112
    %s113 = sphi 0, %s110
    %s114 = sphi 0, %s113
    %s130 = sphi 0, %s114
    %s138 = sphi 0, %s140
    %s141 = sphi 0, %s138
    %s142 = sphi 0, %s141
    %s158 = sphi 0, %s142
  $region4: #{audio_encoder_forward.13} parent=0 // loop_header_branch
    %13 = sbr.rel (%p11) target = $region8
  $region5: #{audio_encoder_forward.13} parent=0 // loop_body
    %s15 = ssub.s32 %s10, 1
    %s16 = ssub.s32 %s10, 2
    %s23 = sadd.s32 1, %s18
    %p24 = scmp.ge.s32.totalorder %s23, 2
    %s25 = scalar_select %p24, 0, %s23
    %s26 = sadd.s32 1, %s17
    %s27 = scalar_select %p24, %s26, %s17
    %p28 = scmp.ge.s32.totalorder %s27, 1
    %s29 = scalar_select %p28, 0, %s27
    %s30 = ssub.s32 %s18, %s25
    %p31 = scmp.eq.s32.totalorder %s30, 0
    %s33 = sadd.s32 %s32, 1
    %s34 = scalar_select %p31, %s32, %s33
    %p37 = pneg %p31
    %p38 = scmp.eq.s32.totalorder %s10, 1
    %p39 = por %p37, %p38
    %p40 = scmp.ne.s32.totalorder %s32, %s35
    %p41 = scmp.eq.s32.totalorder %s10, 0
    %p42 = por %p40, %p41
    %p43 = scmp.ne.s32.totalorder %s32, %s35
    %p44 = scmp.eq.s32.totalorder %s15, 1
    %p45 = por %p43, %p44
    %p46 = scmp.ne.s32.totalorder %s35, %s36
    %p47 = scmp.eq.s32.totalorder %s15, 0
    %p48 = por %p46, %p47
    %p49 = scmp.ne.s32.totalorder %s35, %s36
    %p50 = scmp.eq.s32.totalorder %s16, 1
    %p51 = por %p49, %p50
    %p53 = scmp.ne.s32.totalorder %s36, %s52
    %p54 = scmp.eq.s32.totalorder %s16, 0
    %p55 = por %p53, %p54
    %s56 = ssub.s32 %s17, %s29
    %p57 = scmp.eq.s32.totalorder %s56, 0
    %s59 = sadd.s32 %s58, 1
    %s60 = scalar_select %p57, %s58, %s59
    %p63 = pneg %p57
    %p64 = scmp.eq.s32.totalorder %s10, 1
    %p65 = por %p63, %p64
    %p66 = scmp.ne.s32.totalorder %s58, %s61
    %p67 = scmp.eq.s32.totalorder %s10, 0
    %p68 = por %p66, %p67
    %p69 = scmp.ne.s32.totalorder %s58, %s61
    %p70 = scmp.eq.s32.totalorder %s15, 1
    %p71 = por %p69, %p70
    %p72 = scmp.ne.s32.totalorder %s61, %s62
    %p73 = scmp.eq.s32.totalorder %s15, 0
    %p74 = por %p72, %p73
    %p75 = scmp.ne.s32.totalorder %s61, %s62
    %p76 = scmp.eq.s32.totalorder %s16, 1
    %p77 = por %p75, %p76
    %p79 = scmp.ne.s32.totalorder %s62, %s78
    %p80 = scmp.eq.s32.totalorder %s16, 0
    %p81 = por %p79, %p80
    %s82 = ssub.s32 %s17, %s29
    %p83 = scmp.eq.s32.totalorder %s82, 0
    %s85 = sadd.s32 %s84, 1
    %s86 = scalar_select %p83, %s84, %s85
    %p89 = pneg %p83
    %p90 = scmp.eq.s32.totalorder %s10, 1
    %p91 = por %p89, %p90
    %p92 = scmp.ne.s32.totalorder %s84, %s87
    %p93 = scmp.eq.s32.totalorder %s10, 0
    %p94 = por %p92, %p93
    %p95 = scmp.ne.s32.totalorder %s84, %s87
    %p96 = scmp.eq.s32.totalorder %s15, 1
    %p97 = por %p95, %p96
    %p98 = scmp.ne.s32.totalorder %s87, %s88
    %p99 = scmp.eq.s32.totalorder %s15, 0
    %p100 = por %p98, %p99
    %p101 = scmp.ne.s32.totalorder %s87, %s88
    %p102 = scmp.eq.s32.totalorder %s16, 1
    %p103 = por %p101, %p102
    %p105 = scmp.ne.s32.totalorder %s88, %s104
    %p106 = scmp.eq.s32.totalorder %s16, 0
    %p107 = por %p105, %p106
    %s108 = ssub.s32 %s17, %s29
    %p109 = scmp.eq.s32.totalorder %s108, 0
    %s111 = sadd.s32 %s110, 1
    %s112 = scalar_select %p109, %s110, %s111
    %p115 = pneg %p109
    %p116 = scmp.eq.s32.totalorder %s10, 1
    %p117 = por %p115, %p116
    %p118 = scmp.ne.s32.totalorder %s110, %s113
    %p119 = scmp.eq.s32.totalorder %s10, 0
    %p120 = por %p118, %p119
    %p121 = scmp.ne.s32.totalorder %s110, %s113
    %p122 = scmp.eq.s32.totalorder %s15, 1
    %p123 = por %p121, %p122
    %p124 = scmp.ne.s32.totalorder %s113, %s114
    %p125 = scmp.eq.s32.totalorder %s15, 0
    %p126 = por %p124, %p125
    %p127 = scmp.ne.s32.totalorder %s113, %s114
    %p128 = scmp.eq.s32.totalorder %s16, 1
    %p129 = por %p127, %p128
    %p131 = scmp.ne.s32.totalorder %s114, %s130
    %p132 = scmp.eq.s32.totalorder %s16, 0
    %p133 = por %p131, %p132
    %s134 = ssub.s32 %s18, %s25
    %s135 = ssub.s32 %s17, %s29
    %s136 = sor.u32 %s134, %s135
    %p137 = scmp.eq.s32.totalorder %s136, 0
    %s139 = sadd.s32 %s138, 1
    %s140 = scalar_select %p137, %s138, %s139
    %p143 = pneg %p137
    %p144 = scmp.eq.s32.totalorder %s10, 1
    %p145 = por %p143, %p144
    %p146 = scmp.ne.s32.totalorder %s138, %s141
    %p147 = scmp.eq.s32.totalorder %s10, 0
    %p148 = por %p146, %p147
    %p149 = scmp.ne.s32.totalorder %s138, %s141
    %p150 = scmp.eq.s32.totalorder %s15, 1
    %p151 = por %p149, %p150
    %p152 = scmp.ne.s32.totalorder %s141, %s142
    %p153 = scmp.eq.s32.totalorder %s15, 0
    %p154 = por %p152, %p153
    %p155 = scmp.ne.s32.totalorder %s141, %s142
    %p156 = scmp.eq.s32.totalorder %s16, 1
    %p157 = por %p155, %p156
    %p159 = scmp.ne.s32.totalorder %s142, %s158
    %p160 = scmp.eq.s32.totalorder %s16, 0
    %p161 = por %p159, %p160
    %p162 = scmp.le.s32.totalorder 1, %s10
    %p163 = scmp.lt.s32.totalorder %s10, 3
    %p164 = pnand %p162, %p163
    %p165 = pneg %p164
    // Predicated region
    $region9: #{audio_encoder_forward.13} parent=5 // pred_check
      _
    $region10: #{audio_encoder_forward.13} parent=5 // pred_check_branch
      %167 = sbr.rel (%p164) target = $region12
    $region11: #{audio_encoder_forward.13} parent=5 // pred_region
      %s168 = ssub.s32 %s10, 1
      // Predicated region
      $region13: #{audio_encoder_forward.13} parent=11 // pred_check
        %p169 = pneg %p74
      $region14: #{audio_encoder_forward.13} parent=11 // pred_check_branch
        %171 = sbr.rel (%p169) target = $region16
      $region15: #{audio_encoder_forward.13} parent=11 // pred_region
        %p172 = scmp.lt.s32.totalorder %s19, 0
        %s173 = scalar_select %p172, %s19, 0
        %s174 = smul.addr %s173, 4
        %s175 = scalar_lea.vmem %s1, %s174
      $region16: #{audio_encoder_forward.13} parent=11 // pred_fallthru
        _
      // Predicated region
      $region17: #{audio_encoder_forward.13} parent=11 // pred_check
        %p176 = pneg %p100
      $region18: #{audio_encoder_forward.13} parent=11 // pred_check_branch
        %178 = sbr.rel (%p176) target = $region20
      $region19: #{audio_encoder_forward.13} parent=11 // pred_region
        %p179 = scmp.lt.s32.totalorder %s19, 0
        %s180 = scalar_select %p179, %s19, 0
        %s181 = scalar_lea.vmem %s2, %s180
      $region20: #{audio_encoder_forward.13} parent=11 // pred_fallthru
        _
      // Predicated region
      $region21: #{audio_encoder_forward.13} parent=11 // pred_check
        %p182 = pneg %p126
      $region22: #{audio_encoder_forward.13} parent=11 // pred_check_branch
        %184 = sbr.rel (%p182) target = $region24
      $region23: #{audio_encoder_forward.13} parent=11 // pred_region
        %p185 = scmp.lt.s32.totalorder %s19, 0
        %s186 = scalar_select %p185, %s19, 0
        %s187 = smul.addr %s186, 8
        %s188 = scalar_lea.vmem %s3, %s187
      $region24: #{audio_encoder_forward.13} parent=11 // pred_fallthru
        _
    $region12: #{audio_encoder_forward.13} parent=5 // pred_fallthru
      _
    %p189 = scmp.lt.s32.totalorder %s10, 2
    // Predicated region
    $region25: #{audio_encoder_forward.13} parent=5 // pred_check
      %p190 = pneg %p189
    $region26: #{audio_encoder_forward.13} parent=5 // pred_check_branch
      %192 = sbr.rel (%p190) target = $region28
    $region27: #{audio_encoder_forward.13} parent=5 // pred_region
      // Predicated region
      $region29: #{audio_encoder_forward.13} parent=27 // pred_check
        %p193 = pneg %p42
      $region30: #{audio_encoder_forward.13} parent=27 // pred_check_branch
        %195 = sbr.rel (%p193) target = $region32
      $region31: #{audio_encoder_forward.13} parent=27 // pred_region
        %p196 = scmp.lt.s32.totalorder %s18, 1
        %s197 = scalar_select %p196, %s18, 1
        %s198 = smul.addr %s197, 4
        %s199 = scalar_lea.vmem %s0, %s198
      $region32: #{audio_encoder_forward.13} parent=27 // pred_fallthru
        _
    $region28: #{audio_encoder_forward.13} parent=5 // pred_fallthru
      _
    %p200 = scmp.le.s32.totalorder 1, %s10
    %p201 = scmp.lt.s32.totalorder %s10, 3
    %p202 = pnand %p200, %p201
    %p203 = pneg %p202
    // Predicated region
    $region33: #{audio_encoder_forward.13} parent=5 // pred_check
      _
    $region34: #{audio_encoder_forward.13} parent=5 // pred_check_branch
      %205 = sbr.rel (%p202) target = $region36
    $region35: #{audio_encoder_forward.13} parent=5 // pred_region
      %s206 = ssub.s32 %s10, 1
      %p207 = scmp.lt.s32.totalorder %s20, 1
      %s208 = scalar_select %p207, %s20, 1
      %s209 = smul.addr %s208, 4
      %s210 = scalar_lea.vmem %s0, %s209
      %p211 = pneg %p48
      %p212 = pneg %p45
      %p213 = scmp.lt.s32.totalorder %s19, 0
      %s214 = scalar_select %p213, %s19, 0
      %s215 = smul.addr %s214, 4
      %s216 = scalar_lea.vmem %s1, %s215
      %p217 = pneg %p74
      %p218 = pneg %p71
      %p219 = scmp.lt.s32.totalorder %s19, 0
      %s220 = scalar_select %p219, %s19, 0
      %s221 = scalar_lea.vmem %s2, %s220
      %p222 = pneg %p100
      %p223 = pneg %p97
      %p224 = scmp.lt.s32.totalorder %s19, 0
      %s225 = scalar_select %p224, %s19, 0
      %s226 = smul.addr %s225, 8
      %s227 = scalar_lea.vmem %s3, %s226
      %p228 = pneg %p126
      %p229 = pneg %p123
      %p230 = pneg %p154
      %p231 = pneg %p151
      %p232 = scmp.lt.s32.totalorder %s20, 1
      %s233 = scalar_select %p232, %s20, 1
      %p234 = scmp.lt.s32.totalorder %s19, 0
      %s235 = scalar_select %p234, %s19, 0
      %s236 = sadd.s32 %s235, %s233
      %s237 = smul.addr %s236, 4
      %s238 = scalar_lea.vmem %s4, %s237
      %p239 = scmp.lt.s32.totalorder %s20, 1
      %s240 = scalar_select %p239, %s20, 1
      %s241 = smul.addr %s240, 4
      %s242 = scalar_lea.vmem %s0, %s241
      %p243 = scmp.lt.s32.totalorder %s19, 0
      %s244 = scalar_select %p243, %s19, 0
      %s245 = smul.addr %s244, 4
      %s246 = scalar_lea.vmem %s1, %s245
      %p247 = scmp.lt.s32.totalorder %s19, 0
      %s248 = scalar_select %p247, %s19, 0
      %s249 = scalar_lea.vmem %s2, %s248
      %p250 = scmp.lt.s32.totalorder %s19, 0
      %s251 = scalar_select %p250, %s19, 0
      %s252 = smul.addr %s251, 8
      %s253 = scalar_lea.vmem %s3, %s252
      %p254 = scmp.lt.s32.totalorder %s20, 1
      %s255 = scalar_select %p254, %s20, 1
      %p256 = scmp.lt.s32.totalorder %s19, 0
      %s257 = scalar_select %p256, %s19, 0
      %s258 = sadd.s32 %s257, %s255
      %s259 = smul.addr %s258, 4
      %s260 = scalar_lea.vmem %s4, %s259
      %v262 = vld [vmem:[%s242] sm:$0xf]
      %v263 = vld [vmem:[%s246] sm:$0xf]
      %v264 = vld [vmem:[%s246 + $0x4] sm:$0xf]
      %v265 = vld [vmem:[%s249] sm:$0x1]
      %v267 = vperm.slane %v265, 0
      %v271 = vunpack.c.l.b16 %v263
      %v272 = vunpack.c.l.b16 %v264
      %v273 = vpack.c.b16 %v272, %v271
      %vm275 = vcmask 130048
      %v277 = vsel %vm275, %v262, 0
      %279 = vmatpush.bf16.msra.mxu0 0
      %280 = vmatpush.bf16.msra.mxu0 0
      %281 = vmatpush.bf16.msra.mxu0 0
      %282 = vmatpush.bf16.msra.mxu0 0
      %283 = vmatpush.bf16.msra.mxu0 0
      %284 = vmatpush.bf16.msra.mxu0 0
      %285 = vmatpush.bf16.msra.mxu0 0
      %286 = vmatpush.bf16.msra.mxu0 %v273
      %287 = vmatmul.bf16.gmra.mxu0 %v277
      %v288 = vpop.f32.mrf.mxu0
      %v289 = vadd.f32 %v267, %v288
      %v290 = vpop.f32.mrf.mxu0
      %291 = vdwg.mxu0
      %v292 = vld [vmem:[%s253] sm:$0xff]
      %v293 = vadd.f32 %v289, %v292
      %v294 = vpack.c.bf16 %v293, %v293
      %vm295 = vcmask 257024
      %296 = vst.msk [vmem:[%s260] sm:$0xf] %vm295, %v294
      %p297 = scmp.lt.s32.totalorder %s20, 1
      %s298 = scalar_select %p297, %s20, 1
      %p299 = scmp.lt.s32.totalorder %s19, 0
      %s300 = scalar_select %p299, %s19, 0
      %s301 = sadd.s32 %s300, %s298
      %s302 = smul.addr %s301, 4
      %s303 = scalar_lea.vmem %s4, %s302
      // Predicated region
      $region37: #{audio_encoder_forward.13} parent=35 // pred_check
        %p304 = pneg %p151
      $region38: #{audio_encoder_forward.13} parent=35 // pred_check_branch
        %306 = sbr.rel (%p304) target = $region40
      $region39: #{audio_encoder_forward.13} parent=35 // pred_region
        _
      $region40: #{audio_encoder_forward.13} parent=35 // pred_fallthru
        _
    $region36: #{audio_encoder_forward.13} parent=5 // pred_fallthru
      _
    %p307 = scmp.le.s32.totalorder 2, %s10
    // Predicated region
    $region41: #{audio_encoder_forward.13} parent=5 // pred_check
      %p308 = pneg %p307
    $region42: #{audio_encoder_forward.13} parent=5 // pred_check_branch
      %310 = sbr.rel (%p308) target = $region44
    $region43: #{audio_encoder_forward.13} parent=5 // pred_region
      %s311 = ssub.s32 %s10, 2
      // Predicated region
      $region45: #{audio_encoder_forward.13} parent=43 // pred_check
        %p312 = pneg %p157
      $region46: #{audio_encoder_forward.13} parent=43 // pred_check_branch
        %314 = sbr.rel (%p312) target = $region48
      $region47: #{audio_encoder_forward.13} parent=43 // pred_region
        %p315 = scmp.lt.s32.totalorder %s22, 1
        %s316 = scalar_select %p315, %s22, 1
        %p317 = scmp.lt.s32.totalorder %s21, 0
        %s318 = scalar_select %p317, %s21, 0
        %s319 = sadd.s32 %s318, %s316
        %s320 = smul.addr %s319, 4
        %s321 = scalar_lea.vmem %s4, %s320
      $region48: #{audio_encoder_forward.13} parent=43 // pred_fallthru
        _
    $region44: #{audio_encoder_forward.13} parent=5 // pred_fallthru
      _
  $region6: #{audio_encoder_forward.13} parent=0 // loop_footer
    %s14 = sadd.s32 1, %s10
  $region7: #{audio_encoder_forward.13} parent=0 // loop_footer_branch
    %9 = sbr.rel target = $region3
  $region8: #{audio_encoder_forward.13} parent=0 // loop_exit
    _

// kernel: audio_encoder_forward.14
$region0: #{audio_encoder_forward.14}
  #allocation0 [shape = 'u32[]', space=smem, size = 0x4, offset = 0x4, fixed_abs, tag = 'smem constant byte address 0x4 - core index']
  #allocation1 [shape = 'u32[72,128]{1,0:T(1,128)}', space=vmem, size = 0x9000, scoped, tag = 'internal scratch']
  %s0 = inlined_call_operand.vmem [shape: bf16[16,32], index: 0, kind: input, shape index: {}]
  %s1 = inlined_call_operand.vmem [shape: bf16[12,32,8], index: 1, kind: input, shape index: {}]
  %s2 = inlined_call_operand.vmem [shape: f32[12,1,8], index: 2, kind: input, shape index: {}]
  %s3 = inlined_call_operand.vmem [shape: bf16[12,16,8], index: 3, kind: output, shape index: {}]
  %s4 = sld [smem:[#allocation0]]
  $region45: #{audio_encoder_forward.14} parent=0
    _
  %s6 = ssub.s32 1, %s4
  %s7 = scalar_select 0, %s6, %s4
  loop: start=0, step=1, limit=14
  $region2: #{audio_encoder_forward.14} parent=0 // loop_pre_header
    _
  $region3: #{audio_encoder_forward.14} parent=0 // loop_header
    %s9 = sphi 0, %s13
    %p10 = scmp.ge.s32.totalorder %s9, 14
    %s16 = sphi 0, %s28
    %s17 = sphi 0, %s24
    %s18 = sphi 0, %s16
    %s19 = sphi 0, %s17
    %s20 = sphi 0, %s18
    %s21 = sphi 0, %s19
    %s31 = sphi 0, %s33
    %s34 = sphi 0, %s31
    %s35 = sphi 0, %s34
    %s51 = sphi 0, %s35
    %s57 = sphi 0, %s59
    %s60 = sphi 0, %s57
    %s61 = sphi 0, %s60
    %s77 = sphi 0, %s61
    %s83 = sphi 0, %s85
    %s86 = sphi 0, %s83
    %s87 = sphi 0, %s86
    %s103 = sphi 0, %s87
    %s111 = sphi 0, %s113
    %s114 = sphi 0, %s111
    %s115 = sphi 0, %s114
    %s131 = sphi 0, %s115
  $region4: #{audio_encoder_forward.14} parent=0 // loop_header_branch
    %12 = sbr.rel (%p10) target = $region8
  $region5: #{audio_encoder_forward.14} parent=0 // loop_body
    %s14 = ssub.s32 %s9, 1
    %s15 = ssub.s32 %s9, 2
    %s22 = sadd.s32 1, %s17
    %p23 = scmp.ge.s32.totalorder %s22, 12
    %s24 = scalar_select %p23, 0, %s22
    %s25 = sadd.s32 1, %s16
    %s26 = scalar_select %p23, %s25, %s16
    %p27 = scmp.ge.s32.totalorder %s26, 1
    %s28 = scalar_select %p27, 0, %s26
    %s29 = ssub.s32 %s16, %s28
    %p30 = scmp.eq.s32.totalorder %s29, 0
    %s32 = sadd.s32 %s31, 1
    %s33 = scalar_select %p30, %s31, %s32
    %p36 = pneg %p30
    %p37 = scmp.eq.s32.totalorder %s9, 11
    %p38 = por %p36, %p37
    %p39 = scmp.ne.s32.totalorder %s31, %s34
    %p40 = scmp.eq.s32.totalorder %s9, 0
    %p41 = por %p39, %p40
    %p42 = scmp.ne.s32.totalorder %s31, %s34
    %p43 = scmp.eq.s32.totalorder %s14, 11
    %p44 = por %p42, %p43
    %p45 = scmp.ne.s32.totalorder %s34, %s35
    %p46 = scmp.eq.s32.totalorder %s14, 0
    %p47 = por %p45, %p46
    %p48 = scmp.ne.s32.totalorder %s34, %s35
    %p49 = scmp.eq.s32.totalorder %s15, 11
    %p50 = por %p48, %p49
    %p52 = scmp.ne.s32.totalorder %s35, %s51
    %p53 = scmp.eq.s32.totalorder %s15, 0
    %p54 = por %p52, %p53
    %s55 = ssub.s32 %s17, %s24
    %p56 = scmp.eq.s32.totalorder %s55, 0
    %s58 = sadd.s32 %s57, 1
    %s59 = scalar_select %p56, %s57, %s58
    %p62 = pneg %p56
    %p63 = scmp.eq.s32.totalorder %s9, 11
    %p64 = por %p62, %p63
    %p65 = scmp.ne.s32.totalorder %s57, %s60
    %p66 = scmp.eq.s32.totalorder %s9, 0
    %p67 = por %p65, %p66
    %p68 = scmp.ne.s32.totalorder %s57, %s60
    %p69 = scmp.eq.s32.totalorder %s14, 11
    %p70 = por %p68, %p69
    %p71 = scmp.ne.s32.totalorder %s60, %s61
    %p72 = scmp.eq.s32.totalorder %s14, 0
    %p73 = por %p71, %p72
    %p74 = scmp.ne.s32.totalorder %s60, %s61
    %p75 = scmp.eq.s32.totalorder %s15, 11
    %p76 = por %p74, %p75
    %p78 = scmp.ne.s32.totalorder %s61, %s77
    %p79 = scmp.eq.s32.totalorder %s15, 0
    %p80 = por %p78, %p79
    %s81 = ssub.s32 %s17, %s24
    %p82 = scmp.eq.s32.totalorder %s81, 0
    %s84 = sadd.s32 %s83, 1
    %s85 = scalar_select %p82, %s83, %s84
    %p88 = pneg %p82
    %p89 = scmp.eq.s32.totalorder %s9, 11
    %p90 = por %p88, %p89
    %p91 = scmp.ne.s32.totalorder %s83, %s86
    %p92 = scmp.eq.s32.totalorder %s9, 0
    %p93 = por %p91, %p92
    %p94 = scmp.ne.s32.totalorder %s83, %s86
    %p95 = scmp.eq.s32.totalorder %s14, 11
    %p96 = por %p94, %p95
    %p97 = scmp.ne.s32.totalorder %s86, %s87
    %p98 = scmp.eq.s32.totalorder %s14, 0
    %p99 = por %p97, %p98
    %p100 = scmp.ne.s32.totalorder %s86, %s87
    %p101 = scmp.eq.s32.totalorder %s15, 11
    %p102 = por %p100, %p101
    %p104 = scmp.ne.s32.totalorder %s87, %s103
    %p105 = scmp.eq.s32.totalorder %s15, 0
    %p106 = por %p104, %p105
    %s107 = ssub.s32 %s17, %s24
    %s108 = ssub.s32 %s16, %s28
    %s109 = sor.u32 %s107, %s108
    %p110 = scmp.eq.s32.totalorder %s109, 0
    %s112 = sadd.s32 %s111, 1
    %s113 = scalar_select %p110, %s111, %s112
    %p116 = pneg %p110
    %p117 = scmp.eq.s32.totalorder %s9, 11
    %p118 = por %p116, %p117
    %p119 = scmp.ne.s32.totalorder %s111, %s114
    %p120 = scmp.eq.s32.totalorder %s9, 0
    %p121 = por %p119, %p120
    %p122 = scmp.ne.s32.totalorder %s111, %s114
    %p123 = scmp.eq.s32.totalorder %s14, 11
    %p124 = por %p122, %p123
    %p125 = scmp.ne.s32.totalorder %s114, %s115
    %p126 = scmp.eq.s32.totalorder %s14, 0
    %p127 = por %p125, %p126
    %p128 = scmp.ne.s32.totalorder %s114, %s115
    %p129 = scmp.eq.s32.totalorder %s15, 11
    %p130 = por %p128, %p129
    %p132 = scmp.ne.s32.totalorder %s115, %s131
    %p133 = scmp.eq.s32.totalorder %s15, 0
    %p134 = por %p132, %p133
    %p135 = scmp.le.s32.totalorder 1, %s9
    %p136 = scmp.lt.s32.totalorder %s9, 13
    %p137 = pnand %p135, %p136
    %p138 = pneg %p137
    // Predicated region
    $region9: #{audio_encoder_forward.14} parent=5 // pred_check
      _
    $region10: #{audio_encoder_forward.14} parent=5 // pred_check_branch
      %140 = sbr.rel (%p137) target = $region12
    $region11: #{audio_encoder_forward.14} parent=5 // pred_region
      %s141 = ssub.s32 %s9, 1
      // Predicated region
      $region13: #{audio_encoder_forward.14} parent=11 // pred_check
        %p142 = pneg %p47
      $region14: #{audio_encoder_forward.14} parent=11 // pred_check_branch
        %144 = sbr.rel (%p142) target = $region16
      $region15: #{audio_encoder_forward.14} parent=11 // pred_region
        %s145 = smul.u32 2, %s18
        %p146 = scmp.lt.s32.totalorder %s145, 1
        %s147 = scalar_select %p146, %s145, 1
        %s148 = smul.addr %s147, 4
        %s149 = scalar_lea.vmem %s0, %s148
        %s150 = smul.u32 2, %s18
      $region16: #{audio_encoder_forward.14} parent=11 // pred_fallthru
        _
    $region12: #{audio_encoder_forward.14} parent=5 // pred_fallthru
      _
    %p151 = scmp.lt.s32.totalorder %s9, 12
    // Predicated region
    $region17: #{audio_encoder_forward.14} parent=5 // pred_check
      %p152 = pneg %p151
    $region18: #{audio_encoder_forward.14} parent=5 // pred_check_branch
      %154 = sbr.rel (%p152) target = $region20
    $region19: #{audio_encoder_forward.14} parent=5 // pred_region
      // Predicated region
      $region21: #{audio_encoder_forward.14} parent=19 // pred_check
        %p155 = pneg %p67
      $region22: #{audio_encoder_forward.14} parent=19 // pred_check_branch
        %157 = sbr.rel (%p155) target = $region24
      $region23: #{audio_encoder_forward.14} parent=19 // pred_region
        %p158 = scmp.lt.s32.totalorder %s17, 11
        %s159 = scalar_select %p158, %s17, 11
        %s160 = smul.addr %s159, 4
        %s161 = smul.addr %s160, 4
        %s162 = scalar_lea.vmem %s1, %s161
      $region24: #{audio_encoder_forward.14} parent=19 // pred_fallthru
        _
      // Predicated region
      $region25: #{audio_encoder_forward.14} parent=19 // pred_check
        %p163 = pneg %p93
      $region26: #{audio_encoder_forward.14} parent=19 // pred_check_branch
        %165 = sbr.rel (%p163) target = $region28
      $region27: #{audio_encoder_forward.14} parent=19 // pred_region
        %p166 = scmp.lt.s32.totalorder %s17, 11
        %s167 = scalar_select %p166, %s17, 11
        %s168 = scalar_lea.vmem %s2, %s167
      $region28: #{audio_encoder_forward.14} parent=19 // pred_fallthru
        _
    $region20: #{audio_encoder_forward.14} parent=5 // pred_fallthru
      _
    %p169 = scmp.le.s32.totalorder 1, %s9
    %p170 = scmp.lt.s32.totalorder %s9, 13
    %p171 = pnand %p169, %p170
    %p172 = pneg %p171
    // Predicated region
    $region29: #{audio_encoder_forward.14} parent=5 // pred_check
      _
    $region30: #{audio_encoder_forward.14} parent=5 // pred_check_branch
      %174 = sbr.rel (%p171) target = $region32
    $region31: #{audio_encoder_forward.14} parent=5 // pred_region
      %s175 = ssub.s32 %s9, 1
      %s176 = smul.u32 2, %s18
      %p177 = scmp.lt.s32.totalorder %s176, 1
      %s178 = scalar_select %p177, %s176, 1
      %s179 = smul.addr %s178, 4
      %s180 = scalar_lea.vmem %s0, %s179
      %p181 = pneg %p47
      %p182 = pneg %p44
      %p183 = scmp.lt.s32.totalorder %s19, 11
      %s184 = scalar_select %p183, %s19, 11
      %s185 = smul.addr %s184, 4
      %s186 = smul.addr %s185, 4
      %s187 = scalar_lea.vmem %s1, %s186
      %p188 = pneg %p73
      %p189 = pneg %p70
      %p190 = scmp.lt.s32.totalorder %s19, 11
      %s191 = scalar_select %p190, %s19, 11
      %s192 = scalar_lea.vmem %s2, %s191
      %p193 = pneg %p99
      %p194 = pneg %p96
      %p195 = pneg %p127
      %p196 = pneg %p124
      %s197 = smul.u32 2, %s18
      %p198 = scmp.lt.s32.totalorder %s19, 11
      %s199 = scalar_select %p198, %s19, 11
      %p200 = scmp.lt.s32.totalorder %s197, 1
      %s201 = scalar_select %p200, %s197, 1
      %s202 = smul.addr %s199, 2
      %s203 = sadd.s32 %s201, %s202
      %s204 = smul.addr %s203, 4
      %s205 = scalar_lea.vmem %s3, %s204
      %s206 = smul.u32 2, %s18
      %p207 = scmp.lt.s32.totalorder %s206, 1
      %s208 = scalar_select %p207, %s206, 1
      %s209 = smul.addr %s208, 4
      %s210 = scalar_lea.vmem %s0, %s209
      %s211 = smul.u32 2, %s18
      %p212 = scmp.lt.s32.totalorder %s19, 11
      %s213 = scalar_select %p212, %s19, 11
      %s214 = smul.addr %s213, 4
      %s215 = smul.addr %s214, 4
      %s216 = scalar_lea.vmem %s1, %s215
      %p217 = scmp.lt.s32.totalorder %s19, 11
      %s218 = scalar_select %p217, %s19, 11
      %s219 = scalar_lea.vmem %s2, %s218
      %s220 = smul.u32 2, %s18
      %p221 = scmp.lt.s32.totalorder %s19, 11
      %s222 = scalar_select %p221, %s19, 11
      %p223 = scmp.lt.s32.totalorder %s220, 1
      %s224 = scalar_select %p223, %s220, 1
      %s225 = smul.addr %s222, 2
      %s226 = sadd.s32 %s224, %s225
      %s227 = smul.addr %s226, 4
      %s228 = scalar_lea.vmem %s3, %s227
      %s229 = smul.u32 2, %s18
      %v231 = vld [vmem:[%s210] sm:$0xf]
      %v232 = vld [vmem:[%s210 + $0x4] sm:$0xf]
      %v233 = vld [vmem:[%s216] sm:$0xf]
      %v234 = vld [vmem:[%s216 + $0x4] sm:$0xf]
      %v235 = vld [vmem:[%s216 + $0x8] sm:$0xf]
      %v236 = vld [vmem:[%s216 + $0xc] sm:$0xf]
      %v237 = vld [vmem:[%s219] sm:$0x1]
      %v239 = vperm.slane %v237, 0
      %v243 = vunpack.c.l.b16 %v231
      %v244 = vunpack.c.l.b16 %v232
      %v245 = vpack.c.b16 %v244, %v243
      %v250 = vunpack.c.l.b16 %v233
      %v251 = vunpack.c.l.b16 %v234
      %v252 = vunpack.c.l.b16 %v235
      %v253 = vunpack.c.l.b16 %v236
      %v254 = vpack.c.b16 %v251, %v250
      %v255 = vpack.c.b16 %v253, %v252
      %vm258 = vcmask 261120
      %v260 = vsel %vm258, %v245, 0
      %262 = vmatpush.bf16.msra.mxu0 0
      %263 = vmatpush.bf16.msra.mxu0 0
      %264 = vmatpush.bf16.msra.mxu0 0
      %265 = vmatpush.bf16.msra.mxu0 0
      %266 = vmatpush.bf16.msra.mxu0 0
      %267 = vmatpush.bf16.msra.mxu0 0
      %268 = vmatpush.bf16.msra.mxu0 %v255
      %269 = vmatpush.bf16.msra.mxu0 %v254
      %270 = vmatmul.bf16.gmra.mxu0 %v260
      %v271 = vpop.f32.mrf.mxu0
      %v272 = vadd.f32 %v239, %v271
      %v273 = vpop.f32.mrf.mxu0
      %v274 = vadd.f32 %v239, %v273
      %275 = vdwg.mxu0
      %v276 = vpack.c.bf16 %v272, %v272
      %v277 = vpack.c.bf16 %v274, %v274
      %vm278 = vcmask 60416
      %279 = vst.msk [vmem:[%s228] sm:$0xf] %vm278, %v276
      %280 = vst.msk [vmem:[%s228 + $0x4] sm:$0xf] %vm278, %v277
      %s281 = smul.u32 2, %s18
      %p282 = scmp.lt.s32.totalorder %s19, 11
      %s283 = scalar_select %p282, %s19, 11
      %p284 = scmp.lt.s32.totalorder %s281, 1
      %s285 = scalar_select %p284, %s281, 1
      %s286 = smul.addr %s283, 2
      %s287 = sadd.s32 %s285, %s286
      %s288 = smul.addr %s287, 4
      %s289 = scalar_lea.vmem %s3, %s288
      // Predicated region
      $region33: #{audio_encoder_forward.14} parent=31 // pred_check
        %p290 = pneg %p124
      $region34: #{audio_encoder_forward.14} parent=31 // pred_check_branch
        %292 = sbr.rel (%p290) target = $region36
      $region35: #{audio_encoder_forward.14} parent=31 // pred_region
        %s293 = smul.u32 2, %s18
      $region36: #{audio_encoder_forward.14} parent=31 // pred_fallthru
        _
    $region32: #{audio_encoder_forward.14} parent=5 // pred_fallthru
      _
    %p294 = scmp.le.s32.totalorder 2, %s9
    // Predicated region
    $region37: #{audio_encoder_forward.14} parent=5 // pred_check
      %p295 = pneg %p294
    $region38: #{audio_encoder_forward.14} parent=5 // pred_check_branch
      %297 = sbr.rel (%p295) target = $region40
    $region39: #{audio_encoder_forward.14} parent=5 // pred_region
      %s298 = ssub.s32 %s9, 2
      // Predicated region
      $region41: #{audio_encoder_forward.14} parent=39 // pred_check
        %p299 = pneg %p130
      $region42: #{audio_encoder_forward.14} parent=39 // pred_check_branch
        %301 = sbr.rel (%p299) target = $region44
      $region43: #{audio_encoder_forward.14} parent=39 // pred_region
        %s302 = smul.u32 2, %s20
        %p303 = scmp.lt.s32.totalorder %s21, 11
        %s304 = scalar_select %p303, %s21, 11
        %p305 = scmp.lt.s32.totalorder %s302, 1
        %s306 = scalar_select %p305, %s302, 1
        %s307 = smul.addr %s304, 2
        %s308 = sadd.s32 %s306, %s307
        %s309 = smul.addr %s308, 4
        %s310 = scalar_lea.vmem %s3, %s309
      $region44: #{audio_encoder_forward.14} parent=39 // pred_fallthru
        _
    $region40: #{audio_encoder_forward.14} parent=5 // pred_fallthru
      _
  $region6: #{audio_encoder_forward.14} parent=0 // loop_footer
    %s13 = sadd.s32 1, %s9
  $region7: #{audio_encoder_forward.14} parent=0 // loop_footer_branch
    %8 = sbr.rel target = $region3
  $region8: #{audio_encoder_forward.14} parent=0 // loop_exit
    _

// kernel: audio_encoder_forward.15
$region0: #{audio_encoder_forward.15}
  #allocation0 [shape = 'u32[]', space=smem, size = 0x4, offset = 0x4, fixed_abs, tag = 'smem constant byte address 0x4 - core index']
  #allocation1 [shape = 'u32[72,128]{1,0:T(1,128)}', space=vmem, size = 0x9000, scoped, tag = 'internal scratch']
  #allocation2 [shape = 'f32[8,1]{1,0:T(8,128)}', space=vmem, size = 0x1000, scoped, tag = 'scratch operand']
  #allocation3 [shape = 'f32[8,1]{1,0:T(8,128)}', space=vmem, size = 0x1000, scoped, tag = 'scratch operand']
  #allocation4 [shape = 'f32[8,8]{1,0:T(8,128)}', space=vmem, size = 0x1000, scoped, tag = 'scratch operand']
  %s0 = inlined_call_operand.vmem [shape: bf16[3,4,2,8,8], index: 0, kind: input, shape index: {}, may-alias: {0,1,2}]
  %s1 = inlined_call_operand.vmem [shape: bf16[3,4,2,8,8], index: 1, kind: input, shape index: {}, may-alias: {0,1,2}]
  %s2 = inlined_call_operand.vmem [shape: bf16[3,4,2,8,8], index: 2, kind: input, shape index: {}, may-alias: {0,1,2}]
  %s3 = inlined_call_operand.vmem [shape: bf16[2,4,8,8], index: 3, kind: output, shape index: {}]
  %s4 = sld [smem:[#allocation0]]
  $region53: #{audio_encoder_forward.15} parent=0
    _
  %s6 = ssub.s32 1, %s4
  %s7 = scalar_select 0, %s6, %s4
  loop: start=0, step=1, limit=10
  $region2: #{audio_encoder_forward.15} parent=0 // loop_pre_header
    _
  $region3: #{audio_encoder_forward.15} parent=0 // loop_header
    %s9 = sphi 0, %s13
    %p10 = scmp.ge.s32.totalorder %s9, 10
    %s16 = sphi 0, %s42
    %s17 = sphi 0, %s38
    %s18 = sphi 0, %s34
    %s19 = sphi 0, %s30
    %s20 = sphi 0, %s16
    %s21 = sphi 0, %s17
    %s22 = sphi 0, %s18
    %s23 = sphi 0, %s19
    %s24 = sphi 0, %s20
    %s25 = sphi 0, %s21
    %s26 = sphi 0, %s22
    %s27 = sphi 0, %s23
    %s49 = sphi 0, %s51
    %s52 = sphi 0, %s49
    %s53 = sphi 0, %s52
    %s69 = sphi 0, %s53
    %s79 = sphi 0, %s81
    %s82 = sphi 0, %s79
    %s83 = sphi 0, %s82
    %s99 = sphi 0, %s83
    %s109 = sphi 0, %s111
    %s112 = sphi 0, %s109
    %s113 = sphi 0, %s112
    %s129 = sphi 0, %s113
    %s139 = sphi 0, %s141
    %s142 = sphi 0, %s139
    %s143 = sphi 0, %s142
    %s159 = sphi 0, %s143
  $region4: #{audio_encoder_forward.15} parent=0 // loop_header_branch
    %12 = sbr.rel (%p10) target = $region8
  $region5: #{audio_encoder_forward.15} parent=0 // loop_body
    %s14 = ssub.s32 %s9, 1
    %s15 = ssub.s32 %s9, 2
    %s28 = sadd.s32 1, %s19
    %p29 = scmp.ge.s32.totalorder %s28, 1
    %s30 = scalar_select %p29, 0, %s28
    %s31 = sadd.s32 1, %s18
    %s32 = scalar_select %p29, %s31, %s18
    %p33 = scmp.ge.s32.totalorder %s32, 1
    %s34 = scalar_select %p33, 0, %s32
    %s35 = sadd.s32 1, %s17
    %s36 = scalar_select %p33, %s35, %s17
    %p37 = scmp.ge.s32.totalorder %s36, 4
    %s38 = scalar_select %p37, 0, %s36
    %s39 = sadd.s32 1, %s16
    %s40 = scalar_select %p37, %s39, %s16
    %p41 = scmp.ge.s32.totalorder %s40, 2
    %s42 = scalar_select %p41, 0, %s40
    %s43 = ssub.s32 %s17, %s38
    %s44 = ssub.s32 %s16, %s42
    %s45 = sor.u32 %s43, %s44
    %s46 = ssub.s32 %s18, %s34
    %s47 = sor.u32 %s45, %s46
    %p48 = scmp.eq.s32.totalorder %s47, 0
    %s50 = sadd.s32 %s49, 1
    %s51 = scalar_select %p48, %s49, %s50
    %p54 = pneg %p48
    %p55 = scmp.eq.s32.totalorder %s9, 7
    %p56 = por %p54, %p55
    %p57 = scmp.ne.s32.totalorder %s49, %s52
    %p58 = scmp.eq.s32.totalorder %s9, 0
    %p59 = por %p57, %p58
    %p60 = scmp.ne.s32.totalorder %s49, %s52
    %p61 = scmp.eq.s32.totalorder %s14, 7
    %p62 = por %p60, %p61
    %p63 = scmp.ne.s32.totalorder %s52, %s53
    %p64 = scmp.eq.s32.totalorder %s14, 0
    %p65 = por %p63, %p64
    %p66 = scmp.ne.s32.totalorder %s52, %s53
    %p67 = scmp.eq.s32.totalorder %s15, 7
    %p68 = por %p66, %p67
    %p70 = scmp.ne.s32.totalorder %s53, %s69
    %p71 = scmp.eq.s32.totalorder %s15, 0
    %p72 = por %p70, %p71
    %s73 = ssub.s32 %s17, %s38
    %s74 = ssub.s32 %s16, %s42
    %s75 = sor.u32 %s73, %s74
    %s76 = ssub.s32 %s19, %s30
    %s77 = sor.u32 %s75, %s76
    %p78 = scmp.eq.s32.totalorder %s77, 0
    %s80 = sadd.s32 %s79, 1
    %s81 = scalar_select %p78, %s79, %s80
    %p84 = pneg %p78
    %p85 = scmp.eq.s32.totalorder %s9, 7
    %p86 = por %p84, %p85
    %p87 = scmp.ne.s32.totalorder %s79, %s82
    %p88 = scmp.eq.s32.totalorder %s9, 0
    %p89 = por %p87, %p88
    %p90 = scmp.ne.s32.totalorder %s79, %s82
    %p91 = scmp.eq.s32.totalorder %s14, 7
    %p92 = por %p90, %p91
    %p93 = scmp.ne.s32.totalorder %s82, %s83
    %p94 = scmp.eq.s32.totalorder %s14, 0
    %p95 = por %p93, %p94
    %p96 = scmp.ne.s32.totalorder %s82, %s83
    %p97 = scmp.eq.s32.totalorder %s15, 7
    %p98 = por %p96, %p97
    %p100 = scmp.ne.s32.totalorder %s83, %s99
    %p101 = scmp.eq.s32.totalorder %s15, 0
    %p102 = por %p100, %p101
    %s103 = ssub.s32 %s17, %s38
    %s104 = ssub.s32 %s16, %s42
    %s105 = sor.u32 %s103, %s104
    %s106 = ssub.s32 %s19, %s30
    %s107 = sor.u32 %s105, %s106
    %p108 = scmp.eq.s32.totalorder %s107, 0
    %s110 = sadd.s32 %s109, 1
    %s111 = scalar_select %p108, %s109, %s110
    %p114 = pneg %p108
    %p115 = scmp.eq.s32.totalorder %s9, 7
    %p116 = por %p114, %p115
    %p117 = scmp.ne.s32.totalorder %s109, %s112
    %p118 = scmp.eq.s32.totalorder %s9, 0
    %p119 = por %p117, %p118
    %p120 = scmp.ne.s32.totalorder %s109, %s112
    %p121 = scmp.eq.s32.totalorder %s14, 7
    %p122 = por %p120, %p121
    %p123 = scmp.ne.s32.totalorder %s112, %s113
    %p124 = scmp.eq.s32.totalorder %s14, 0
    %p125 = por %p123, %p124
    %p126 = scmp.ne.s32.totalorder %s112, %s113
    %p127 = scmp.eq.s32.totalorder %s15, 7
    %p128 = por %p126, %p127
    %p130 = scmp.ne.s32.totalorder %s113, %s129
    %p131 = scmp.eq.s32.totalorder %s15, 0
    %p132 = por %p130, %p131
    %s133 = ssub.s32 %s16, %s42
    %s134 = ssub.s32 %s17, %s38
    %s135 = sor.u32 %s133, %s134
    %s136 = ssub.s32 %s18, %s34
    %s137 = sor.u32 %s135, %s136
    %p138 = scmp.eq.s32.totalorder %s137, 0
    %s140 = sadd.s32 %s139, 1
    %s141 = scalar_select %p138, %s139, %s140
    %p144 = pneg %p138
    %p145 = scmp.eq.s32.totalorder %s9, 7
    %p146 = por %p144, %p145
    %p147 = scmp.ne.s32.totalorder %s139, %s142
    %p148 = scmp.eq.s32.totalorder %s9, 0
    %p149 = por %p147, %p148
    %p150 = scmp.ne.s32.totalorder %s139, %s142
    %p151 = scmp.eq.s32.totalorder %s14, 7
    %p152 = por %p150, %p151
    %p153 = scmp.ne.s32.totalorder %s142, %s143
    %p154 = scmp.eq.s32.totalorder %s14, 0
    %p155 = por %p153, %p154
    %p156 = scmp.ne.s32.totalorder %s142, %s143
    %p157 = scmp.eq.s32.totalorder %s15, 7
    %p158 = por %p156, %p157
    %p160 = scmp.ne.s32.totalorder %s143, %s159
    %p161 = scmp.eq.s32.totalorder %s15, 0
    %p162 = por %p160, %p161
    %p163 = scmp.le.s32.totalorder 1, %s9
    %p164 = scmp.lt.s32.totalorder %s9, 9
    %p165 = pnand %p163, %p164
    %p166 = pneg %p165
    // Predicated region
    $region9: #{audio_encoder_forward.15} parent=5 // pred_check
      _
    $region10: #{audio_encoder_forward.15} parent=5 // pred_check_branch
      %168 = sbr.rel (%p165) target = $region12
    $region11: #{audio_encoder_forward.15} parent=5 // pred_region
      %s169 = ssub.s32 %s9, 1
    $region12: #{audio_encoder_forward.15} parent=5 // pred_fallthru
      _
    %p170 = scmp.lt.s32.totalorder %s9, 8
    // Predicated region
    $region13: #{audio_encoder_forward.15} parent=5 // pred_check
      %p171 = pneg %p170
    $region14: #{audio_encoder_forward.15} parent=5 // pred_check_branch
      %173 = sbr.rel (%p171) target = $region16
    $region15: #{audio_encoder_forward.15} parent=5 // pred_region
      // Predicated region
      $region17: #{audio_encoder_forward.15} parent=15 // pred_check
        %p174 = pneg %p59
      $region18: #{audio_encoder_forward.15} parent=15 // pred_check_branch
        %176 = sbr.rel (%p174) target = $region20
      $region19: #{audio_encoder_forward.15} parent=15 // pred_region
        %p177 = scmp.lt.s32.totalorder %s17, 3
        %s178 = scalar_select %p177, %s17, 3
        %p179 = scmp.lt.s32.totalorder %s16, 1
        %s180 = scalar_select %p179, %s16, 1
        %p181 = scmp.lt.s32.totalorder %s18, 0
        %s182 = scalar_select %p181, %s18, 0
        %s183 = sadd.s32 %s182, %s180
        %s184 = smul.addr %s178, 2
        %s185 = sadd.s32 %s183, %s184
        %s186 = smul.addr %s185, 4
        %s187 = scalar_lea.vmem %s0, %s186
      $region20: #{audio_encoder_forward.15} parent=15 // pred_fallthru
        _
      // Predicated region
      $region21: #{audio_encoder_forward.15} parent=15 // pred_check
        %p188 = pneg %p89
      $region22: #{audio_encoder_forward.15} parent=15 // pred_check_branch
        %190 = sbr.rel (%p188) target = $region24
      $region23: #{audio_encoder_forward.15} parent=15 // pred_region
        %p191 = scmp.lt.s32.totalorder %s17, 3
        %s192 = scalar_select %p191, %s17, 3
        %p193 = scmp.lt.s32.totalorder %s16, 1
        %s194 = scalar_select %p193, %s16, 1
        %p195 = scmp.lt.s32.totalorder %s19, 0
        %s196 = scalar_select %p195, %s19, 0
        %s197 = sadd.s32 %s196, %s194
        %s198 = smul.addr %s192, 2
        %s199 = sadd.s32 %s197, %s198
        %s200 = sadd.s32 %s199, 8
        %s201 = smul.addr %s200, 4
        %s202 = scalar_lea.vmem %s1, %s201
      $region24: #{audio_encoder_forward.15} parent=15 // pred_fallthru
        _
      // Predicated region
      $region25: #{audio_encoder_forward.15} parent=15 // pred_check
        %p203 = pneg %p119
      $region26: #{audio_encoder_forward.15} parent=15 // pred_check_branch
        %205 = sbr.rel (%p203) target = $region28
      $region27: #{audio_encoder_forward.15} parent=15 // pred_region
        %p206 = scmp.lt.s32.totalorder %s17, 3
        %s207 = scalar_select %p206, %s17, 3
        %p208 = scmp.lt.s32.totalorder %s16, 1
        %s209 = scalar_select %p208, %s16, 1
        %p210 = scmp.lt.s32.totalorder %s19, 0
        %s211 = scalar_select %p210, %s19, 0
        %s212 = sadd.s32 %s211, %s209
        %s213 = smul.addr %s207, 2
        %s214 = sadd.s32 %s212, %s213
        %s215 = sadd.s32 %s214, 16
        %s216 = smul.addr %s215, 4
        %s217 = scalar_lea.vmem %s2, %s216
      $region28: #{audio_encoder_forward.15} parent=15 // pred_fallthru
        _
    $region16: #{audio_encoder_forward.15} parent=5 // pred_fallthru
      _
    %p218 = scmp.le.s32.totalorder 1, %s9
    %p219 = scmp.lt.s32.totalorder %s9, 9
    %p220 = pnand %p218, %p219
    %p221 = pneg %p220
    // Predicated region
    $region29: #{audio_encoder_forward.15} parent=5 // pred_check
      _
    $region30: #{audio_encoder_forward.15} parent=5 // pred_check_branch
      %223 = sbr.rel (%p220) target = $region32
    $region31: #{audio_encoder_forward.15} parent=5 // pred_region
      %s224 = ssub.s32 %s9, 1
      %p225 = scmp.lt.s32.totalorder %s21, 3
      %s226 = scalar_select %p225, %s21, 3
      %p227 = scmp.lt.s32.totalorder %s20, 1
      %s228 = scalar_select %p227, %s20, 1
      %p229 = scmp.lt.s32.totalorder %s22, 0
      %s230 = scalar_select %p229, %s22, 0
      %s231 = sadd.s32 %s230, %s228
      %s232 = smul.addr %s226, 2
      %s233 = sadd.s32 %s231, %s232
      %s234 = smul.addr %s233, 4
      %s235 = scalar_lea.vmem %s0, %s234
      %p236 = pneg %p65
      %p237 = pneg %p62
      %p238 = scmp.lt.s32.totalorder %s21, 3
      %s239 = scalar_select %p238, %s21, 3
      %p240 = scmp.lt.s32.totalorder %s20, 1
      %s241 = scalar_select %p240, %s20, 1
      %p242 = scmp.lt.s32.totalorder %s23, 0
      %s243 = scalar_select %p242, %s23, 0
      %s244 = sadd.s32 %s243, %s241
      %s245 = smul.addr %s239, 2
      %s246 = sadd.s32 %s244, %s245
      %s247 = sadd.s32 %s246, 8
      %s248 = smul.addr %s247, 4
      %s249 = scalar_lea.vmem %s1, %s248
      %p250 = pneg %p95
      %p251 = pneg %p92
      %p252 = scmp.lt.s32.totalorder %s21, 3
      %s253 = scalar_select %p252, %s21, 3
      %p254 = scmp.lt.s32.totalorder %s20, 1
      %s255 = scalar_select %p254, %s20, 1
      %p256 = scmp.lt.s32.totalorder %s23, 0
      %s257 = scalar_select %p256, %s23, 0
      %s258 = sadd.s32 %s257, %s255
      %s259 = smul.addr %s253, 2
      %s260 = sadd.s32 %s258, %s259
      %s261 = sadd.s32 %s260, 16
      %s262 = smul.addr %s261, 4
      %s263 = scalar_lea.vmem %s2, %s262
      %p264 = pneg %p125
      %p265 = pneg %p122
      %p266 = pneg %p155
      %p267 = pneg %p152
      %p268 = scmp.lt.s32.totalorder %s20, 1
      %s269 = scalar_select %p268, %s20, 1
      %p270 = scmp.lt.s32.totalorder %s21, 3
      %s271 = scalar_select %p270, %s21, 3
      %p272 = scmp.lt.s32.totalorder %s22, 0
      %s273 = scalar_select %p272, %s22, 0
      %s274 = sadd.s32 %s273, %s271
      %s275 = smul.addr %s269, 4
      %s276 = sadd.s32 %s274, %s275
      %s277 = smul.addr %s276, 4
      %s278 = scalar_lea.vmem %s3, %s277
      %p279 = scmp.lt.s32.totalorder %s21, 3
      %s280 = scalar_select %p279, %s21, 3
      %p281 = scmp.lt.s32.totalorder %s20, 1
      %s282 = scalar_select %p281, %s20, 1
      %p283 = scmp.lt.s32.totalorder %s22, 0
      %s284 = scalar_select %p283, %s22, 0
      %s285 = sadd.s32 %s284, %s282
      %s286 = smul.addr %s280, 2
      %s287 = sadd.s32 %s285, %s286
      %s288 = smul.addr %s287, 4
      %s289 = scalar_lea.vmem %s0, %s288
      %p290 = scmp.lt.s32.totalorder %s21, 3
      %s291 = scalar_select %p290, %s21, 3
      %p292 = scmp.lt.s32.totalorder %s20, 1
      %s293 = scalar_select %p292, %s20, 1
      %p294 = scmp.lt.s32.totalorder %s23, 0
      %s295 = scalar_select %p294, %s23, 0
      %s296 = sadd.s32 %s295, %s293
      %s297 = smul.addr %s291, 2
      %s298 = sadd.s32 %s296, %s297
      %s299 = sadd.s32 %s298, 8
      %s300 = smul.addr %s299, 4
      %s301 = scalar_lea.vmem %s1, %s300
      %p302 = scmp.lt.s32.totalorder %s21, 3
      %s303 = scalar_select %p302, %s21, 3
      %p304 = scmp.lt.s32.totalorder %s20, 1
      %s305 = scalar_select %p304, %s20, 1
      %p306 = scmp.lt.s32.totalorder %s23, 0
      %s307 = scalar_select %p306, %s23, 0
      %s308 = sadd.s32 %s307, %s305
      %s309 = smul.addr %s303, 2
      %s310 = sadd.s32 %s308, %s309
      %s311 = sadd.s32 %s310, 16
      %s312 = smul.addr %s311, 4
      %s313 = scalar_lea.vmem %s2, %s312
      %p314 = scmp.lt.s32.totalorder %s20, 1
      %s315 = scalar_select %p314, %s20, 1
      %p316 = scmp.lt.s32.totalorder %s21, 3
      %s317 = scalar_select %p316, %s21, 3
      %p318 = scmp.lt.s32.totalorder %s22, 0
      %s319 = scalar_select %p318, %s22, 0
      %s320 = sadd.s32 %s319, %s317
      %s321 = smul.addr %s315, 4
      %s322 = sadd.s32 %s320, %s321
      %s323 = smul.addr %s322, 4
      %s324 = scalar_lea.vmem %s3, %s323
      %p326 = scmp.eq.s32.totalorder %s23, 0
      // Predicated region
      $region33: #{audio_encoder_forward.15} parent=31 // pred_check
        %p327 = pneg %p326
      $region34: #{audio_encoder_forward.15} parent=31 // pred_check_branch
        %329 = sbr.rel (%p327) target = $region36
      $region35: #{audio_encoder_forward.15} parent=31 // pred_region
        %vm330 = vcmask 7168
        %331 = vst.msk [vmem:[#allocation2] sm:$0xff] %vm330, -inf
        %332 = vst.msk [vmem:[#allocation3] sm:$0xff] %vm330, 0.0
        %vm333 = vcmask 64512
        %334 = vst.msk [vmem:[#allocation4] sm:$0xff] %vm333, 0.0
      $region36: #{audio_encoder_forward.15} parent=31 // pred_fallthru
        _
      %v335 = vld [vmem:[%s289] sm:$0xf]
      %v336 = vld [vmem:[%s301] sm:$0xf]
      %v337 = vld [vmem:[%s313] sm:$0xf]
      %vm338 = vcmask 64512
      %v340 = vsel %vm338, %v335, 0
      %v343 = vsel %vm338, %v336, 0
      %345 = vmatpush.bf16.xpose.msra.mxu0 0
      %346 = vmatpush.bf16.xpose.msra.mxu0 0
      %347 = vmatpush.bf16.xpose.msra.mxu0 0
      %348 = vmatpush.bf16.xpose.msra.mxu0 0
      %349 = vmatpush.bf16.xpose.msra.mxu0 0
      %350 = vmatpush.bf16.xpose.msra.mxu0 0
      %351 = vmatpush.bf16.xpose.msra.mxu0 0
      %352 = vmatpush.bf16.xpose.msra.mxu0 %v343
      %353 = vmatmul.bf16.gmra.mxu0 %v340
      %v354 = vpop.f32.mrf.mxu0
      %v355 = vadd.f32 0.0, %v354
      %v356 = vpop.f32.mrf.mxu0
      %357 = vdwg.mxu0
      %v358 = vld [vmem:[#allocation2] sm:$0xff]
      %v359 = vsel %vm338, %v355, -inf
      %360 = vmax.xlane.f32.xlu0 %v359
      %v361 = vpop.xlane.xlu0 %360
      %v362 = vmax.f32 %v358, %v361
      %v363 = vsub.f32 %v358, %v362
      %v364 = vmul.f32 %v363, 1.442695
      %v365 = vpow.pop %v364
      %367 = vset.pattern.permute.xlu0 0
      %368 = vperm.xlu0 %367, %v362
      %v369 = vpop.permute.xlu0 %368
      %v371 = vsub.f32 %v355, %v369
      %v372 = vmul.f32 %v371, 1.442695
      %v373 = vpow.pop %v372
      %v374 = vld [vmem:[#allocation3] sm:$0xff]
      %v375 = vmul.f32 %v365, %v374
      %v376 = vsel %vm338, %v373, 0.0
      %377 = vadd.xlane.f32.xlu0 %v376
      %v378 = vpop.xlane.xlu0 %377
      %v379 = vadd.f32 %v375, %v378
      %vm380 = vcmask 7168
      %381 = vst.msk [vmem:[#allocation3] sm:$0xff] %vm380, %v379
      %v382 = vld [vmem:[#allocation4] sm:$0xff]
      %384 = vset.pattern.permute.xlu0 0
      %385 = vperm.xlu0 %384, %v365
      %v386 = vpop.permute.xlu0 %385
      %v388 = vmul.f32 %v386, %v382
      %v389 = vpack.c.bf16 %v373, %v373
      %v391 = vsel %vm338, %v389, 0
      %vm393 = vcmask 1043456
      %v395 = vsel %vm393, %v337, 0
      %397 = vmatpush.bf16.msra.mxu0 0
      %398 = vmatpush.bf16.msra.mxu0 0
      %399 = vmatpush.bf16.msra.mxu0 0
      %400 = vmatpush.bf16.msra.mxu0 0
      %401 = vmatpush.bf16.msra.mxu0 0
      %402 = vmatpush.bf16.msra.mxu0 0
      %403 = vmatpush.bf16.msra.mxu0 0
      %404 = vmatpush.bf16.msra.mxu0 %v395
      %405 = vmatmul.bf16.gmra.mxu0 %v391
      %v406 = vpop.f32.mrf.mxu0
      %v407 = vadd.f32 0.0, %v406
      %v408 = vpop.f32.mrf.mxu0
      %409 = vdwg.mxu0
      %v410 = vadd.f32 %v388, %v407
      %411 = vst.msk [vmem:[#allocation4] sm:$0xff] %vm338, %v410
      %412 = vst.msk [vmem:[#allocation2] sm:$0xff] %vm380, %v362
      // Predicated region
      $region37: #{audio_encoder_forward.15} parent=31 // pred_check
        %p413 = pneg %p326
      $region38: #{audio_encoder_forward.15} parent=31 // pred_check_branch
        %415 = sbr.rel (%p413) target = $region40
      $region39: #{audio_encoder_forward.15} parent=31 // pred_region
        %v416 = vld [vmem:[#allocation4] sm:$0xff]
        %v417 = vld [vmem:[#allocation3] sm:$0xff]
        %v418 = vrcp.pop %v417
        %420 = vset.pattern.permute.xlu0 0
        %421 = vperm.xlu0 %420, %v418
        %v422 = vpop.permute.xlu0 %421
        %v424 = vmul.f32 %v416, %v422
        %v425 = vpack.c.bf16 %v424, %v424
        %vm426 = vcmask 60416
        %427 = vst.msk [vmem:[%s324] sm:$0xf] %vm426, %v425
      $region40: #{audio_encoder_forward.15} parent=31 // pred_fallthru
        _
      %p428 = scmp.lt.s32.totalorder %s20, 1
      %s429 = scalar_select %p428, %s20, 1
      %p430 = scmp.lt.s32.totalorder %s21, 3
      %s431 = scalar_select %p430, %s21, 3
      %p432 = scmp.lt.s32.totalorder %s22, 0
      %s433 = scalar_select %p432, %s22, 0
      %s434 = sadd.s32 %s433, %s431
      %s435 = smul.addr %s429, 4
      %s436 = sadd.s32 %s434, %s435
      %s437 = smul.addr %s436, 4
      %s438 = scalar_lea.vmem %s3, %s437
      // Predicated region
      $region41: #{audio_encoder_forward.15} parent=31 // pred_check
        %p439 = pneg %p152
      $region42: #{audio_encoder_forward.15} parent=31 // pred_check_branch
        %441 = sbr.rel (%p439) target = $region44
      $region43: #{audio_encoder_forward.15} parent=31 // pred_region
        _
      $region44: #{audio_encoder_forward.15} parent=31 // pred_fallthru
        _
    $region32: #{audio_encoder_forward.15} parent=5 // pred_fallthru
      _
    %p442 = scmp.le.s32.totalorder 2, %s9
    // Predicated region
    $region45: #{audio_encoder_forward.15} parent=5 // pred_check
      %p443 = pneg %p442
    $region46: #{audio_encoder_forward.15} parent=5 // pred_check_branch
      %445 = sbr.rel (%p443) target = $region48
    $region47: #{audio_encoder_forward.15} parent=5 // pred_region
      %s446 = ssub.s32 %s9, 2
      // Predicated region
      $region49: #{audio_encoder_forward.15} parent=47 // pred_check
        %p447 = pneg %p158
      $region50: #{audio_encoder_forward.15} parent=47 // pred_check_branch
        %449 = sbr.rel (%p447) target = $region52
      $region51: #{audio_encoder_forward.15} parent=47 // pred_region
        %p450 = scmp.lt.s32.totalorder %s24, 1
        %s451 = scalar_select %p450, %s24, 1
        %p452 = scmp.lt.s32.totalorder %s25, 3
        %s453 = scalar_select %p452, %s25, 3
        %p454 = scmp.lt.s32.totalorder %s26, 0
        %s455 = scalar_select %p454, %s26, 0
        %s456 = sadd.s32 %s455, %s453
        %s457 = smul.addr %s451, 4
        %s458 = sadd.s32 %s456, %s457
        %s459 = smul.addr %s458, 4
        %s460 = scalar_lea.vmem %s3, %s459
      $region52: #{audio_encoder_forward.15} parent=47 // pred_fallthru
        _
    $region48: #{audio_encoder_forward.15} parent=5 // pred_fallthru
      _
  $region6: #{audio_encoder_forward.15} parent=0 // loop_footer
    %s13 = sadd.s32 1, %s9
  $region7: #{audio_encoder_forward.15} parent=0 // loop_footer_branch
    %8 = sbr.rel target = $region3
  $region8: #{audio_encoder_forward.15} parent=0 // loop_exit
    _

// kernel: audio_encoder_forward.16
$region0: #{audio_encoder_forward.16}
  #allocation0 [shape = 'u32[]', space=smem, size = 0x4, offset = 0x4, fixed_abs, tag = 'smem constant byte address 0x4 - core index']
  #allocation1 [shape = 'u32[72,128]{1,0:T(1,128)}', space=vmem, size = 0x9000, scoped, tag = 'internal scratch']
  #allocation2 [shape = 'f32[8,32]{1,0:T(8,128)}', space=vmem, size = 0x1000, scoped, tag = 'scratch operand']
  %s0 = inlined_call_operand.vmem [shape: bf16[2,4,8,8], index: 0, kind: input, shape index: {}]
  %s1 = inlined_call_operand.vmem [shape: bf16[4,8,32], index: 1, kind: input, shape index: {}]
  %s2 = inlined_call_operand.vmem [shape: f32[1,32], index: 2, kind: input, shape index: {}]
  %s3 = inlined_call_operand.vmem [shape: bf16[2,8,32], index: 3, kind: input, shape index: {}]
  %s4 = inlined_call_operand.vmem [shape: f32[1,32], index: 4, kind: input, shape index: {}]
  %s5 = inlined_call_operand.vmem [shape: f32[1,32], index: 5, kind: input, shape index: {}]
  %s6 = inlined_call_operand.vmem [shape: bf16[2,8,32], index: 6, kind: output, shape index: {}]
  %s7 = sld [smem:[#allocation0]]
  $region65: #{audio_encoder_forward.16} parent=0
    _
  %s9 = ssub.s32 1, %s7
  %s10 = scalar_select 0, %s9, %s7
  loop: start=0, step=1, limit=10
  $region2: #{audio_encoder_forward.16} parent=0 // loop_pre_header
    _
  $region3: #{audio_encoder_forward.16} parent=0 // loop_header
    %s12 = sphi 0, %s16
    %p13 = scmp.ge.s32.totalorder %s12, 10
    %s19 = sphi 0, %s38
    %s20 = sphi 0, %s34
    %s21 = sphi 0, %s30
    %s22 = sphi 0, %s19
    %s23 = sphi 0, %s20
    %s24 = sphi 0, %s21
    %s25 = sphi 0, %s22
    %s26 = sphi 0, %s23
    %s27 = sphi 0, %s24
    %s45 = sphi 0, %s47
    %s48 = sphi 0, %s45
    %s49 = sphi 0, %s48
    %s65 = sphi 0, %s49
    %s71 = sphi 0, %s73
    %s74 = sphi 0, %s71
    %s75 = sphi 0, %s74
    %s91 = sphi 0, %s75
    %s95 = sphi 0, %s95
    %s97 = sphi 0, %s95
    %s98 = sphi 0, %s97
    %s112 = sphi 0, %s98
    %s120 = sphi 0, %s122
    %s123 = sphi 0, %s120
    %s124 = sphi 0, %s123
    %s140 = sphi 0, %s124
    %s144 = sphi 0, %s144
    %s146 = sphi 0, %s144
    %s147 = sphi 0, %s146
    %s161 = sphi 0, %s147
    %s165 = sphi 0, %s165
    %s167 = sphi 0, %s165
    %s168 = sphi 0, %s167
    %s182 = sphi 0, %s168
    %s190 = sphi 0, %s192
    %s193 = sphi 0, %s190
    %s194 = sphi 0, %s193
    %s210 = sphi 0, %s194
  $region4: #{audio_encoder_forward.16} parent=0 // loop_header_branch
    %15 = sbr.rel (%p13) target = $region8
  $region5: #{audio_encoder_forward.16} parent=0 // loop_body
    %s17 = ssub.s32 %s12, 1
    %s18 = ssub.s32 %s12, 2
    %s28 = sadd.s32 1, %s21
    %p29 = scmp.ge.s32.totalorder %s28, 4
    %s30 = scalar_select %p29, 0, %s28
    %s31 = sadd.s32 1, %s20
    %s32 = scalar_select %p29, %s31, %s20
    %p33 = scmp.ge.s32.totalorder %s32, 1
    %s34 = scalar_select %p33, 0, %s32
    %s35 = sadd.s32 1, %s19
    %s36 = scalar_select %p33, %s35, %s19
    %p37 = scmp.ge.s32.totalorder %s36, 2
    %s38 = scalar_select %p37, 0, %s36
    %s39 = ssub.s32 %s19, %s38
    %s40 = ssub.s32 %s21, %s30
    %s41 = sor.u32 %s39, %s40
    %s42 = ssub.s32 %s20, %s34
    %s43 = sor.u32 %s41, %s42
    %p44 = scmp.eq.s32.totalorder %s43, 0
    %s46 = sadd.s32 %s45, 1
    %s47 = scalar_select %p44, %s45, %s46
    %p50 = pneg %p44
    %p51 = scmp.eq.s32.totalorder %s12, 7
    %p52 = por %p50, %p51
    %p53 = scmp.ne.s32.totalorder %s45, %s48
    %p54 = scmp.eq.s32.totalorder %s12, 0
    %p55 = por %p53, %p54
    %p56 = scmp.ne.s32.totalorder %s45, %s48
    %p57 = scmp.eq.s32.totalorder %s17, 7
    %p58 = por %p56, %p57
    %p59 = scmp.ne.s32.totalorder %s48, %s49
    %p60 = scmp.eq.s32.totalorder %s17, 0
    %p61 = por %p59, %p60
    %p62 = scmp.ne.s32.totalorder %s48, %s49
    %p63 = scmp.eq.s32.totalorder %s18, 7
    %p64 = por %p62, %p63
    %p66 = scmp.ne.s32.totalorder %s49, %s65
    %p67 = scmp.eq.s32.totalorder %s18, 0
    %p68 = por %p66, %p67
    %s69 = ssub.s32 %s21, %s30
    %p70 = scmp.eq.s32.totalorder %s69, 0
    %s72 = sadd.s32 %s71, 1
    %s73 = scalar_select %p70, %s71, %s72
    %p76 = pneg %p70
    %p77 = scmp.eq.s32.totalorder %s12, 7
    %p78 = por %p76, %p77
    %p79 = scmp.ne.s32.totalorder %s71, %s74
    %p80 = scmp.eq.s32.totalorder %s12, 0
    %p81 = por %p79, %p80
    %p82 = scmp.ne.s32.totalorder %s71, %s74
    %p83 = scmp.eq.s32.totalorder %s17, 7
    %p84 = por %p82, %p83
    %p85 = scmp.ne.s32.totalorder %s74, %s75
    %p86 = scmp.eq.s32.totalorder %s17, 0
    %p87 = por %p85, %p86
    %p88 = scmp.ne.s32.totalorder %s74, %s75
    %p89 = scmp.eq.s32.totalorder %s18, 7
    %p90 = por %p88, %p89
    %p92 = scmp.ne.s32.totalorder %s75, %s91
    %p93 = scmp.eq.s32.totalorder %s18, 0
    %p94 = por %p92, %p93
    %s96 = sadd.s32 %s95, 1
    %p99 = scmp.eq.s32.totalorder %s12, 7
    %p100 = scmp.ne.s32.totalorder %s95, %s97
    %p101 = scmp.eq.s32.totalorder %s12, 0
    %p102 = por %p100, %p101
    %p103 = scmp.ne.s32.totalorder %s95, %s97
    %p104 = scmp.eq.s32.totalorder %s17, 7
    %p105 = por %p103, %p104
    %p106 = scmp.ne.s32.totalorder %s97, %s98
    %p107 = scmp.eq.s32.totalorder %s17, 0
    %p108 = por %p106, %p107
    %p109 = scmp.ne.s32.totalorder %s97, %s98
    %p110 = scmp.eq.s32.totalorder %s18, 7
    %p111 = por %p109, %p110
    %p113 = scmp.ne.s32.totalorder %s98, %s112
    %p114 = scmp.eq.s32.totalorder %s18, 0
    %p115 = por %p113, %p114
    %s116 = ssub.s32 %s19, %s38
    %s117 = ssub.s32 %s20, %s34
    %s118 = sor.u32 %s116, %s117
    %p119 = scmp.eq.s32.totalorder %s118, 0
    %s121 = sadd.s32 %s120, 1
    %s122 = scalar_select %p119, %s120, %s121
    %p125 = pneg %p119
    %p126 = scmp.eq.s32.totalorder %s12, 7
    %p127 = por %p125, %p126
    %p128 = scmp.ne.s32.totalorder %s120, %s123
    %p129 = scmp.eq.s32.totalorder %s12, 0
    %p130 = por %p128, %p129
    %p131 = scmp.ne.s32.totalorder %s120, %s123
    %p132 = scmp.eq.s32.totalorder %s17, 7
    %p133 = por %p131, %p132
    %p134 = scmp.ne.s32.totalorder %s123, %s124
    %p135 = scmp.eq.s32.totalorder %s17, 0
    %p136 = por %p134, %p135
    %p137 = scmp.ne.s32.totalorder %s123, %s124
    %p138 = scmp.eq.s32.totalorder %s18, 7
    %p139 = por %p137, %p138
    %p141 = scmp.ne.s32.totalorder %s124, %s140
    %p142 = scmp.eq.s32.totalorder %s18, 0
    %p143 = por %p141, %p142
    %s145 = sadd.s32 %s144, 1
    %p148 = scmp.eq.s32.totalorder %s12, 7
    %p149 = scmp.ne.s32.totalorder %s144, %s146
    %p150 = scmp.eq.s32.totalorder %s12, 0
    %p151 = por %p149, %p150
    %p152 = scmp.ne.s32.totalorder %s144, %s146
    %p153 = scmp.eq.s32.totalorder %s17, 7
    %p154 = por %p152, %p153
    %p155 = scmp.ne.s32.totalorder %s146, %s147
    %p156 = scmp.eq.s32.totalorder %s17, 0
    %p157 = por %p155, %p156
    %p158 = scmp.ne.s32.totalorder %s146, %s147
    %p159 = scmp.eq.s32.totalorder %s18, 7
    %p160 = por %p158, %p159
    %p162 = scmp.ne.s32.totalorder %s147, %s161
    %p163 = scmp.eq.s32.totalorder %s18, 0
    %p164 = por %p162, %p163
    %s166 = sadd.s32 %s165, 1
    %p169 = scmp.eq.s32.totalorder %s12, 7
    %p170 = scmp.ne.s32.totalorder %s165, %s167
    %p171 = scmp.eq.s32.totalorder %s12, 0
    %p172 = por %p170, %p171
    %p173 = scmp.ne.s32.totalorder %s165, %s167
    %p174 = scmp.eq.s32.totalorder %s17, 7
    %p175 = por %p173, %p174
    %p176 = scmp.ne.s32.totalorder %s167, %s168
    %p177 = scmp.eq.s32.totalorder %s17, 0
    %p178 = por %p176, %p177
    %p179 = scmp.ne.s32.totalorder %s167, %s168
    %p180 = scmp.eq.s32.totalorder %s18, 7
    %p181 = por %p179, %p180
    %p183 = scmp.ne.s32.totalorder %s168, %s182
    %p184 = scmp.eq.s32.totalorder %s18, 0
    %p185 = por %p183, %p184
    %s186 = ssub.s32 %s19, %s38
    %s187 = ssub.s32 %s20, %s34
    %s188 = sor.u32 %s186, %s187
    %p189 = scmp.eq.s32.totalorder %s188, 0
    %s191 = sadd.s32 %s190, 1
    %s192 = scalar_select %p189, %s190, %s191
    %p195 = pneg %p189
    %p196 = scmp.eq.s32.totalorder %s12, 7
    %p197 = por %p195, %p196
    %p198 = scmp.ne.s32.totalorder %s190, %s193
    %p199 = scmp.eq.s32.totalorder %s12, 0
    %p200 = por %p198, %p199
    %p201 = scmp.ne.s32.totalorder %s190, %s193
    %p202 = scmp.eq.s32.totalorder %s17, 7
    %p203 = por %p201, %p202
    %p204 = scmp.ne.s32.totalorder %s193, %s194
    %p205 = scmp.eq.s32.totalorder %s17, 0
    %p206 = por %p204, %p205
    %p207 = scmp.ne.s32.totalorder %s193, %s194
    %p208 = scmp.eq.s32.totalorder %s18, 7
    %p209 = por %p207, %p208
    %p211 = scmp.ne.s32.totalorder %s194, %s210
    %p212 = scmp.eq.s32.totalorder %s18, 0
    %p213 = por %p211, %p212
    %p214 = scmp.le.s32.totalorder 1, %s12
    %p215 = scmp.lt.s32.totalorder %s12, 9
    %p216 = pnand %p214, %p215
    %p217 = pneg %p216
    // Predicated region
    $region9: #{audio_encoder_forward.16} parent=5 // pred_check
      _
    $region10: #{audio_encoder_forward.16} parent=5 // pred_check_branch
      %219 = sbr.rel (%p216) target = $region12
    $region11: #{audio_encoder_forward.16} parent=5 // pred_region
      %s220 = ssub.s32 %s12, 1
      // Predicated region
      $region13: #{audio_encoder_forward.16} parent=11 // pred_check
        %p221 = pneg %p108
      $region14: #{audio_encoder_forward.16} parent=11 // pred_check_branch
        %223 = sbr.rel (%p221) target = $region16
      $region15: #{audio_encoder_forward.16} parent=11 // pred_region
        _
      $region16: #{audio_encoder_forward.16} parent=11 // pred_fallthru
        _
      // Predicated region
      $region17: #{audio_encoder_forward.16} parent=11 // pred_check
        %p224 = pneg %p157
      $region18: #{audio_encoder_forward.16} parent=11 // pred_check_branch
        %226 = sbr.rel (%p224) target = $region20
      $region19: #{audio_encoder_forward.16} parent=11 // pred_region
        _
      $region20: #{audio_encoder_forward.16} parent=11 // pred_fallthru
        _
      // Predicated region
      $region21: #{audio_encoder_forward.16} parent=11 // pred_check
        %p227 = pneg %p178
      $region22: #{audio_encoder_forward.16} parent=11 // pred_check_branch
        %229 = sbr.rel (%p227) target = $region24
      $region23: #{audio_encoder_forward.16} parent=11 // pred_region
        _
      $region24: #{audio_encoder_forward.16} parent=11 // pred_fallthru
        _
    $region12: #{audio_encoder_forward.16} parent=5 // pred_fallthru
      _
    %p230 = scmp.lt.s32.totalorder %s12, 8
    // Predicated region
    $region25: #{audio_encoder_forward.16} parent=5 // pred_check
      %p231 = pneg %p230
    $region26: #{audio_encoder_forward.16} parent=5 // pred_check_branch
      %233 = sbr.rel (%p231) target = $region28
    $region27: #{audio_encoder_forward.16} parent=5 // pred_region
      // Predicated region
      $region29: #{audio_encoder_forward.16} parent=27 // pred_check
        %p234 = pneg %p55
      $region30: #{audio_encoder_forward.16} parent=27 // pred_check_branch
        %236 = sbr.rel (%p234) target = $region32
      $region31: #{audio_encoder_forward.16} parent=27 // pred_region
        %p237 = scmp.lt.s32.totalorder %s19, 1
        %s238 = scalar_select %p237, %s19, 1
        %p239 = scmp.lt.s32.totalorder %s21, 3
        %s240 = scalar_select %p239, %s21, 3
        %p241 = scmp.lt.s32.totalorder %s20, 0
        %s242 = scalar_select %p241, %s20, 0
        %s243 = sadd.s32 %s242, %s240
        %s244 = smul.addr %s238, 4
        %s245 = sadd.s32 %s243, %s244
        %s246 = smul.addr %s245, 4
        %s247 = scalar_lea.vmem %s0, %s246
      $region32: #{audio_encoder_forward.16} parent=27 // pred_fallthru
        _
      // Predicated region
      $region33: #{audio_encoder_forward.16} parent=27 // pred_check
        %p248 = pneg %p81
      $region34: #{audio_encoder_forward.16} parent=27 // pred_check_branch
        %250 = sbr.rel (%p248) target = $region36
      $region35: #{audio_encoder_forward.16} parent=27 // pred_region
        %p251 = scmp.lt.s32.totalorder %s21, 3
        %s252 = scalar_select %p251, %s21, 3
        %s253 = smul.addr %s252, 4
        %s254 = scalar_lea.vmem %s1, %s253
      $region36: #{audio_encoder_forward.16} parent=27 // pred_fallthru
        _
      // Predicated region
      $region37: #{audio_encoder_forward.16} parent=27 // pred_check
        %p255 = pneg %p130
      $region38: #{audio_encoder_forward.16} parent=27 // pred_check_branch
        %257 = sbr.rel (%p255) target = $region40
      $region39: #{audio_encoder_forward.16} parent=27 // pred_region
        %p258 = scmp.lt.s32.totalorder %s19, 1
        %s259 = scalar_select %p258, %s19, 1
        %p260 = scmp.lt.s32.totalorder %s20, 0
        %s261 = scalar_select %p260, %s20, 0
        %s262 = sadd.s32 %s261, %s259
        %s263 = smul.addr %s262, 4
        %s264 = scalar_lea.vmem %s3, %s263
      $region40: #{audio_encoder_forward.16} parent=27 // pred_fallthru
        _
    $region28: #{audio_encoder_forward.16} parent=5 // pred_fallthru
      _
    %p265 = scmp.le.s32.totalorder 1, %s12
    %p266 = scmp.lt.s32.totalorder %s12, 9
    %p267 = pnand %p265, %p266
    %p268 = pneg %p267
    // Predicated region
    $region41: #{audio_encoder_forward.16} parent=5 // pred_check
      _
    $region42: #{audio_encoder_forward.16} parent=5 // pred_check_branch
      %270 = sbr.rel (%p267) target = $region44
    $region43: #{audio_encoder_forward.16} parent=5 // pred_region
      %s271 = ssub.s32 %s12, 1
      %p272 = scmp.lt.s32.totalorder %s22, 1
      %s273 = scalar_select %p272, %s22, 1
      %p274 = scmp.lt.s32.totalorder %s24, 3
      %s275 = scalar_select %p274, %s24, 3
      %p276 = scmp.lt.s32.totalorder %s23, 0
      %s277 = scalar_select %p276, %s23, 0
      %s278 = sadd.s32 %s277, %s275
      %s279 = smul.addr %s273, 4
      %s280 = sadd.s32 %s278, %s279
      %s281 = smul.addr %s280, 4
      %s282 = scalar_lea.vmem %s0, %s281
      %p283 = pneg %p61
      %p284 = pneg %p58
      %p285 = scmp.lt.s32.totalorder %s24, 3
      %s286 = scalar_select %p285, %s24, 3
      %s287 = smul.addr %s286, 4
      %s288 = scalar_lea.vmem %s1, %s287
      %p289 = pneg %p87
      %p290 = pneg %p84
      %p291 = pneg %p108
      %p292 = pneg %p105
      %p293 = scmp.lt.s32.totalorder %s22, 1
      %s294 = scalar_select %p293, %s22, 1
      %p295 = scmp.lt.s32.totalorder %s23, 0
      %s296 = scalar_select %p295, %s23, 0
      %s297 = sadd.s32 %s296, %s294
      %s298 = smul.addr %s297, 4
      %s299 = scalar_lea.vmem %s3, %s298
      %p300 = pneg %p136
      %p301 = pneg %p133
      %p302 = pneg %p157
      %p303 = pneg %p154
      %p304 = pneg %p178
      %p305 = pneg %p175
      %p306 = pneg %p206
      %p307 = pneg %p203
      %p308 = scmp.lt.s32.totalorder %s22, 1
      %s309 = scalar_select %p308, %s22, 1
      %p310 = scmp.lt.s32.totalorder %s23, 0
      %s311 = scalar_select %p310, %s23, 0
      %s312 = sadd.s32 %s311, %s309
      %s313 = smul.addr %s312, 4
      %s314 = scalar_lea.vmem %s6, %s313
      %p315 = scmp.lt.s32.totalorder %s22, 1
      %s316 = scalar_select %p315, %s22, 1
      %p317 = scmp.lt.s32.totalorder %s24, 3
      %s318 = scalar_select %p317, %s24, 3
      %p319 = scmp.lt.s32.totalorder %s23, 0
      %s320 = scalar_select %p319, %s23, 0
      %s321 = sadd.s32 %s320, %s318
      %s322 = smul.addr %s316, 4
      %s323 = sadd.s32 %s321, %s322
      %s324 = smul.addr %s323, 4
      %s325 = scalar_lea.vmem %s0, %s324
      %p326 = scmp.lt.s32.totalorder %s24, 3
      %s327 = scalar_select %p326, %s24, 3
      %s328 = smul.addr %s327, 4
      %s329 = scalar_lea.vmem %s1, %s328
      %p330 = scmp.lt.s32.totalorder %s22, 1
      %s331 = scalar_select %p330, %s22, 1
      %p332 = scmp.lt.s32.totalorder %s23, 0
      %s333 = scalar_select %p332, %s23, 0
      %s334 = sadd.s32 %s333, %s331
      %s335 = smul.addr %s334, 4
      %s336 = scalar_lea.vmem %s3, %s335
      %p337 = scmp.lt.s32.totalorder %s22, 1
      %s338 = scalar_select %p337, %s22, 1
      %p339 = scmp.lt.s32.totalorder %s23, 0
      %s340 = scalar_select %p339, %s23, 0
      %s341 = sadd.s32 %s340, %s338
      %s342 = smul.addr %s341, 4
      %s343 = scalar_lea.vmem %s6, %s342
      %p345 = scmp.eq.s32.totalorder %s24, 0
      // Predicated region
      $region45: #{audio_encoder_forward.16} parent=43 // pred_check
        %p346 = pneg %p345
      $region46: #{audio_encoder_forward.16} parent=43 // pred_check_branch
        %348 = sbr.rel (%p346) target = $region48
      $region47: #{audio_encoder_forward.16} parent=43 // pred_region
        %vm349 = vcmask 261120
        %350 = vst.msk [vmem:[#allocation2] sm:$0xff] %vm349, 0.0
      $region48: #{audio_encoder_forward.16} parent=43 // pred_fallthru
        _
      %v351 = vld [vmem:[#allocation2] sm:$0xff]
      %v352 = vld [vmem:[%s325] sm:$0xf]
      %v353 = vld [vmem:[%s329] sm:$0xf]
      %vm354 = vcmask 64512
      %v356 = vsel %vm354, %v352, 0
      %vm358 = vcmask 1043456
      %v360 = vsel %vm358, %v353, 0
      %362 = vmatpush.bf16.msra.mxu0 0
      %363 = vmatpush.bf16.msra.mxu0 0
      %364 = vmatpush.bf16.msra.mxu0 0
      %365 = vmatpush.bf16.msra.mxu0 0
      %366 = vmatpush.bf16.msra.mxu0 0
      %367 = vmatpush.bf16.msra.mxu0 0
      %368 = vmatpush.bf16.msra.mxu0 0
      %369 = vmatpush.bf16.msra.mxu0 %v360
      %370 = vmatmul.bf16.gmra.mxu0 %v356
      %v371 = vpop.f32.mrf.mxu0
      %v372 = vadd.f32 0.0, %v371
      %v373 = vpop.f32.mrf.mxu0
      %374 = vdwg.mxu0
      %v375 = vadd.f32 %v351, %v372
      %vm376 = vcmask 261120
      %377 = vst.msk [vmem:[#allocation2] sm:$0xff] %vm376, %v375
      %p378 = scmp.eq.s32.totalorder %s24, 3
      // Predicated region
      $region49: #{audio_encoder_forward.16} parent=43 // pred_check
        %p379 = pneg %p378
      $region50: #{audio_encoder_forward.16} parent=43 // pred_check_branch
        %381 = sbr.rel (%p379) target = $region52
      $region51: #{audio_encoder_forward.16} parent=43 // pred_region
        %v382 = vld [vmem:[#allocation2] sm:$0xff]
        %v383 = vld [vmem:[%s2] sm:$0x1]
        %v385 = vperm.slane %v383, 0
        %v387 = vadd.f32 %v382, %v385
        %v388 = vld [vmem:[%s336] sm:$0xf]
        %v389 = vunpack.c.l.bf16 %v388
        %v390 = vadd.f32 %v387, %v389
        %v391 = vld [vmem:[%s4] sm:$0x1]
        %v392 = vld [vmem:[%s5] sm:$0x1]
        %v393 = vsel %vm376, %v390, 0.0
        %394 = vadd.xlane.f32.xlu0 %v393
        %v395 = vpop.xlane.xlu0 %394
        %v396 = vrcp.pop 32.0
        %v397 = vmul.f32 32.0, %v396
        %v398 = vsub.f32 1.0, %v397
        %v399 = vmul.f32 %v396, %v398
        %v400 = vadd.f32 %v396, %v399
        %vm401 = vweird.f32 %v396
        %v402 = vsel %vm401, %v396, %v400
        %v403 = vmul.f32 %v395, %v402
        %v404 = vsub.f32 %v390, %v403
        %v405 = vmul.f32 %v404, %v404
        %v406 = vsel %vm376, %v405, 0.0
        %407 = vadd.xlane.f32.xlu0 %v406
        %v408 = vpop.xlane.xlu0 %407
        %v409 = vmul.f32 %v408, %v402
        %v410 = vadd.f32 %v409, 1e-05
        %v411 = vrsqrt.pop %v410
        %v412 = vmul.f32 %v411, %v410
        %v413 = vmul.f32 %v412, %v411
        %v414 = vmul.f32 0.5, %v413
        %v415 = vsub.f32 1.5, %v414
        %v416 = vmul.f32 %v411, %v415
        %vm417 = vweird.f32 %v410
        %vm418 = vweird.f32 %v411
        %vm419 = vmor %vm417, %vm418
        %v420 = vsel %vm419, %v411, %v416
        %v421 = vmul.f32 %v404, %v420
        %v423 = vperm.slane %v391, 0
        %v425 = vmul.f32 %v421, %v423
        %v427 = vperm.slane %v392, 0
        %v429 = vadd.f32 %v425, %v427
        %v430 = vpack.c.bf16 %v429, %v429
        %vm431 = vcmask 257024
        %432 = vst.msk [vmem:[%s343] sm:$0xf] %vm431, %v430
      $region52: #{audio_encoder_forward.16} parent=43 // pred_fallthru
        _
      %p433 = scmp.lt.s32.totalorder %s22, 1
      %s434 = scalar_select %p433, %s22, 1
      %p435 = scmp.lt.s32.totalorder %s23, 0
      %s436 = scalar_select %p435, %s23, 0
      %s437 = sadd.s32 %s436, %s434
      %s438 = smul.addr %s437, 4
      %s439 = scalar_lea.vmem %s6, %s438
      // Predicated region
      $region53: #{audio_encoder_forward.16} parent=43 // pred_check
        %p440 = pneg %p203
      $region54: #{audio_encoder_forward.16} parent=43 // pred_check_branch
        %442 = sbr.rel (%p440) target = $region56
      $region55: #{audio_encoder_forward.16} parent=43 // pred_region
        _
      $region56: #{audio_encoder_forward.16} parent=43 // pred_fallthru
        _
    $region44: #{audio_encoder_forward.16} parent=5 // pred_fallthru
      _
    %p443 = scmp.le.s32.totalorder 2, %s12
    // Predicated region
    $region57: #{audio_encoder_forward.16} parent=5 // pred_check
      %p444 = pneg %p443
    $region58: #{audio_encoder_forward.16} parent=5 // pred_check_branch
      %446 = sbr.rel (%p444) target = $region60
    $region59: #{audio_encoder_forward.16} parent=5 // pred_region
      %s447 = ssub.s32 %s12, 2
      // Predicated region
      $region61: #{audio_encoder_forward.16} parent=59 // pred_check
        %p448 = pneg %p209
      $region62: #{audio_encoder_forward.16} parent=59 // pred_check_branch
        %450 = sbr.rel (%p448) target = $region64
      $region63: #{audio_encoder_forward.16} parent=59 // pred_region
        %p451 = scmp.lt.s32.totalorder %s25, 1
        %s452 = scalar_select %p451, %s25, 1
        %p453 = scmp.lt.s32.totalorder %s26, 0
        %s454 = scalar_select %p453, %s26, 0
        %s455 = sadd.s32 %s454, %s452
        %s456 = smul.addr %s455, 4
        %s457 = scalar_lea.vmem %s6, %s456
      $region64: #{audio_encoder_forward.16} parent=59 // pred_fallthru
        _
    $region60: #{audio_encoder_forward.16} parent=5 // pred_fallthru
      _
  $region6: #{audio_encoder_forward.16} parent=0 // loop_footer
    %s16 = sadd.s32 1, %s12
  $region7: #{audio_encoder_forward.16} parent=0 // loop_footer_branch
    %11 = sbr.rel target = $region3
  $region8: #{audio_encoder_forward.16} parent=0 // loop_exit
    _

// kernel: audio_encoder_forward.17
$region0: #{audio_encoder_forward.17}
  #allocation0 [shape = 'u32[]', space=smem, size = 0x4, offset = 0x4, fixed_abs, tag = 'smem constant byte address 0x4 - core index']
  #allocation1 [shape = 'u32[72,128]{1,0:T(1,128)}', space=vmem, size = 0x9000, scoped, tag = 'internal scratch']
  %s0 = inlined_call_operand.vmem [shape: bf16[16,32], index: 0, kind: input, shape index: {}]
  %s1 = inlined_call_operand.vmem [shape: bf16[32,64], index: 1, kind: input, shape index: {}]
  %s2 = inlined_call_operand.vmem [shape: f32[1,64], index: 2, kind: input, shape index: {}]
  %s3 = inlined_call_operand.vmem [shape: bf16[16,64], index: 3, kind: output, shape index: {}]
  %s4 = sld [smem:[#allocation0]]
  $region22: #{audio_encoder_forward.17} parent=0
    _
  %s6 = ssub.s32 1, %s4
  %s7 = scalar_select 0, %s6, %s4
  // Predicated region
  $region2: #{audio_encoder_forward.17} parent=0 // pred_check
    _
  $region3: #{audio_encoder_forward.17} parent=0 // pred_check_branch
    %9 = sbr.rel (0) target = $region5
  $region4: #{audio_encoder_forward.17} parent=0 // pred_region
    _
  $region5: #{audio_encoder_forward.17} parent=0 // pred_fallthru
    _
  // Predicated region
  $region6: #{audio_encoder_forward.17} parent=0 // pred_check
    _
  $region7: #{audio_encoder_forward.17} parent=0 // pred_check_branch
    %11 = sbr.rel (0) target = $region9
  $region8: #{audio_encoder_forward.17} parent=0 // pred_region
    _
  $region9: #{audio_encoder_forward.17} parent=0 // pred_fallthru
    _
  // Predicated region
  $region10: #{audio_encoder_forward.17} parent=0 // pred_check
    _
  $region11: #{audio_encoder_forward.17} parent=0 // pred_check_branch
    %13 = sbr.rel (0) target = $region13
  $region12: #{audio_encoder_forward.17} parent=0 // pred_region
    _
  $region13: #{audio_encoder_forward.17} parent=0 // pred_fallthru
    _
  %v15 = vld [vmem:[%s0] sm:$0xf]
  %v16 = vld [vmem:[%s0 + $0x4] sm:$0xf]
  %v17 = vld [vmem:[%s1] sm:$0xf]
  %v18 = vld [vmem:[%s1 + $0x4] sm:$0xf]
  %v19 = vld [vmem:[%s1 + $0x8] sm:$0xf]
  %v20 = vld [vmem:[%s1 + $0xc] sm:$0xf]
  %v21 = vld [vmem:[%s2] sm:$0x1]
  %v23 = vperm.slane %v21, 0
  %v27 = vunpack.c.l.b16 %v15
  %v28 = vunpack.c.l.b16 %v16
  %v29 = vpack.c.b16 %v28, %v27
  %v34 = vunpack.c.l.b16 %v17
  %v35 = vunpack.c.l.b16 %v18
  %v36 = vunpack.c.l.b16 %v19
  %v37 = vunpack.c.l.b16 %v20
  %v38 = vpack.c.b16 %v35, %v34
  %v39 = vpack.c.b16 %v37, %v36
  %vm42 = vcmask 261120
  %v44 = vsel %vm42, %v29, 0
  %46 = vmatpush.bf16.msra.mxu0 0
  %47 = vmatpush.bf16.msra.mxu0 0
  %48 = vmatpush.bf16.msra.mxu0 0
  %49 = vmatpush.bf16.msra.mxu0 0
  %50 = vmatpush.bf16.msra.mxu0 0
  %51 = vmatpush.bf16.msra.mxu0 0
  %52 = vmatpush.bf16.msra.mxu0 %v39
  %53 = vmatpush.bf16.msra.mxu0 %v38
  %54 = vmatmul.bf16.gmra.mxu0 %v44
  %v55 = vpop.f32.mrf.mxu0
  %v56 = vadd.f32 %v23, %v55
  %v57 = vpop.f32.mrf.mxu0
  %v58 = vadd.f32 %v23, %v57
  %59 = vdwg.mxu0
  %v60 = vmax.f32 %v56, 0.0
  %v61 = vmax.f32 %v58, 0.0
  %v62 = vpack.c.bf16 %v60, %v60
  %v63 = vpack.c.bf16 %v61, %v61
  %vm64 = vcmask 519168
  %65 = vst.msk [vmem:[%s3] sm:$0xf] %vm64, %v62
  %66 = vst.msk [vmem:[%s3 + $0x4] sm:$0xf] %vm64, %v63
  // Predicated region
  $region14: #{audio_encoder_forward.17} parent=0 // pred_check
    _
  $region15: #{audio_encoder_forward.17} parent=0 // pred_check_branch
    %68 = sbr.rel (0) target = $region17
  $region16: #{audio_encoder_forward.17} parent=0 // pred_region
    _
  $region17: #{audio_encoder_forward.17} parent=0 // pred_fallthru
    _
  // Predicated region
  $region18: #{audio_encoder_forward.17} parent=0 // pred_check
    _
  $region19: #{audio_encoder_forward.17} parent=0 // pred_check_branch
    %70 = sbr.rel (0) target = $region21
  $region20: #{audio_encoder_forward.17} parent=0 // pred_region
    _
  $region21: #{audio_encoder_forward.17} parent=0 // pred_fallthru
    _

// kernel: audio_encoder_forward.24
$region0: #{audio_encoder_forward.24}
  #allocation0 [shape = 'u32[]', space=smem, size = 0x4, offset = 0x4, fixed_abs, tag = 'smem constant byte address 0x4 - core index']
  #allocation1 [shape = 'u32[72,128]{1,0:T(1,128)}', space=vmem, size = 0x9000, scoped, tag = 'internal scratch']
  %s0 = inlined_call_operand.vmem [shape: bf16[16,32], index: 0, kind: input, shape index: {}]
  %s1 = inlined_call_operand.vmem [shape: bf16[2,32,32], index: 1, kind: input, shape index: {}]
  %s2 = inlined_call_operand.vmem [shape: f32[2,1,32], index: 2, kind: input, shape index: {}]
  %s3 = inlined_call_operand.vmem [shape: bf16[2,16,32], index: 3, kind: output, shape index: {}]
  %s4 = sld [smem:[#allocation0]]
  $region45: #{audio_encoder_forward.24} parent=0
    _
  %s6 = ssub.s32 1, %s4
  %s7 = scalar_select 0, %s6, %s4
  loop: start=0, step=1, limit=4
  $region2: #{audio_encoder_forward.24} parent=0 // loop_pre_header
    _
  $region3: #{audio_encoder_forward.24} parent=0 // loop_header
    %s9 = sphi 0, %s13
    %p10 = scmp.ge.s32.totalorder %s9, 4
    %s16 = sphi 0, %s28
    %s17 = sphi 0, %s24
    %s18 = sphi 0, %s16
    %s19 = sphi 0, %s17
    %s20 = sphi 0, %s18
    %s21 = sphi 0, %s19
    %s31 = sphi 0, %s33
    %s34 = sphi 0, %s31
    %s35 = sphi 0, %s34
    %s51 = sphi 0, %s35
    %s57 = sphi 0, %s59
    %s60 = sphi 0, %s57
    %s61 = sphi 0, %s60
    %s77 = sphi 0, %s61
    %s83 = sphi 0, %s85
    %s86 = sphi 0, %s83
    %s87 = sphi 0, %s86
    %s103 = sphi 0, %s87
    %s111 = sphi 0, %s113
    %s114 = sphi 0, %s111
    %s115 = sphi 0, %s114
    %s131 = sphi 0, %s115
  $region4: #{audio_encoder_forward.24} parent=0 // loop_header_branch
    %12 = sbr.rel (%p10) target = $region8
  $region5: #{audio_encoder_forward.24} parent=0 // loop_body
    %s14 = ssub.s32 %s9, 1
    %s15 = ssub.s32 %s9, 2
    %s22 = sadd.s32 1, %s17
    %p23 = scmp.ge.s32.totalorder %s22, 2
    %s24 = scalar_select %p23, 0, %s22
    %s25 = sadd.s32 1, %s16
    %s26 = scalar_select %p23, %s25, %s16
    %p27 = scmp.ge.s32.totalorder %s26, 1
    %s28 = scalar_select %p27, 0, %s26
    %s29 = ssub.s32 %s16, %s28
    %p30 = scmp.eq.s32.totalorder %s29, 0
    %s32 = sadd.s32 %s31, 1
    %s33 = scalar_select %p30, %s31, %s32
    %p36 = pneg %p30
    %p37 = scmp.eq.s32.totalorder %s9, 1
    %p38 = por %p36, %p37
    %p39 = scmp.ne.s32.totalorder %s31, %s34
    %p40 = scmp.eq.s32.totalorder %s9, 0
    %p41 = por %p39, %p40
    %p42 = scmp.ne.s32.totalorder %s31, %s34
    %p43 = scmp.eq.s32.totalorder %s14, 1
    %p44 = por %p42, %p43
    %p45 = scmp.ne.s32.totalorder %s34, %s35
    %p46 = scmp.eq.s32.totalorder %s14, 0
    %p47 = por %p45, %p46
    %p48 = scmp.ne.s32.totalorder %s34, %s35
    %p49 = scmp.eq.s32.totalorder %s15, 1
    %p50 = por %p48, %p49
    %p52 = scmp.ne.s32.totalorder %s35, %s51
    %p53 = scmp.eq.s32.totalorder %s15, 0
    %p54 = por %p52, %p53
    %s55 = ssub.s32 %s17, %s24
    %p56 = scmp.eq.s32.totalorder %s55, 0
    %s58 = sadd.s32 %s57, 1
    %s59 = scalar_select %p56, %s57, %s58
    %p62 = pneg %p56
    %p63 = scmp.eq.s32.totalorder %s9, 1
    %p64 = por %p62, %p63
    %p65 = scmp.ne.s32.totalorder %s57, %s60
    %p66 = scmp.eq.s32.totalorder %s9, 0
    %p67 = por %p65, %p66
    %p68 = scmp.ne.s32.totalorder %s57, %s60
    %p69 = scmp.eq.s32.totalorder %s14, 1
    %p70 = por %p68, %p69
    %p71 = scmp.ne.s32.totalorder %s60, %s61
    %p72 = scmp.eq.s32.totalorder %s14, 0
    %p73 = por %p71, %p72
    %p74 = scmp.ne.s32.totalorder %s60, %s61
    %p75 = scmp.eq.s32.totalorder %s15, 1
    %p76 = por %p74, %p75
    %p78 = scmp.ne.s32.totalorder %s61, %s77
    %p79 = scmp.eq.s32.totalorder %s15, 0
    %p80 = por %p78, %p79
    %s81 = ssub.s32 %s17, %s24
    %p82 = scmp.eq.s32.totalorder %s81, 0
    %s84 = sadd.s32 %s83, 1
    %s85 = scalar_select %p82, %s83, %s84
    %p88 = pneg %p82
    %p89 = scmp.eq.s32.totalorder %s9, 1
    %p90 = por %p88, %p89
    %p91 = scmp.ne.s32.totalorder %s83, %s86
    %p92 = scmp.eq.s32.totalorder %s9, 0
    %p93 = por %p91, %p92
    %p94 = scmp.ne.s32.totalorder %s83, %s86
    %p95 = scmp.eq.s32.totalorder %s14, 1
    %p96 = por %p94, %p95
    %p97 = scmp.ne.s32.totalorder %s86, %s87
    %p98 = scmp.eq.s32.totalorder %s14, 0
    %p99 = por %p97, %p98
    %p100 = scmp.ne.s32.totalorder %s86, %s87
    %p101 = scmp.eq.s32.totalorder %s15, 1
    %p102 = por %p100, %p101
    %p104 = scmp.ne.s32.totalorder %s87, %s103
    %p105 = scmp.eq.s32.totalorder %s15, 0
    %p106 = por %p104, %p105
    %s107 = ssub.s32 %s17, %s24
    %s108 = ssub.s32 %s16, %s28
    %s109 = sor.u32 %s107, %s108
    %p110 = scmp.eq.s32.totalorder %s109, 0
    %s112 = sadd.s32 %s111, 1
    %s113 = scalar_select %p110, %s111, %s112
    %p116 = pneg %p110
    %p117 = scmp.eq.s32.totalorder %s9, 1
    %p118 = por %p116, %p117
    %p119 = scmp.ne.s32.totalorder %s111, %s114
    %p120 = scmp.eq.s32.totalorder %s9, 0
    %p121 = por %p119, %p120
    %p122 = scmp.ne.s32.totalorder %s111, %s114
    %p123 = scmp.eq.s32.totalorder %s14, 1
    %p124 = por %p122, %p123
    %p125 = scmp.ne.s32.totalorder %s114, %s115
    %p126 = scmp.eq.s32.totalorder %s14, 0
    %p127 = por %p125, %p126
    %p128 = scmp.ne.s32.totalorder %s114, %s115
    %p129 = scmp.eq.s32.totalorder %s15, 1
    %p130 = por %p128, %p129
    %p132 = scmp.ne.s32.totalorder %s115, %s131
    %p133 = scmp.eq.s32.totalorder %s15, 0
    %p134 = por %p132, %p133
    %p135 = scmp.le.s32.totalorder 1, %s9
    %p136 = scmp.lt.s32.totalorder %s9, 3
    %p137 = pnand %p135, %p136
    %p138 = pneg %p137
    // Predicated region
    $region9: #{audio_encoder_forward.24} parent=5 // pred_check
      _
    $region10: #{audio_encoder_forward.24} parent=5 // pred_check_branch
      %140 = sbr.rel (%p137) target = $region12
    $region11: #{audio_encoder_forward.24} parent=5 // pred_region
      %s141 = ssub.s32 %s9, 1
      // Predicated region
      $region13: #{audio_encoder_forward.24} parent=11 // pred_check
        %p142 = pneg %p47
      $region14: #{audio_encoder_forward.24} parent=11 // pred_check_branch
        %144 = sbr.rel (%p142) target = $region16
      $region15: #{audio_encoder_forward.24} parent=11 // pred_region
        %s145 = smul.u32 2, %s18
        %p146 = scmp.lt.s32.totalorder %s145, 1
        %s147 = scalar_select %p146, %s145, 1
        %s148 = smul.addr %s147, 4
        %s149 = scalar_lea.vmem %s0, %s148
        %s150 = smul.u32 2, %s18
      $region16: #{audio_encoder_forward.24} parent=11 // pred_fallthru
        _
    $region12: #{audio_encoder_forward.24} parent=5 // pred_fallthru
      _
    %p151 = scmp.lt.s32.totalorder %s9, 2
    // Predicated region
    $region17: #{audio_encoder_forward.24} parent=5 // pred_check
      %p152 = pneg %p151
    $region18: #{audio_encoder_forward.24} parent=5 // pred_check_branch
      %154 = sbr.rel (%p152) target = $region20
    $region19: #{audio_encoder_forward.24} parent=5 // pred_region
      // Predicated region
      $region21: #{audio_encoder_forward.24} parent=19 // pred_check
        %p155 = pneg %p67
      $region22: #{audio_encoder_forward.24} parent=19 // pred_check_branch
        %157 = sbr.rel (%p155) target = $region24
      $region23: #{audio_encoder_forward.24} parent=19 // pred_region
        %p158 = scmp.lt.s32.totalorder %s17, 1
        %s159 = scalar_select %p158, %s17, 1
        %s160 = smul.addr %s159, 4
        %s161 = smul.addr %s160, 4
        %s162 = scalar_lea.vmem %s1, %s161
      $region24: #{audio_encoder_forward.24} parent=19 // pred_fallthru
        _
      // Predicated region
      $region25: #{audio_encoder_forward.24} parent=19 // pred_check
        %p163 = pneg %p93
      $region26: #{audio_encoder_forward.24} parent=19 // pred_check_branch
        %165 = sbr.rel (%p163) target = $region28
      $region27: #{audio_encoder_forward.24} parent=19 // pred_region
        %p166 = scmp.lt.s32.totalorder %s17, 1
        %s167 = scalar_select %p166, %s17, 1
        %s168 = scalar_lea.vmem %s2, %s167
      $region28: #{audio_encoder_forward.24} parent=19 // pred_fallthru
        _
    $region20: #{audio_encoder_forward.24} parent=5 // pred_fallthru
      _
    %p169 = scmp.le.s32.totalorder 1, %s9
    %p170 = scmp.lt.s32.totalorder %s9, 3
    %p171 = pnand %p169, %p170
    %p172 = pneg %p171
    // Predicated region
    $region29: #{audio_encoder_forward.24} parent=5 // pred_check
      _
    $region30: #{audio_encoder_forward.24} parent=5 // pred_check_branch
      %174 = sbr.rel (%p171) target = $region32
    $region31: #{audio_encoder_forward.24} parent=5 // pred_region
      %s175 = ssub.s32 %s9, 1
      %s176 = smul.u32 2, %s18
      %p177 = scmp.lt.s32.totalorder %s176, 1
      %s178 = scalar_select %p177, %s176, 1
      %s179 = smul.addr %s178, 4
      %s180 = scalar_lea.vmem %s0, %s179
      %p181 = pneg %p47
      %p182 = pneg %p44
      %p183 = scmp.lt.s32.totalorder %s19, 1
      %s184 = scalar_select %p183, %s19, 1
      %s185 = smul.addr %s184, 4
      %s186 = smul.addr %s185, 4
      %s187 = scalar_lea.vmem %s1, %s186
      %p188 = pneg %p73
      %p189 = pneg %p70
      %p190 = scmp.lt.s32.totalorder %s19, 1
      %s191 = scalar_select %p190, %s19, 1
      %s192 = scalar_lea.vmem %s2, %s191
      %p193 = pneg %p99
      %p194 = pneg %p96
      %p195 = pneg %p127
      %p196 = pneg %p124
      %s197 = smul.u32 2, %s18
      %p198 = scmp.lt.s32.totalorder %s19, 1
      %s199 = scalar_select %p198, %s19, 1
      %p200 = scmp.lt.s32.totalorder %s197, 1
      %s201 = scalar_select %p200, %s197, 1
      %s202 = smul.addr %s199, 2
      %s203 = sadd.s32 %s201, %s202
      %s204 = smul.addr %s203, 4
      %s205 = scalar_lea.vmem %s3, %s204
      %s206 = smul.u32 2, %s18
      %p207 = scmp.lt.s32.totalorder %s206, 1
      %s208 = scalar_select %p207, %s206, 1
      %s209 = smul.addr %s208, 4
      %s210 = scalar_lea.vmem %s0, %s209
      %s211 = smul.u32 2, %s18
      %p212 = scmp.lt.s32.totalorder %s19, 1
      %s213 = scalar_select %p212, %s19, 1
      %s214 = smul.addr %s213, 4
      %s215 = smul.addr %s214, 4
      %s216 = scalar_lea.vmem %s1, %s215
      %p217 = scmp.lt.s32.totalorder %s19, 1
      %s218 = scalar_select %p217, %s19, 1
      %s219 = scalar_lea.vmem %s2, %s218
      %s220 = smul.u32 2, %s18
      %p221 = scmp.lt.s32.totalorder %s19, 1
      %s222 = scalar_select %p221, %s19, 1
      %p223 = scmp.lt.s32.totalorder %s220, 1
      %s224 = scalar_select %p223, %s220, 1
      %s225 = smul.addr %s222, 2
      %s226 = sadd.s32 %s224, %s225
      %s227 = smul.addr %s226, 4
      %s228 = scalar_lea.vmem %s3, %s227
      %s229 = smul.u32 2, %s18
      %v231 = vld [vmem:[%s210] sm:$0xf]
      %v232 = vld [vmem:[%s210 + $0x4] sm:$0xf]
      %v233 = vld [vmem:[%s216] sm:$0xf]
      %v234 = vld [vmem:[%s216 + $0x4] sm:$0xf]
      %v235 = vld [vmem:[%s216 + $0x8] sm:$0xf]
      %v236 = vld [vmem:[%s216 + $0xc] sm:$0xf]
      %v237 = vld [vmem:[%s219] sm:$0x1]
      %v239 = vperm.slane %v237, 0
      %v243 = vunpack.c.l.b16 %v231
      %v244 = vunpack.c.l.b16 %v232
      %v245 = vpack.c.b16 %v244, %v243
      %v250 = vunpack.c.l.b16 %v233
      %v251 = vunpack.c.l.b16 %v234
      %v252 = vunpack.c.l.b16 %v235
      %v253 = vunpack.c.l.b16 %v236
      %v254 = vpack.c.b16 %v251, %v250
      %v255 = vpack.c.b16 %v253, %v252
      %vm258 = vcmask 261120
      %v260 = vsel %vm258, %v245, 0
      %262 = vmatpush.bf16.msra.mxu0 0
      %263 = vmatpush.bf16.msra.mxu0 0
      %264 = vmatpush.bf16.msra.mxu0 0
      %265 = vmatpush.bf16.msra.mxu0 0
      %266 = vmatpush.bf16.msra.mxu0 0
      %267 = vmatpush.bf16.msra.mxu0 0
      %268 = vmatpush.bf16.msra.mxu0 %v255
      %269 = vmatpush.bf16.msra.mxu0 %v254
      %270 = vmatmul.bf16.gmra.mxu0 %v260
      %v271 = vpop.f32.mrf.mxu0
      %v272 = vadd.f32 %v239, %v271
      %v273 = vpop.f32.mrf.mxu0
      %v274 = vadd.f32 %v239, %v273
      %275 = vdwg.mxu0
      %v276 = vpack.c.bf16 %v272, %v272
      %v277 = vpack.c.bf16 %v274, %v274
      %vm278 = vcmask 257024
      %279 = vst.msk [vmem:[%s228] sm:$0xf] %vm278, %v276
      %280 = vst.msk [vmem:[%s228 + $0x4] sm:$0xf] %vm278, %v277
      %s281 = smul.u32 2, %s18
      %p282 = scmp.lt.s32.totalorder %s19, 1
      %s283 = scalar_select %p282, %s19, 1
      %p284 = scmp.lt.s32.totalorder %s281, 1
      %s285 = scalar_select %p284, %s281, 1
      %s286 = smul.addr %s283, 2
      %s287 = sadd.s32 %s285, %s286
      %s288 = smul.addr %s287, 4
      %s289 = scalar_lea.vmem %s3, %s288
      // Predicated region
      $region33: #{audio_encoder_forward.24} parent=31 // pred_check
        %p290 = pneg %p124
      $region34: #{audio_encoder_forward.24} parent=31 // pred_check_branch
        %292 = sbr.rel (%p290) target = $region36
      $region35: #{audio_encoder_forward.24} parent=31 // pred_region
        %s293 = smul.u32 2, %s18
      $region36: #{audio_encoder_forward.24} parent=31 // pred_fallthru
        _
    $region32: #{audio_encoder_forward.24} parent=5 // pred_fallthru
      _
    %p294 = scmp.le.s32.totalorder 2, %s9
    // Predicated region
    $region37: #{audio_encoder_forward.24} parent=5 // pred_check
      %p295 = pneg %p294
    $region38: #{audio_encoder_forward.24} parent=5 // pred_check_branch
      %297 = sbr.rel (%p295) target = $region40
    $region39: #{audio_encoder_forward.24} parent=5 // pred_region
      %s298 = ssub.s32 %s9, 2
      // Predicated region
      $region41: #{audio_encoder_forward.24} parent=39 // pred_check
        %p299 = pneg %p130
      $region42: #{audio_encoder_forward.24} parent=39 // pred_check_branch
        %301 = sbr.rel (%p299) target = $region44
      $region43: #{audio_encoder_forward.24} parent=39 // pred_region
        %s302 = smul.u32 2, %s20
        %p303 = scmp.lt.s32.totalorder %s21, 1
        %s304 = scalar_select %p303, %s21, 1
        %p305 = scmp.lt.s32.totalorder %s302, 1
        %s306 = scalar_select %p305, %s302, 1
        %s307 = smul.addr %s304, 2
        %s308 = sadd.s32 %s306, %s307
        %s309 = smul.addr %s308, 4
        %s310 = scalar_lea.vmem %s3, %s309
      $region44: #{audio_encoder_forward.24} parent=39 // pred_fallthru
        _
    $region40: #{audio_encoder_forward.24} parent=5 // pred_fallthru
      _
  $region6: #{audio_encoder_forward.24} parent=0 // loop_footer
    %s13 = sadd.s32 1, %s9
  $region7: #{audio_encoder_forward.24} parent=0 // loop_footer_branch
    %8 = sbr.rel target = $region3
  $region8: #{audio_encoder_forward.24} parent=0 // loop_exit
    _

// kernel: audio_encoder_forward.18
$region0: #{audio_encoder_forward.18}
  #allocation0 [shape = 'u32[]', space=smem, size = 0x4, offset = 0x4, fixed_abs, tag = 'smem constant byte address 0x4 - core index']
  #allocation1 [shape = 'u32[72,128]{1,0:T(1,128)}', space=vmem, size = 0x9000, scoped, tag = 'internal scratch']
  %s0 = inlined_call_operand.vmem [shape: bf16[16,64], index: 0, kind: input, shape index: {}]
  %s1 = inlined_call_operand.vmem [shape: bf16[64,32], index: 1, kind: input, shape index: {}]
  %s2 = inlined_call_operand.vmem [shape: f32[1,32], index: 2, kind: input, shape index: {}]
  %s3 = inlined_call_operand.vmem [shape: bf16[16,32], index: 3, kind: input, shape index: {}]
  %s4 = inlined_call_operand.vmem [shape: f32[1,32], index: 4, kind: input, shape index: {}]
  %s5 = inlined_call_operand.vmem [shape: f32[1,32], index: 5, kind: input, shape index: {}]
  %s6 = inlined_call_operand.vmem [shape: bf16[16,32], index: 6, kind: output, shape index: {}]
  %s7 = sld [smem:[#allocation0]]
  $region34: #{audio_encoder_forward.18} parent=0
    _
  %s9 = ssub.s32 1, %s7
  %s10 = scalar_select 0, %s9, %s7
  // Predicated region
  $region2: #{audio_encoder_forward.18} parent=0 // pred_check
    _
  $region3: #{audio_encoder_forward.18} parent=0 // pred_check_branch
    %12 = sbr.rel (0) target = $region5
  $region4: #{audio_encoder_forward.18} parent=0 // pred_region
    _
  $region5: #{audio_encoder_forward.18} parent=0 // pred_fallthru
    _
  // Predicated region
  $region6: #{audio_encoder_forward.18} parent=0 // pred_check
    _
  $region7: #{audio_encoder_forward.18} parent=0 // pred_check_branch
    %14 = sbr.rel (0) target = $region9
  $region8: #{audio_encoder_forward.18} parent=0 // pred_region
    _
  $region9: #{audio_encoder_forward.18} parent=0 // pred_fallthru
    _
  // Predicated region
  $region10: #{audio_encoder_forward.18} parent=0 // pred_check
    _
  $region11: #{audio_encoder_forward.18} parent=0 // pred_check_branch
    %16 = sbr.rel (0) target = $region13
  $region12: #{audio_encoder_forward.18} parent=0 // pred_region
    _
  $region13: #{audio_encoder_forward.18} parent=0 // pred_fallthru
    _
  // Predicated region
  $region14: #{audio_encoder_forward.18} parent=0 // pred_check
    _
  $region15: #{audio_encoder_forward.18} parent=0 // pred_check_branch
    %18 = sbr.rel (0) target = $region17
  $region16: #{audio_encoder_forward.18} parent=0 // pred_region
    _
  $region17: #{audio_encoder_forward.18} parent=0 // pred_fallthru
    _
  // Predicated region
  $region18: #{audio_encoder_forward.18} parent=0 // pred_check
    _
  $region19: #{audio_encoder_forward.18} parent=0 // pred_check_branch
    %20 = sbr.rel (0) target = $region21
  $region20: #{audio_encoder_forward.18} parent=0 // pred_region
    _
  $region21: #{audio_encoder_forward.18} parent=0 // pred_fallthru
    _
  // Predicated region
  $region22: #{audio_encoder_forward.18} parent=0 // pred_check
    _
  $region23: #{audio_encoder_forward.18} parent=0 // pred_check_branch
    %22 = sbr.rel (0) target = $region25
  $region24: #{audio_encoder_forward.18} parent=0 // pred_region
    _
  $region25: #{audio_encoder_forward.18} parent=0 // pred_fallthru
    _
  %v24 = vld [vmem:[%s0] sm:$0xf]
  %v25 = vld [vmem:[%s0 + $0x4] sm:$0xf]
  %v26 = vld [vmem:[%s1] sm:$0xf]
  %v27 = vld [vmem:[%s1 + $0x4] sm:$0xf]
  %v28 = vld [vmem:[%s1 + $0x8] sm:$0xf]
  %v29 = vld [vmem:[%s1 + $0xc] sm:$0xf]
  %v30 = vld [vmem:[%s1 + $0x10] sm:$0xf]
  %v31 = vld [vmem:[%s1 + $0x14] sm:$0xf]
  %v32 = vld [vmem:[%s1 + $0x18] sm:$0xf]
  %v33 = vld [vmem:[%s1 + $0x1c] sm:$0xf]
  %v34 = vld [vmem:[%s2] sm:$0x1]
  %v36 = vperm.slane %v34, 0
  %v40 = vunpack.c.l.b16 %v24
  %v41 = vunpack.c.l.b16 %v25
  %v42 = vpack.c.b16 %v41, %v40
  %v51 = vunpack.c.l.b16 %v26
  %v52 = vunpack.c.l.b16 %v27
  %v53 = vunpack.c.l.b16 %v28
  %v54 = vunpack.c.l.b16 %v29
  %v55 = vunpack.c.l.b16 %v30
  %v56 = vunpack.c.l.b16 %v31
  %v57 = vunpack.c.l.b16 %v32
  %v58 = vunpack.c.l.b16 %v33
  %v59 = vpack.c.b16 %v52, %v51
  %v60 = vpack.c.b16 %v54, %v53
  %v61 = vpack.c.b16 %v56, %v55
  %v62 = vpack.c.b16 %v58, %v57
  %vm67 = vcmask 523264
  %v69 = vsel %vm67, %v42, 0
  %71 = vmatpush.bf16.msra.mxu0 0
  %72 = vmatpush.bf16.msra.mxu0 0
  %73 = vmatpush.bf16.msra.mxu0 0
  %74 = vmatpush.bf16.msra.mxu0 0
  %75 = vmatpush.bf16.msra.mxu0 %v62
  %76 = vmatpush.bf16.msra.mxu0 %v61
  %77 = vmatpush.bf16.msra.mxu0 %v60
  %78 = vmatpush.bf16.msra.mxu0 %v59
  %79 = vmatmul.bf16.gmra.mxu0 %v69
  %v80 = vpop.f32.mrf.mxu0
  %v81 = vadd.f32 %v36, %v80
  %v82 = vpop.f32.mrf.mxu0
  %v83 = vadd.f32 %v36, %v82
  %84 = vdwg.mxu0
  %v85 = vld [vmem:[%s3] sm:$0xf]
  %v86 = vld [vmem:[%s3 + $0x4] sm:$0xf]
  %v87 = vunpack.c.l.bf16 %v85
  %v88 = vunpack.c.l.bf16 %v86
  %v89 = vadd.f32 %v81, %v87
  %v90 = vadd.f32 %v83, %v88
  %v91 = vld [vmem:[%s4] sm:$0x1]
  %v92 = vld [vmem:[%s5] sm:$0x1]
  %vm93 = vcmask 261120
  %v94 = vsel %vm93, %v89, 0.0
  %95 = vadd.xlane.f32.xlu0 %v94
  %v96 = vpop.xlane.xlu0 %95
  %v97 = vsel %vm93, %v90, 0.0
  %98 = vadd.xlane.f32.xlu0 %v97
  %v99 = vpop.xlane.xlu0 %98
  %v100 = vrcp.pop 32.0
  %v101 = vmul.f32 32.0, %v100
  %v102 = vsub.f32 1.0, %v101
  %v103 = vmul.f32 %v100, %v102
  %v104 = vadd.f32 %v100, %v103
  %vm105 = vweird.f32 %v100
  %v106 = vsel %vm105, %v100, %v104
  %v107 = vmul.f32 %v96, %v106
  %v108 = vmul.f32 %v99, %v106
  %v109 = vsub.f32 %v89, %v107
  %v110 = vsub.f32 %v90, %v108
  %v111 = vmul.f32 %v109, %v109
  %v112 = vmul.f32 %v110, %v110
  %v113 = vsel %vm93, %v111, 0.0
  %114 = vadd.xlane.f32.xlu0 %v113
  %v115 = vpop.xlane.xlu0 %114
  %v116 = vsel %vm93, %v112, 0.0
  %117 = vadd.xlane.f32.xlu0 %v116
  %v118 = vpop.xlane.xlu0 %117
  %v119 = vmul.f32 %v115, %v106
  %v120 = vmul.f32 %v118, %v106
  %v121 = vadd.f32 %v119, 1e-05
  %v122 = vadd.f32 %v120, 1e-05
  %v123 = vrsqrt.pop %v121
  %v124 = vmul.f32 %v123, %v121
  %v125 = vmul.f32 %v124, %v123
  %v126 = vmul.f32 0.5, %v125
  %v127 = vsub.f32 1.5, %v126
  %v128 = vmul.f32 %v123, %v127
  %vm129 = vweird.f32 %v121
  %vm130 = vweird.f32 %v123
  %vm131 = vmor %vm129, %vm130
  %v132 = vsel %vm131, %v123, %v128
  %v133 = vrsqrt.pop %v122
  %v134 = vmul.f32 %v133, %v122
  %v135 = vmul.f32 %v134, %v133
  %v136 = vmul.f32 0.5, %v135
  %v137 = vsub.f32 1.5, %v136
  %v138 = vmul.f32 %v133, %v137
  %vm139 = vweird.f32 %v122
  %vm140 = vweird.f32 %v133
  %vm141 = vmor %vm139, %vm140
  %v142 = vsel %vm141, %v133, %v138
  %v143 = vmul.f32 %v109, %v132
  %v144 = vmul.f32 %v110, %v142
  %v146 = vperm.slane %v91, 0
  %v148 = vmul.f32 %v143, %v146
  %v149 = vmul.f32 %v144, %v146
  %v151 = vperm.slane %v92, 0
  %v153 = vadd.f32 %v148, %v151
  %v154 = vadd.f32 %v149, %v151
  %v155 = vpack.c.bf16 %v153, %v153
  %v156 = vpack.c.bf16 %v154, %v154
  %vm157 = vcmask 257024
  %158 = vst.msk [vmem:[%s6] sm:$0xf] %vm157, %v155
  %159 = vst.msk [vmem:[%s6 + $0x4] sm:$0xf] %vm157, %v156
  // Predicated region
  $region26: #{audio_encoder_forward.18} parent=0 // pred_check
    _
  $region27: #{audio_encoder_forward.18} parent=0 // pred_check_branch
    %161 = sbr.rel (0) target = $region29
  $region28: #{audio_encoder_forward.18} parent=0 // pred_region
    _
  $region29: #{audio_encoder_forward.18} parent=0 // pred_fallthru
    _
  // Predicated region
  $region30: #{audio_encoder_forward.18} parent=0 // pred_check
    _
  $region31: #{audio_encoder_forward.18} parent=0 // pred_check_branch
    %163 = sbr.rel (0) target = $region33
  $region32: #{audio_encoder_forward.18} parent=0 // pred_region
    _
  $region33: #{audio_encoder_forward.18} parent=0 // pred_fallthru
    _

// kernel: audio_encoder_forward.25
$region0: #{audio_encoder_forward.25}
  #allocation0 [shape = 'u32[]', space=smem, size = 0x4, offset = 0x4, fixed_abs, tag = 'smem constant byte address 0x4 - core index']
  #allocation1 [shape = 'u32[72,128]{1,0:T(1,128)}', space=vmem, size = 0x9000, scoped, tag = 'internal scratch']
  #allocation2 [shape = 'f32[8,1]{1,0:T(8,128)}', space=vmem, size = 0x1000, scoped, tag = 'scratch operand']
  #allocation3 [shape = 'f32[8,1]{1,0:T(8,128)}', space=vmem, size = 0x1000, scoped, tag = 'scratch operand']
  #allocation4 [shape = 'f32[8,32]{1,0:T(8,128)}', space=vmem, size = 0x1000, scoped, tag = 'scratch operand']
  %s0 = inlined_call_operand.vmem [shape: bf16[2,8,32], index: 0, kind: input, shape index: {}]
  %s1 = inlined_call_operand.vmem [shape: bf16[2,2,8,32], index: 1, kind: input, shape index: {}, may-alias: {1,2}]
  %s2 = inlined_call_operand.vmem [shape: bf16[2,2,8,32], index: 2, kind: input, shape index: {}, may-alias: {1,2}]
  %s3 = inlined_call_operand.hbm [shape: f32[2,8,32], index: 3, kind: output, shape index: {}]
  %s4 = sld [smem:[#allocation0]]
  $region53: #{audio_encoder_forward.25} parent=0
    _
  %s6 = ssub.s32 1, %s4
  %s7 = scalar_select 0, %s6, %s4
  $region1: #{audio_encoder_forward.25} parent=0
    #allocation5 [shape = 'u8[8192]{0}', space=vmem, size = 0x2000, scoped, tag = 'output window, operand 0']
    #allocation6 [shape = 's32[2]{0}', space=sflag, size = 0x8, scoped, tag = 'scoped memory for audio_encoder_forward.25']
    %8 = vsyncpa [#allocation6], 0
    %s9 = scalar_lea.sflag [#allocation6], 1
    %10 = vsyncpa %s9, 0
    loop: start=0, step=1, limit=4
    $region2: #{audio_encoder_forward.25} parent=1 // loop_pre_header
      _
    $region3: #{audio_encoder_forward.25} parent=1 // loop_header
      %s12 = sphi 0, %s16
      %p13 = scmp.ge.s32.totalorder %s12, 4
      %s19 = sphi 0, %s38
      %s20 = sphi 0, %s34
      %s21 = sphi 0, %s30
      %s22 = sphi 0, %s19
      %s23 = sphi 0, %s20
      %s24 = sphi 0, %s21
      %s25 = sphi 0, %s22
      %s26 = sphi 0, %s23
      %s27 = sphi 0, %s24
      %s43 = sphi 0, %s45
      %s46 = sphi 0, %s43
      %s47 = sphi 0, %s46
      %s63 = sphi 0, %s47
      %s71 = sphi 0, %s73
      %s74 = sphi 0, %s71
      %s75 = sphi 0, %s74
      %s91 = sphi 0, %s75
      %s99 = sphi 0, %s101
      %s102 = sphi 0, %s99
      %s103 = sphi 0, %s102
      %s119 = sphi 0, %s103
      %s127 = sphi 0, %s129
      %s130 = sphi 0, %s127
      %s131 = sphi 0, %s130
      %s147 = sphi 0, %s131
    $region4: #{audio_encoder_forward.25} parent=1 // loop_header_branch
      %15 = sbr.rel (%p13) target = $region8
    $region5: #{audio_encoder_forward.25} parent=1 // loop_body
      %s17 = ssub.s32 %s12, 1
      %s18 = ssub.s32 %s12, 2
      %s28 = sadd.s32 1, %s21
      %p29 = scmp.ge.s32.totalorder %s28, 1
      %s30 = scalar_select %p29, 0, %s28
      %s31 = sadd.s32 1, %s20
      %s32 = scalar_select %p29, %s31, %s20
      %p33 = scmp.ge.s32.totalorder %s32, 1
      %s34 = scalar_select %p33, 0, %s32
      %s35 = sadd.s32 1, %s19
      %s36 = scalar_select %p33, %s35, %s19
      %p37 = scmp.ge.s32.totalorder %s36, 2
      %s38 = scalar_select %p37, 0, %s36
      %s39 = ssub.s32 %s19, %s38
      %s40 = ssub.s32 %s20, %s34
      %s41 = sor.u32 %s39, %s40
      %p42 = scmp.eq.s32.totalorder %s41, 0
      %s44 = sadd.s32 %s43, 1
      %s45 = scalar_select %p42, %s43, %s44
      %p48 = pneg %p42
      %p49 = scmp.eq.s32.totalorder %s12, 1
      %p50 = por %p48, %p49
      %p51 = scmp.ne.s32.totalorder %s43, %s46
      %p52 = scmp.eq.s32.totalorder %s12, 0
      %p53 = por %p51, %p52
      %p54 = scmp.ne.s32.totalorder %s43, %s46
      %p55 = scmp.eq.s32.totalorder %s17, 1
      %p56 = por %p54, %p55
      %p57 = scmp.ne.s32.totalorder %s46, %s47
      %p58 = scmp.eq.s32.totalorder %s17, 0
      %p59 = por %p57, %p58
      %p60 = scmp.ne.s32.totalorder %s46, %s47
      %p61 = scmp.eq.s32.totalorder %s18, 1
      %p62 = por %p60, %p61
      %p64 = scmp.ne.s32.totalorder %s47, %s63
      %p65 = scmp.eq.s32.totalorder %s18, 0
      %p66 = por %p64, %p65
      %s67 = ssub.s32 %s19, %s38
      %s68 = ssub.s32 %s21, %s30
      %s69 = sor.u32 %s67, %s68
      %p70 = scmp.eq.s32.totalorder %s69, 0
      %s72 = sadd.s32 %s71, 1
      %s73 = scalar_select %p70, %s71, %s72
      %p76 = pneg %p70
      %p77 = scmp.eq.s32.totalorder %s12, 1
      %p78 = por %p76, %p77
      %p79 = scmp.ne.s32.totalorder %s71, %s74
      %p80 = scmp.eq.s32.totalorder %s12, 0
      %p81 = por %p79, %p80
      %p82 = scmp.ne.s32.totalorder %s71, %s74
      %p83 = scmp.eq.s32.totalorder %s17, 1
      %p84 = por %p82, %p83
      %p85 = scmp.ne.s32.totalorder %s74, %s75
      %p86 = scmp.eq.s32.totalorder %s17, 0
      %p87 = por %p85, %p86
      %p88 = scmp.ne.s32.totalorder %s74, %s75
      %p89 = scmp.eq.s32.totalorder %s18, 1
      %p90 = por %p88, %p89
      %p92 = scmp.ne.s32.totalorder %s75, %s91
      %p93 = scmp.eq.s32.totalorder %s18, 0
      %p94 = por %p92, %p93
      %s95 = ssub.s32 %s19, %s38
      %s96 = ssub.s32 %s21, %s30
      %s97 = sor.u32 %s95, %s96
      %p98 = scmp.eq.s32.totalorder %s97, 0
      %s100 = sadd.s32 %s99, 1
      %s101 = scalar_select %p98, %s99, %s100
      %p104 = pneg %p98
      %p105 = scmp.eq.s32.totalorder %s12, 1
      %p106 = por %p104, %p105
      %p107 = scmp.ne.s32.totalorder %s99, %s102
      %p108 = scmp.eq.s32.totalorder %s12, 0
      %p109 = por %p107, %p108
      %p110 = scmp.ne.s32.totalorder %s99, %s102
      %p111 = scmp.eq.s32.totalorder %s17, 1
      %p112 = por %p110, %p111
      %p113 = scmp.ne.s32.totalorder %s102, %s103
      %p114 = scmp.eq.s32.totalorder %s17, 0
      %p115 = por %p113, %p114
      %p116 = scmp.ne.s32.totalorder %s102, %s103
      %p117 = scmp.eq.s32.totalorder %s18, 1
      %p118 = por %p116, %p117
      %p120 = scmp.ne.s32.totalorder %s103, %s119
      %p121 = scmp.eq.s32.totalorder %s18, 0
      %p122 = por %p120, %p121
      %s123 = ssub.s32 %s19, %s38
      %s124 = ssub.s32 %s20, %s34
      %s125 = sor.u32 %s123, %s124
      %p126 = scmp.eq.s32.totalorder %s125, 0
      %s128 = sadd.s32 %s127, 1
      %s129 = scalar_select %p126, %s127, %s128
      %p132 = pneg %p126
      %p133 = scmp.eq.s32.totalorder %s12, 1
      %p134 = por %p132, %p133
      %p135 = scmp.ne.s32.totalorder %s127, %s130
      %p136 = scmp.eq.s32.totalorder %s12, 0
      %p137 = por %p135, %p136
      %p138 = scmp.ne.s32.totalorder %s127, %s130
      %p139 = scmp.eq.s32.totalorder %s17, 1
      %p140 = por %p138, %p139
      %p141 = scmp.ne.s32.totalorder %s130, %s131
      %p142 = scmp.eq.s32.totalorder %s17, 0
      %p143 = por %p141, %p142
      %p144 = scmp.ne.s32.totalorder %s130, %s131
      %p145 = scmp.eq.s32.totalorder %s18, 1
      %p146 = por %p144, %p145
      %p148 = scmp.ne.s32.totalorder %s131, %s147
      %p149 = scmp.eq.s32.totalorder %s18, 0
      %p150 = por %p148, %p149
      %p151 = scmp.le.s32.totalorder 1, %s12
      %p152 = scmp.lt.s32.totalorder %s12, 3
      %p153 = pnand %p151, %p152
      %p154 = pneg %p153
      // Predicated region
      $region9: #{audio_encoder_forward.25} parent=5 // pred_check
        _
      $region10: #{audio_encoder_forward.25} parent=5 // pred_check_branch
        %156 = sbr.rel (%p153) target = $region12
      $region11: #{audio_encoder_forward.25} parent=5 // pred_region
        %s157 = ssub.s32 %s12, 1
      $region12: #{audio_encoder_forward.25} parent=5 // pred_fallthru
        _
      %p158 = scmp.lt.s32.totalorder %s12, 2
      // Predicated region
      $region13: #{audio_encoder_forward.25} parent=5 // pred_check
        %p159 = pneg %p158
      $region14: #{audio_encoder_forward.25} parent=5 // pred_check_branch
        %161 = sbr.rel (%p159) target = $region16
      $region15: #{audio_encoder_forward.25} parent=5 // pred_region
        // Predicated region
        $region17: #{audio_encoder_forward.25} parent=15 // pred_check
          %p162 = pneg %p53
        $region18: #{audio_encoder_forward.25} parent=15 // pred_check_branch
          %164 = sbr.rel (%p162) target = $region20
        $region19: #{audio_encoder_forward.25} parent=15 // pred_region
          %p165 = scmp.lt.s32.totalorder %s19, 1
          %s166 = scalar_select %p165, %s19, 1
          %p167 = scmp.lt.s32.totalorder %s20, 0
          %s168 = scalar_select %p167, %s20, 0
          %s169 = sadd.s32 %s168, %s166
          %s170 = smul.addr %s169, 4
          %s171 = scalar_lea.vmem %s0, %s170
        $region20: #{audio_encoder_forward.25} parent=15 // pred_fallthru
          _
        // Predicated region
        $region21: #{audio_encoder_forward.25} parent=15 // pred_check
          %p172 = pneg %p81
        $region22: #{audio_encoder_forward.25} parent=15 // pred_check_branch
          %174 = sbr.rel (%p172) target = $region24
        $region23: #{audio_encoder_forward.25} parent=15 // pred_region
          %p175 = scmp.lt.s32.totalorder %s19, 1
          %s176 = scalar_select %p175, %s19, 1
          %p177 = scmp.lt.s32.totalorder %s21, 0
          %s178 = scalar_select %p177, %s21, 0
          %s179 = sadd.s32 %s178, %s176
          %s180 = smul.addr %s179, 4
          %s181 = scalar_lea.vmem %s1, %s180
        $region24: #{audio_encoder_forward.25} parent=15 // pred_fallthru
          _
        // Predicated region
        $region25: #{audio_encoder_forward.25} parent=15 // pred_check
          %p182 = pneg %p109
        $region26: #{audio_encoder_forward.25} parent=15 // pred_check_branch
          %184 = sbr.rel (%p182) target = $region28
        $region27: #{audio_encoder_forward.25} parent=15 // pred_region
          %p185 = scmp.lt.s32.totalorder %s19, 1
          %s186 = scalar_select %p185, %s19, 1
          %p187 = scmp.lt.s32.totalorder %s21, 0
          %s188 = scalar_select %p187, %s21, 0
          %s189 = sadd.s32 %s188, %s186
          %s190 = sadd.s32 %s189, 2
          %s191 = smul.addr %s190, 4
          %s192 = scalar_lea.vmem %s2, %s191
        $region28: #{audio_encoder_forward.25} parent=15 // pred_fallthru
          _
      $region16: #{audio_encoder_forward.25} parent=5 // pred_fallthru
        _
      %p193 = scmp.le.s32.totalorder 1, %s12
      %p194 = scmp.lt.s32.totalorder %s12, 3
      %p195 = pnand %p193, %p194
      %p196 = pneg %p195
      // Predicated region
      $region29: #{audio_encoder_forward.25} parent=5 // pred_check
        _
      $region30: #{audio_encoder_forward.25} parent=5 // pred_check_branch
        %198 = sbr.rel (%p195) target = $region32
      $region31: #{audio_encoder_forward.25} parent=5 // pred_region
        %s199 = ssub.s32 %s12, 1
        %p200 = scmp.lt.s32.totalorder %s22, 1
        %s201 = scalar_select %p200, %s22, 1
        %p202 = scmp.lt.s32.totalorder %s23, 0
        %s203 = scalar_select %p202, %s23, 0
        %s204 = sadd.s32 %s203, %s201
        %s205 = smul.addr %s204, 4
        %s206 = scalar_lea.vmem %s0, %s205
        %p207 = pneg %p59
        %p208 = pneg %p56
        %p209 = scmp.lt.s32.totalorder %s22, 1
        %s210 = scalar_select %p209, %s22, 1
        %p211 = scmp.lt.s32.totalorder %s24, 0
        %s212 = scalar_select %p211, %s24, 0
        %s213 = sadd.s32 %s212, %s210
        %s214 = smul.addr %s213, 4
        %s215 = scalar_lea.vmem %s1, %s214
        %p216 = pneg %p87
        %p217 = pneg %p84
        %p218 = scmp.lt.s32.totalorder %s22, 1
        %s219 = scalar_select %p218, %s22, 1
        %p220 = scmp.lt.s32.totalorder %s24, 0
        %s221 = scalar_select %p220, %s24, 0
        %s222 = sadd.s32 %s221, %s219
        %s223 = sadd.s32 %s222, 2
        %s224 = smul.addr %s223, 4
        %s225 = scalar_lea.vmem %s2, %s224
        %p226 = pneg %p115
        %p227 = pneg %p112
        %p228 = pneg %p143
        %p229 = pneg %p140
        %s230 = sand.u32 %s130, 1
        %s231 = scalar_lea.sflag [#allocation6], %s230
        %s232 = sand.u32 %s130, 1
        %s233 = smul.addr %s232, 8
        %s234 = scalar_lea.vmem [#allocation5], %s233
        %p235 = scmp.lt.s32.totalorder %s22, 1
        %s236 = scalar_select %p235, %s22, 1
        %p237 = scmp.lt.s32.totalorder %s23, 0
        %s238 = scalar_select %p237, %s23, 0
        %s239 = sadd.s32 %s238, %s236
        %s240 = smul.addr %s239, 4
        %s241 = scalar_lea.vmem %s0, %s240
        %p242 = scmp.lt.s32.totalorder %s22, 1
        %s243 = scalar_select %p242, %s22, 1
        %p244 = scmp.lt.s32.totalorder %s24, 0
        %s245 = scalar_select %p244, %s24, 0
        %s246 = sadd.s32 %s245, %s243
        %s247 = smul.addr %s246, 4
        %s248 = scalar_lea.vmem %s1, %s247
        %p249 = scmp.lt.s32.totalorder %s22, 1
        %s250 = scalar_select %p249, %s22, 1
        %p251 = scmp.lt.s32.totalorder %s24, 0
        %s252 = scalar_select %p251, %s24, 0
        %s253 = sadd.s32 %s252, %s250
        %s254 = sadd.s32 %s253, 2
        %s255 = smul.addr %s254, 4
        %s256 = scalar_lea.vmem %s2, %s255
        %p258 = scmp.eq.s32.totalorder %s24, 0
        // Predicated region
        $region33: #{audio_encoder_forward.25} parent=31 // pred_check
          %p259 = pneg %p258
        $region34: #{audio_encoder_forward.25} parent=31 // pred_check_branch
          %261 = sbr.rel (%p259) target = $region36
        $region35: #{audio_encoder_forward.25} parent=31 // pred_region
          %vm262 = vcmask 7168
          %263 = vst.msk [vmem:[#allocation2] sm:$0xff] %vm262, -inf
          %264 = vst.msk [vmem:[#allocation3] sm:$0xff] %vm262, 0.0
          %vm265 = vcmask 261120
          %266 = vst.msk [vmem:[#allocation4] sm:$0xff] %vm265, 0.0
        $region36: #{audio_encoder_forward.25} parent=31 // pred_fallthru
          _
        %v267 = vld [vmem:[%s241] sm:$0xf]
        %v268 = vld [vmem:[%s248] sm:$0xf]
        %v269 = vld [vmem:[%s256] sm:$0xf]
        %vm270 = vcmask 261120
        %v272 = vsel %vm270, %v267, 0
        %v275 = vsel %vm270, %v268, 0
        %277 = vmatpush.bf16.xpose.msra.mxu0 0
        %278 = vmatpush.bf16.xpose.msra.mxu0 0
        %279 = vmatpush.bf16.xpose.msra.mxu0 0
        %280 = vmatpush.bf16.xpose.msra.mxu0 0
        %281 = vmatpush.bf16.xpose.msra.mxu0 0
        %282 = vmatpush.bf16.xpose.msra.mxu0 0
        %283 = vmatpush.bf16.xpose.msra.mxu0 0
        %284 = vmatpush.bf16.xpose.msra.mxu0 %v275
        %285 = vmatmul.bf16.gmra.mxu0 %v272
        %v286 = vpop.f32.mrf.mxu0
        %v287 = vadd.f32 0.0, %v286
        %v288 = vpop.f32.mrf.mxu0
        %289 = vdwg.mxu0
        %v290 = vld [vmem:[#allocation2] sm:$0xff]
        %vm291 = vcmask 64512
        %v292 = vsel %vm291, %v287, -inf
        %293 = vmax.xlane.f32.xlu0 %v292
        %v294 = vpop.xlane.xlu0 %293
        %v295 = vmax.f32 %v290, %v294
        %v296 = vsub.f32 %v290, %v295
        %v297 = vmul.f32 %v296, 1.442695
        %v298 = vpow.pop %v297
        %300 = vset.pattern.permute.xlu0 0
        %301 = vperm.xlu0 %300, %v295
        %v302 = vpop.permute.xlu0 %301
        %v304 = vsub.f32 %v287, %v302
        %v305 = vmul.f32 %v304, 1.442695
        %v306 = vpow.pop %v305
        %v307 = vld [vmem:[#allocation3] sm:$0xff]
        %v308 = vmul.f32 %v298, %v307
        %v309 = vsel %vm291, %v306, 0.0
        %310 = vadd.xlane.f32.xlu0 %v309
        %v311 = vpop.xlane.xlu0 %310
        %v312 = vadd.f32 %v308, %v311
        %vm313 = vcmask 7168
        %314 = vst.msk [vmem:[#allocation3] sm:$0xff] %vm313, %v312
        %v315 = vld [vmem:[#allocation4] sm:$0xff]
        %317 = vset.pattern.permute.xlu0 0
        %318 = vperm.xlu0 %317, %v298
        %v319 = vpop.permute.xlu0 %318
        %v321 = vmul.f32 %v319, %v315
        %v322 = vpack.c.bf16 %v306, %v306
        %v324 = vsel %vm291, %v322, 0
        %vm326 = vcmask 1043456
        %v328 = vsel %vm326, %v269, 0
        %330 = vmatpush.bf16.msra.mxu0 0
        %331 = vmatpush.bf16.msra.mxu0 0
        %332 = vmatpush.bf16.msra.mxu0 0
        %333 = vmatpush.bf16.msra.mxu0 0
        %334 = vmatpush.bf16.msra.mxu0 0
        %335 = vmatpush.bf16.msra.mxu0 0
        %336 = vmatpush.bf16.msra.mxu0 0
        %337 = vmatpush.bf16.msra.mxu0 %v328
        %338 = vmatmul.bf16.gmra.mxu0 %v324
        %v339 = vpop.f32.mrf.mxu0
        %v340 = vadd.f32 0.0, %v339
        %v341 = vpop.f32.mrf.mxu0
        %342 = vdwg.mxu0
        %v343 = vadd.f32 %v321, %v340
        %344 = vst.msk [vmem:[#allocation4] sm:$0xff] %vm270, %v343
        %345 = vst.msk [vmem:[#allocation2] sm:$0xff] %vm313, %v295
        // Predicated region
        $region37: #{audio_encoder_forward.25} parent=31 // pred_check
          %p346 = pneg %p258
        $region38: #{audio_encoder_forward.25} parent=31 // pred_check_branch
          %348 = sbr.rel (%p346) target = $region40
        $region39: #{audio_encoder_forward.25} parent=31 // pred_region
          %v349 = vld [vmem:[#allocation4] sm:$0xff]
          %v350 = vld [vmem:[#allocation3] sm:$0xff]
          %v351 = vrcp.pop %v350
          %353 = vset.pattern.permute.xlu0 0
          %354 = vperm.xlu0 %353, %v351
          %v355 = vpop.permute.xlu0 %354
          %v357 = vmul.f32 %v349, %v355
          %358 = vst.msk [vmem:[%s234] sm:$0xff] %vm270, %v357
        $region40: #{audio_encoder_forward.25} parent=31 // pred_fallthru
          _
        %s359 = sand.u32 %s130, 1
        %s360 = scalar_lea.sflag [#allocation6], %s359
        %s361 = sand.u32 %s130, 1
        %s362 = smul.addr %s361, 8
        %s363 = scalar_lea.vmem [#allocation5], %s362
        // Predicated region
        $region41: #{audio_encoder_forward.25} parent=31 // pred_check
          %p364 = pneg %p140
        $region42: #{audio_encoder_forward.25} parent=31 // pred_check_branch
          %366 = sbr.rel (%p364) target = $region44
        $region43: #{audio_encoder_forward.25} parent=31 // pred_region
          %368 = vsyncadd %s360, 0
          %s369 = sadd.s32 %s23, %s22
          %s370 = smul.addr %s369, 8
          %s371 = scalar_lea.hbm %s3, %s370
          %s373 = sshll.u32 %s363, 4
          %s374 = int_to_ptr.vmem [resolvable:$true] %s373
          %s375 = sshll.u32 %s371, 4
          %s376 = int_to_ptr.hbm [resolvable:$true] %s375
          %378 = dma.vmem_to_hbm [thread:$0]  %s374, 128, %s376, %s360
        $region44: #{audio_encoder_forward.25} parent=31 // pred_fallthru
          _
      $region32: #{audio_encoder_forward.25} parent=5 // pred_fallthru
        _
      %p379 = scmp.le.s32.totalorder 2, %s12
      // Predicated region
      $region45: #{audio_encoder_forward.25} parent=5 // pred_check
        %p380 = pneg %p379
      $region46: #{audio_encoder_forward.25} parent=5 // pred_check_branch
        %382 = sbr.rel (%p380) target = $region48
      $region47: #{audio_encoder_forward.25} parent=5 // pred_region
        %s383 = ssub.s32 %s12, 2
        // Predicated region
        $region49: #{audio_encoder_forward.25} parent=47 // pred_check
          %p384 = pneg %p146
        $region50: #{audio_encoder_forward.25} parent=47 // pred_check_branch
          %386 = sbr.rel (%p384) target = $region52
        $region51: #{audio_encoder_forward.25} parent=47 // pred_region
          %s387 = sand.u32 %s131, 1
          %s388 = scalar_lea.sflag [#allocation6], %s387
          %s389 = sand.u32 %s131, 1
          %s390 = smul.addr %s389, 8
          %s391 = scalar_lea.vmem [#allocation5], %s390
          %393 = dma.done %s388, 128
        $region52: #{audio_encoder_forward.25} parent=47 // pred_fallthru
          _
      $region48: #{audio_encoder_forward.25} parent=5 // pred_fallthru
        _
    $region6: #{audio_encoder_forward.25} parent=1 // loop_footer
      %s16 = sadd.s32 1, %s12
    $region7: #{audio_encoder_forward.25} parent=1 // loop_footer_branch
      %11 = sbr.rel target = $region3
    $region8: #{audio_encoder_forward.25} parent=1 // loop_exit
      _
    %394 = vsyncpa [#allocation6], 1
    %s395 = scalar_lea.sflag [#allocation6], 1
    %396 = vsyncpa %s395, 1

</llo_original>
